<compile_context>
chip_gen: v5e
topology: v5e:2x2
jax: 0.10.0
libtpu: 0.0.40
codegen_flags: <defaults>
</compile_context>

<pallas_src>
import numpy as np
import jax
import jax.numpy as jnp
from jax.experimental import pallas as pl
from jax.experimental.pallas import tpu as pltpu

CONV_KERNELS = (3, 5, 7, 9)
CONV_GROUPS = (1, 4, 8, 16)
KMAX = max(CONV_KERNELS)          # 9
PAD = KMAX // 2                   # 4


# --------------------------- host-side weight prep --------------------------- #

def _ring_taps():
    """Centre-out tap rings in 9x9 coordinates: 3x3 core, then 5x5/7x7/9x9 rings."""
    rings, seen = [], set()
    for k in CONV_KERNELS:
        lo = (KMAX - k) // 2
        taps = [(kh, kw) for kh in range(lo, lo + k) for kw in range(lo, lo + k)
                if (kh, kw) not in seen]
        rings.append(taps)
        seen.update(taps)
    return rings                   # sizes 9, 16, 24, 32


def _dense_k9(w_oihw, cin, groups, kmax):
    """Grouped conv weight (Cout, Cin//g, k, k) -> dense (kmax*kmax*cin, Cout).

    Zero-embedded at the centre of the kmax x kmax window, block-diagonal over
    input-channel groups.  Column (row) order is (kh, kw, cin) -- used only for
    the cheap wrapper-side pooling matmul of the SE attention path.
    """
    w = np.asarray(w_oihw, np.float32)
    cout, cin_g, k, _ = w.shape
    off = (kmax - k) // 2
    cpg_out = cout // groups
    dense = np.zeros((kmax, kmax, cin, cout), np.float32)
    for oc in range(cout):
        gi = oc // cpg_out
        dense[off:off + k, off:off + k, gi * cin_g:(gi + 1) * cin_g, oc] = \
            np.transpose(w[oc], (1, 2, 0))
    return dense.reshape(kmax * kmax * cin, cout)


def _build_ring_weights(w_grouped_np, inplans, C):
    """Per-ring fused weights, rows in reverse-concat order [x4 | x3 | x2 | x1].

    Ring r only keeps the branches whose kernel covers it, which is exactly the
    row prefix 0:(4-r)*C.  Column order is (tap-in-ring, cin), matching the
    patch staging done inside the kernel.
    """
    rings = _ring_taps()
    out = []
    for r, taps in enumerate(rings):
        nb = 4 - r
        wr = np.zeros((nb * C, len(taps) * inplans), np.float32)
        for j in range(nb):                       # row block j -> branch 3 - j
            bi = 3 - j
            k, g = CONV_KERNELS[bi], CONV_GROUPS[bi]
            off_b = (KMAX - k) // 2
            w = np.asarray(w_grouped_np[bi], np.float32)   # (C, Cin//g, k, k)
            cpg_out, cpg_in = C // g, inplans // g
            for oc in range(C):
                gi = oc // cpg_out
                for tix, (kh, kw) in enumerate(taps):
                    col = tix * inplans + gi * cpg_in
                    wr[j * C + oc, col:col + cpg_in] = w[oc, :, kh - off_b, kw - off_b]
        out.append(jnp.asarray(wr, jnp.bfloat16))
    return out


def init_params(key, inplans, planes, reduction=4):
    """Deterministic parameters: 4 bias-free grouped convs + shared SE module."""
    C = planes // 4
    Cr = max(C // reduction, 1)
    keys = jax.random.split(key, 8)

    w_grouped = []
    for i, (k, g) in enumerate(zip(CONV_KERNELS, CONV_GROUPS)):
        w_grouped.append(
            0.05 * jax.random.normal(keys[i], (C, inplans // g, k, k), jnp.float32))
    fc1_w = 0.1 * jax.random.normal(keys[4], (Cr, C), jnp.float32)
    fc1_b = 0.1 * jax.random.normal(keys[5], (Cr,), jnp.float32)
    fc2_w = 0.1 * jax.random.normal(keys[6], (C, Cr), jnp.float32)
    fc2_b = 0.1 * jax.random.normal(keys[7], (C,), jnp.float32)

    # bf16-rounded conv weights: exactly what the kernel's MXU sees.
    wq = [np.asarray(w.astype(jnp.bfloat16).astype(jnp.float32)) for w in w_grouped]

    # Ring-decomposed fused weights for the kernel (bf16).
    w_rings = _build_ring_weights(wq, inplans, C)

    # Dense (81*Cin, 4C) pooling weight, natural branch order [x1|x2|x3|x4],
    # used only in the wrapper: branch channel means = window_sums @ pool_w / HW.
    pool_w = np.concatenate(
        [_dense_k9(w, inplans, g, KMAX) for w, g in zip(wq, CONV_GROUPS)], axis=1)

    return {
        "w_grouped": w_grouped,                                   # reference only
        "fc1_w": fc1_w, "fc1_b": fc1_b, "fc2_w": fc2_w, "fc2_b": fc2_b,
        "w_rings": w_rings,
        "pool_w": jnp.asarray(pool_w, jnp.float32),
    }


# ------------------------------- Pallas kernel ------------------------------- #

def _make_kernel(cin, c, tile, win_w, ring_offsets):
    """Kernel factory.  Per grid step (b, t):
       - one aligned window load of the flat padded image,
       - 81 static shifted slices staged into 4 ring patch scratches (VMEM),
       - 4 MXU matmuls (one per ring, contiguous branch-row prefixes),
       - combine + scale by the precomputed SE-softmax attention, store tile.
    """
    def kernel(x_ref, w0_ref, w1_ref, w2_ref, w3_ref, att_ref, o_ref,
               p0, p1, p2, p3):
        t = pl.program_id(1)
        base = pl.multiple_of(t * tile, 128)
        win = x_ref[:, pl.ds(base, win_w)]                       # (cin, win_w) bf16

        prefs = (p0, p1, p2, p3)
        for r, offs in enumerate(ring_offsets):
            pref = prefs[r]
            for tix, off in enumerate(offs):
                pref[tix * cin:(tix + 1) * cin, :] = win[:, off:off + tile]

        y0 = jnp.dot(w0_ref[...], p0[...], preferred_element_type=jnp.float32)
        y1 = jnp.dot(w1_ref[...], p1[...], preferred_element_type=jnp.float32)
        y2 = jnp.dot(w2_ref[...], p2[...], preferred_element_type=jnp.float32)
        y3 = jnp.dot(w3_ref[...], p3[...], preferred_element_type=jnp.float32)

        att = att_ref[...]                                       # (4c, 1) f32
        o_ref[0 * c:1 * c, :] = (y0[0 * c:1 * c] + y1[0 * c:1 * c]
                                 + y2[0 * c:1 * c] + y3) * att[0 * c:1 * c]
        o_ref[1 * c:2 * c, :] = (y0[1 * c:2 * c] + y1[1 * c:2 * c]
                                 + y2[1 * c:2 * c]) * att[1 * c:2 * c]
        o_ref[2 * c:3 * c, :] = (y0[2 * c:3 * c] + y1[2 * c:3 * c]) * att[2 * c:3 * c]
        o_ref[3 * c:4 * c, :] = y0[3 * c:4 * c] * att[3 * c:4 * c]

    return kernel


# --------------------------------- wrapper ----------------------------------- #

def psa_forward(x_nchw, params):
    w_rings = params["w_rings"]
    pool_w = params["pool_w"]
    B, Cin, H, W = x_nchw.shape
    C4 = pool_w.shape[1]
    C = C4 // 4
    assert Cin % 16 == 0, "inplans must be a multiple of 16 (bf16 sublane packing)"
    assert C % 8 == 0, "planes//4 must be a multiple of 8 (sublane alignment)"

    def rup(a, m):
        return (a + m - 1) // m * m

    Wp = W + 2 * PAD                      # padded-width output grid
    HW = H * W
    HWw = H * Wp                          # wide (padded-width) flat output length
    tile = rup(HWw, 128) if HWw <= 512 else 512
    n_t = -(-HWw // tile)
    hww_pad = n_t * tile
    maxoff = (KMAX - 1) * Wp + (KMAX - 1)
    offpad = rup(maxoff, 128)
    win_w = tile + offpad
    lpf = hww_pad + offpad                # flat padded-input length per (b, cin)

    hi = jax.lax.Precision.HIGHEST
    xq = x_nchw.astype(jnp.bfloat16)

    # ---- SE attention (wrapper, exact pooled sums, negligible cost) ----
    xq32 = xq.astype(jnp.float32)
    xp9 = jnp.pad(xq32, ((0, 0), (0, 0), (PAD, PAD), (PAD, PAD)))
    ii = jnp.pad(jnp.cumsum(jnp.cumsum(xp9, axis=2), axis=3),
                 ((0, 0), (0, 0), (1, 0), (1, 0)))
    khi = jnp.arange(KMAX)[:, None]
    kwi = jnp.arange(KMAX)[None, :]
    ws = (ii[:, :, khi + H, kwi + W] - ii[:, :, khi, kwi + W]
          - ii[:, :, khi + H, kwi] + ii[:, :, khi, kwi])          # (B, Cin, 9, 9)
    ws_flat = ws.transpose(0, 2, 3, 1).reshape(B, KMAX * KMAX * Cin)
    means = jnp.dot(ws_flat, pool_w, precision=hi) / HW           # (B, 4C) [x1..x4]
    m = means.reshape(B, 4, C)
    h = jax.nn.relu(jnp.einsum("bnc,rc->bnr", m, params["fc1_w"], precision=hi)
                    + params["fc1_b"])
    z = jnp.einsum("bnr,cr->bnc", h, params["fc2_w"], precision=hi) + params["fc2_b"]
    att = jax.nn.softmax(jax.nn.sigmoid(z), axis=1)               # (B, 4, C)
    att_rev = att[:, ::-1, :].reshape(B, C4, 1).astype(jnp.float32)  # [x4|x3|x2|x1]

    # ---- flat zero-padded bf16 input slab (the ONLY big kernel input) ----
    xp = jnp.pad(xq, ((0, 0), (0, 0), (PAD, PAD), (PAD, PAD)))    # (B,Cin,H+8,Wp)
    xflat = xp.reshape(B, Cin, (H + 2 * PAD) * Wp)
    xflat = jnp.pad(xflat, ((0, 0), (0, 0), (0, lpf - (H + 2 * PAD) * Wp)))

    rings = _ring_taps()
    ring_offsets = [[kh * Wp + kw for (kh, kw) in taps] for taps in rings]
    kernel = _make_kernel(Cin, C, tile, win_w, ring_offsets)

    flops = 2 * B * n_t * tile * sum(w.shape[0] * w.shape[1] for w in w_rings)
    bytes_acc = (xflat.size * 2 + sum(w.size for w in w_rings) * 2
                 + att_rev.size * 4 + B * C4 * hww_pad * 4)
    cost = pl.CostEstimate(flops=flops, transcendentals=0, bytes_accessed=bytes_acc)

    scratch = [pltpu.VMEM((len(taps) * Cin, tile), jnp.bfloat16) for taps in rings]

    vmem_need = (2 * (Cin * lpf * 2 + C4 * tile * 4)
                 + 2 * sum(w.size for w in w_rings) * 2
                 + sum(len(taps) * Cin * tile * 2 for taps in rings)
                 + (1 << 20))
    vmem_lim = int(min(max(2 * vmem_need, 16 << 20), 40 << 20))

    out_wide = pl.pallas_call(
        kernel,
        out_shape=jax.ShapeDtypeStruct((B, C4, hww_pad), jnp.float32),
        grid_spec=pltpu.PrefetchScalarGridSpec(
            num_scalar_prefetch=0,
            grid=(B, n_t),
            in_specs=[
                pl.BlockSpec((None, Cin, lpf), lambda b, t: (b, 0, 0)),   # image slab
                pl.BlockSpec(w_rings[0].shape, lambda b, t: (0, 0)),
                pl.BlockSpec(w_rings[1].shape, lambda b, t: (0, 0)),
                pl.BlockSpec(w_rings[2].shape, lambda b, t: (0, 0)),
                pl.BlockSpec(w_rings[3].shape, lambda b, t: (0, 0)),
                pl.BlockSpec((None, C4, 1), lambda b, t: (b, 0, 0)),      # attention
            ],
            out_specs=pl.BlockSpec((None, C4, tile), lambda b, t: (b, 0, t)),
            scratch_shapes=scratch,
        ),
        compiler_params=pltpu.CompilerParams(
            dimension_semantics=("parallel", "parallel"),
            vmem_limit_bytes=vmem_lim,
        ),
        cost_estimate=cost,
    )(xflat, *w_rings, att_rev)

    # Drop the 8 padded-width garbage columns per row (pure slice, no transpose).
    out = out_wide[:, :, :HWw].reshape(B, C4, H, Wp)[:, :, :, :W]
    return out


# ----------------------------- pure-JAX reference ----------------------------- #

def psa_reference(x_nchw, params, quantize_inputs=False):
    """Reference PSAModule forward.  quantize_inputs=True rounds x / conv
    weights to bf16 (to match the kernel's MXU inputs) but keeps f32 math."""
    hi = jax.lax.Precision.HIGHEST

    def q(a):
        a = a.astype(jnp.float32)
        return a.astype(jnp.bfloat16).astype(jnp.float32) if quantize_inputs else a

    x = q(x_nchw)
    ys = []
    for wg, k, g in zip(params["w_grouped"], CONV_KERNELS, CONV_GROUPS):
        w_hwio = jnp.transpose(q(wg), (2, 3, 1, 0))                # (k,k,Cin//g,C)
        y = jax.lax.conv_general_dilated(
            x, w_hwio, window_strides=(1, 1),
            padding=[(k // 2, k // 2)] * 2,
            feature_group_count=g,
            dimension_numbers=("NCHW", "HWIO", "NCHW"),
            precision=hi)
        ys.append(y)                                               # (B, C, H, W)

    fc1_w, fc1_b = params["fc1_w"], params["fc1_b"]
    fc2_w, fc2_b = params["fc2_w"], params["fc2_b"]
    ses = []
    for y in ys:
        m = y.mean(axis=(2, 3))                                    # (B, C)
        h = jax.nn.relu(jnp.dot(m, fc1_w.T, precision=hi) + fc1_b)
        z = jnp.dot(h, fc2_w.T, precision=hi) + fc2_b
        ses.append(jax.nn.sigmoid(z))
    se = jnp.stack(ses, axis=1)                                    # (B, 4, C)
    att = jax.nn.softmax(se, axis=1)
    weighted = [ys[i] * att[:, i][:, :, None, None] for i in range(4)]
    # reverse-concat order: (x4, x3, x2, x1)
    return jnp.concatenate([weighted[3], weighted[2], weighted[1], weighted[0]], axis=1)


# ----------------------------------- test ------------------------------------ #

if __name__ == "__main__":
    B, inplans, planes, H, W = 2, 16, 64, 16, 16      # split_channel = 16
    key = jax.random.PRNGKey(0)
    kx, kp = jax.random.split(key)
    x = jax.random.normal(kx, (B, inplans, H, W), jnp.float32)     # NCHW
    params = init_params(kp, inplans, planes)

    fwd = jax.jit(psa_forward)
    out = jax.block_until_ready(fwd(x, params))
    assert out.shape == (B, planes, H, W), out.shape

    # Structural check: reference using the same bf16 rounding of x / conv
    # weights (tight tolerance catches ordering / ring / SE / softmax bugs).
    ref_q = jax.block_until_ready(psa_reference(x, params, quantize_inputs=True))
    err_q = float(jnp.max(jnp.abs(out - ref_q)))
    assert err_q < 5e-3, f"bf16-matched max abs err {err_q}"

    # Fidelity check vs. the full-f32 reference (bf16 rounding of conv inputs).
    ref_f = jax.block_until_ready(psa_reference(x, params, quantize_inputs=False))
    err_f = float(jnp.max(jnp.abs(out - ref_f)))
    assert err_f < 3e-2, f"f32 max abs err {err_f}"

    print("KERNEL_OK")
</pallas_src>

<mosaic_0001>
module attributes {stable_mosaic.version = 11 : i64} {
  func.func @kernel(%arg0: i32, %arg1: i32, %arg2: memref<1x16x640xbf16, #tpu.memory_space<vmem>>, %arg3: memref<64x144xbf16, #tpu.memory_space<vmem>>, %arg4: memref<48x256xbf16, #tpu.memory_space<vmem>>, %arg5: memref<32x384xbf16, #tpu.memory_space<vmem>>, %arg6: memref<16x512xbf16, #tpu.memory_space<vmem>>, %arg7: memref<1x64x1xf32, #tpu.memory_space<vmem>>, %arg8: memref<1x64x384xf32, #tpu.memory_space<vmem>>, %arg9: memref<144x384xbf16, #tpu.memory_space<vmem>>, %arg10: memref<256x384xbf16, #tpu.memory_space<vmem>>, %arg11: memref<384x384xbf16, #tpu.memory_space<vmem>>, %arg12: memref<512x384xbf16, #tpu.memory_space<vmem>>) attributes {dimension_semantics = [#tpu.dimension_semantics<parallel>, #tpu.dimension_semantics<parallel>], iteration_bounds = array<i64: 2, 1>, scalar_prefetch = 0 : i64, scratch_operands = 4 : i64, tpu.core_type = #tpu.core_type<tc>, window_params = [{transform_indices = @transform_0, window_bounds = array<i64: 1, 16, 640>}, {pipeline_mode = #tpu.pipeline_mode<synchronous>, transform_indices = @transform_1, window_bounds = array<i64: 64, 144>}, {pipeline_mode = #tpu.pipeline_mode<synchronous>, transform_indices = @transform_2, window_bounds = array<i64: 48, 256>}, {pipeline_mode = #tpu.pipeline_mode<synchronous>, transform_indices = @transform_3, window_bounds = array<i64: 32, 384>}, {pipeline_mode = #tpu.pipeline_mode<synchronous>, transform_indices = @transform_4, window_bounds = array<i64: 16, 512>}, {transform_indices = @transform_5, window_bounds = array<i64: 1, 64, 1>}, {transform_indices = @transform_6, window_bounds = array<i64: 1, 64, 384>}]} {
    %c384_i32 = arith.constant 384 : i32
    %0 = arith.muli %arg1, %c384_i32 : i32
    %1 = tpu.assume_multiple %0, 128 : i32
    %c0 = arith.constant 0 : index
    %c0_0 = arith.constant 0 : index
    %2 = arith.index_cast %1 : i32 to index
    %3 = vector.load %arg2[%c0, %c0_0, %2] : memref<1x16x640xbf16, #tpu.memory_space<vmem>>, vector<1x16x640xbf16>
    %4 = vector.shape_cast %3 : vector<1x16x640xbf16> to vector<16x640xbf16>
    %5 = vector.extract_strided_slice %4 {offsets = [0, 75], sizes = [16, 384], strides = [1, 1]} : vector<16x640xbf16> to vector<16x384xbf16>
    %c0_1 = arith.constant 0 : index
    %c0_2 = arith.constant 0 : index
    %6 = vector.load %arg9[%c0_1, %c0_2] : memref<144x384xbf16, #tpu.memory_space<vmem>>, vector<16x384xbf16>
    tpu.vector_store %arg9[%c0_1, %c0_2], %5 {strides = array<i32>} : memref<144x384xbf16, #tpu.memory_space<vmem>>, vector<16x384xbf16>,
    %7 = vector.extract_strided_slice %4 {offsets = [0, 76], sizes = [16, 384], strides = [1, 1]} : vector<16x640xbf16> to vector<16x384xbf16>
    %c16 = arith.constant 16 : index
    %c0_3 = arith.constant 0 : index
    %8 = vector.load %arg9[%c16, %c0_3] : memref<144x384xbf16, #tpu.memory_space<vmem>>, vector<16x384xbf16>
    tpu.vector_store %arg9[%c16, %c0_3], %7 {strides = array<i32>} : memref<144x384xbf16, #tpu.memory_space<vmem>>, vector<16x384xbf16>,
    %9 = vector.extract_strided_slice %4 {offsets = [0, 77], sizes = [16, 384], strides = [1, 1]} : vector<16x640xbf16> to vector<16x384xbf16>
    %c32 = arith.constant 32 : index
    %c0_4 = arith.constant 0 : index
    %10 = vector.load %arg9[%c32, %c0_4] : memref<144x384xbf16, #tpu.memory_space<vmem>>, vector<16x384xbf16>
    tpu.vector_store %arg9[%c32, %c0_4], %9 {strides = array<i32>} : memref<144x384xbf16, #tpu.memory_space<vmem>>, vector<16x384xbf16>,
    %11 = vector.extract_strided_slice %4 {offsets = [0, 99], sizes = [16, 384], strides = [1, 1]} : vector<16x640xbf16> to vector<16x384xbf16>
    %c48 = arith.constant 48 : index
    %c0_5 = arith.constant 0 : index
    %12 = vector.load %arg9[%c48, %c0_5] : memref<144x384xbf16, #tpu.memory_space<vmem>>, vector<16x384xbf16>
    tpu.vector_store %arg9[%c48, %c0_5], %11 {strides = array<i32>} : memref<144x384xbf16, #tpu.memory_space<vmem>>, vector<16x384xbf16>,
    %13 = vector.extract_strided_slice %4 {offsets = [0, 100], sizes = [16, 384], strides = [1, 1]} : vector<16x640xbf16> to vector<16x384xbf16>
    %c64 = arith.constant 64 : index
    %c0_6 = arith.constant 0 : index
    %14 = vector.load %arg9[%c64, %c0_6] : memref<144x384xbf16, #tpu.memory_space<vmem>>, vector<16x384xbf16>
    tpu.vector_store %arg9[%c64, %c0_6], %13 {strides = array<i32>} : memref<144x384xbf16, #tpu.memory_space<vmem>>, vector<16x384xbf16>,
    %15 = vector.extract_strided_slice %4 {offsets = [0, 101], sizes = [16, 384], strides = [1, 1]} : vector<16x640xbf16> to vector<16x384xbf16>
    %c80 = arith.constant 80 : index
    %c0_7 = arith.constant 0 : index
    %16 = vector.load %arg9[%c80, %c0_7] : memref<144x384xbf16, #tpu.memory_space<vmem>>, vector<16x384xbf16>
    tpu.vector_store %arg9[%c80, %c0_7], %15 {strides = array<i32>} : memref<144x384xbf16, #tpu.memory_space<vmem>>, vector<16x384xbf16>,
    %17 = vector.extract_strided_slice %4 {offsets = [0, 123], sizes = [16, 384], strides = [1, 1]} : vector<16x640xbf16> to vector<16x384xbf16>
    %c96 = arith.constant 96 : index
    %c0_8 = arith.constant 0 : index
    %18 = vector.load %arg9[%c96, %c0_8] : memref<144x384xbf16, #tpu.memory_space<vmem>>, vector<16x384xbf16>
    tpu.vector_store %arg9[%c96, %c0_8], %17 {strides = array<i32>} : memref<144x384xbf16, #tpu.memory_space<vmem>>, vector<16x384xbf16>,
    %19 = vector.extract_strided_slice %4 {offsets = [0, 124], sizes = [16, 384], strides = [1, 1]} : vector<16x640xbf16> to vector<16x384xbf16>
    %c112 = arith.constant 112 : index
    %c0_9 = arith.constant 0 : index
    %20 = vector.load %arg9[%c112, %c0_9] : memref<144x384xbf16, #tpu.memory_space<vmem>>, vector<16x384xbf16>
    tpu.vector_store %arg9[%c112, %c0_9], %19 {strides = array<i32>} : memref<144x384xbf16, #tpu.memory_space<vmem>>, vector<16x384xbf16>,
    %21 = vector.extract_strided_slice %4 {offsets = [0, 125], sizes = [16, 384], strides = [1, 1]} : vector<16x640xbf16> to vector<16x384xbf16>
    %c128 = arith.constant 128 : index
    %c0_10 = arith.constant 0 : index
    %22 = vector.load %arg9[%c128, %c0_10] : memref<144x384xbf16, #tpu.memory_space<vmem>>, vector<16x384xbf16>
    tpu.vector_store %arg9[%c128, %c0_10], %21 {strides = array<i32>} : memref<144x384xbf16, #tpu.memory_space<vmem>>, vector<16x384xbf16>,
    %23 = vector.extract_strided_slice %4 {offsets = [0, 50], sizes = [16, 384], strides = [1, 1]} : vector<16x640xbf16> to vector<16x384xbf16>
    %c0_11 = arith.constant 0 : index
    %c0_12 = arith.constant 0 : index
    %24 = vector.load %arg10[%c0_11, %c0_12] : memref<256x384xbf16, #tpu.memory_space<vmem>>, vector<16x384xbf16>
    tpu.vector_store %arg10[%c0_11, %c0_12], %23 {strides = array<i32>} : memref<256x384xbf16, #tpu.memory_space<vmem>>, vector<16x384xbf16>,
    %25 = vector.extract_strided_slice %4 {offsets = [0, 51], sizes = [16, 384], strides = [1, 1]} : vector<16x640xbf16> to vector<16x384xbf16>
    %c16_13 = arith.constant 16 : index
    %c0_14 = arith.constant 0 : index
    %26 = vector.load %arg10[%c16_13, %c0_14] : memref<256x384xbf16, #tpu.memory_space<vmem>>, vector<16x384xbf16>
    tpu.vector_store %arg10[%c16_13, %c0_14], %25 {strides = array<i32>} : memref<256x384xbf16, #tpu.memory_space<vmem>>, vector<16x384xbf16>,
    %27 = vector.extract_strided_slice %4 {offsets = [0, 52], sizes = [16, 384], strides = [1, 1]} : vector<16x640xbf16> to vector<16x384xbf16>
    %c32_15 = arith.constant 32 : index
    %c0_16 = arith.constant 0 : index
    %28 = vector.load %arg10[%c32_15, %c0_16] : memref<256x384xbf16, #tpu.memory_space<vmem>>, vector<16x384xbf16>
    tpu.vector_store %arg10[%c32_15, %c0_16], %27 {strides = array<i32>} : memref<256x384xbf16, #tpu.memory_space<vmem>>, vector<16x384xbf16>,
    %29 = vector.extract_strided_slice %4 {offsets = [0, 53], sizes = [16, 384], strides = [1, 1]} : vector<16x640xbf16> to vector<16x384xbf16>
    %c48_17 = arith.constant 48 : index
    %c0_18 = arith.constant 0 : index
    %30 = vector.load %arg10[%c48_17, %c0_18] : memref<256x384xbf16, #tpu.memory_space<vmem>>, vector<16x384xbf16>
    tpu.vector_store %arg10[%c48_17, %c0_18], %29 {strides = array<i32>} : memref<256x384xbf16, #tpu.memory_space<vmem>>, vector<16x384xbf16>,
    %31 = vector.extract_strided_slice %4 {offsets = [0, 54], sizes = [16, 384], strides = [1, 1]} : vector<16x640xbf16> to vector<16x384xbf16>
    %c64_19 = arith.constant 64 : index
    %c0_20 = arith.constant 0 : index
    %32 = vector.load %arg10[%c64_19, %c0_20] : memref<256x384xbf16, #tpu.memory_space<vmem>>, vector<16x384xbf16>
    tpu.vector_store %arg10[%c64_19, %c0_20], %31 {strides = array<i32>} : memref<256x384xbf16, #tpu.memory_space<vmem>>, vector<16x384xbf16>,
    %33 = vector.extract_strided_slice %4 {offsets = [0, 74], sizes = [16, 384], strides = [1, 1]} : vector<16x640xbf16> to vector<16x384xbf16>
    %c80_21 = arith.constant 80 : index
    %c0_22 = arith.constant 0 : index
    %34 = vector.load %arg10[%c80_21, %c0_22] : memref<256x384xbf16, #tpu.memory_space<vmem>>, vector<16x384xbf16>
    tpu.vector_store %arg10[%c80_21, %c0_22], %33 {strides = array<i32>} : memref<256x384xbf16, #tpu.memory_space<vmem>>, vector<16x384xbf16>,
    %35 = vector.extract_strided_slice %4 {offsets = [0, 78], sizes = [16, 384], strides = [1, 1]} : vector<16x640xbf16> to vector<16x384xbf16>
    %c96_23 = arith.constant 96 : index
    %c0_24 = arith.constant 0 : index
    %36 = vector.load %arg10[%c96_23, %c0_24] : memref<256x384xbf16, #tpu.memory_space<vmem>>, vector<16x384xbf16>
    tpu.vector_store %arg10[%c96_23, %c0_24], %35 {strides = array<i32>} : memref<256x384xbf16, #tpu.memory_space<vmem>>, vector<16x384xbf16>,
    %37 = vector.extract_strided_slice %4 {offsets = [0, 98], sizes = [16, 384], strides = [1, 1]} : vector<16x640xbf16> to vector<16x384xbf16>
    %c112_25 = arith.constant 112 : index
    %c0_26 = arith.constant 0 : index
    %38 = vector.load %arg10[%c112_25, %c0_26] : memref<256x384xbf16, #tpu.memory_space<vmem>>, vector<16x384xbf16>
    tpu.vector_store %arg10[%c112_25, %c0_26], %37 {strides = array<i32>} : memref<256x384xbf16, #tpu.memory_space<vmem>>, vector<16x384xbf16>,
    %39 = vector.extract_strided_slice %4 {offsets = [0, 102], sizes = [16, 384], strides = [1, 1]} : vector<16x640xbf16> to vector<16x384xbf16>
    %c128_27 = arith.constant 128 : index
    %c0_28 = arith.constant 0 : index
    %40 = vector.load %arg10[%c128_27, %c0_28] : memref<256x384xbf16, #tpu.memory_space<vmem>>, vector<16x384xbf16>
    tpu.vector_store %arg10[%c128_27, %c0_28], %39 {strides = array<i32>} : memref<256x384xbf16, #tpu.memory_space<vmem>>, vector<16x384xbf16>,
    %41 = vector.extract_strided_slice %4 {offsets = [0, 122], sizes = [16, 384], strides = [1, 1]} : vector<16x640xbf16> to vector<16x384xbf16>
    %c144 = arith.constant 144 : index
    %c0_29 = arith.constant 0 : index
    %42 = vector.load %arg10[%c144, %c0_29] : memref<256x384xbf16, #tpu.memory_space<vmem>>, vector<16x384xbf16>
    tpu.vector_store %arg10[%c144, %c0_29], %41 {strides = array<i32>} : memref<256x384xbf16, #tpu.memory_space<vmem>>, vector<16x384xbf16>,
    %43 = vector.extract_strided_slice %4 {offsets = [0, 126], sizes = [16, 384], strides = [1, 1]} : vector<16x640xbf16> to vector<16x384xbf16>
    %c160 = arith.constant 160 : index
    %c0_30 = arith.constant 0 : index
    %44 = vector.load %arg10[%c160, %c0_30] : memref<256x384xbf16, #tpu.memory_space<vmem>>, vector<16x384xbf16>
    tpu.vector_store %arg10[%c160, %c0_30], %43 {strides = array<i32>} : memref<256x384xbf16, #tpu.memory_space<vmem>>, vector<16x384xbf16>,
    %45 = vector.extract_strided_slice %4 {offsets = [0, 146], sizes = [16, 384], strides = [1, 1]} : vector<16x640xbf16> to vector<16x384xbf16>
    %c176 = arith.constant 176 : index
    %c0_31 = arith.constant 0 : index
    %46 = vector.load %arg10[%c176, %c0_31] : memref<256x384xbf16, #tpu.memory_space<vmem>>, vector<16x384xbf16>
    tpu.vector_store %arg10[%c176, %c0_31], %45 {strides = array<i32>} : memref<256x384xbf16, #tpu.memory_space<vmem>>, vector<16x384xbf16>,
    %47 = vector.extract_strided_slice %4 {offsets = [0, 147], sizes = [16, 384], strides = [1, 1]} : vector<16x640xbf16> to vector<16x384xbf16>
    %c192 = arith.constant 192 : index
    %c0_32 = arith.constant 0 : index
    %48 = vector.load %arg10[%c192, %c0_32] : memref<256x384xbf16, #tpu.memory_space<vmem>>, vector<16x384xbf16>
    tpu.vector_store %arg10[%c192, %c0_32], %47 {strides = array<i32>} : memref<256x384xbf16, #tpu.memory_space<vmem>>, vector<16x384xbf16>,
    %49 = vector.extract_strided_slice %4 {offsets = [0, 148], sizes = [16, 384], strides = [1, 1]} : vector<16x640xbf16> to vector<16x384xbf16>
    %c208 = arith.constant 208 : index
    %c0_33 = arith.constant 0 : index
    %50 = vector.load %arg10[%c208, %c0_33] : memref<256x384xbf16, #tpu.memory_space<vmem>>, vector<16x384xbf16>
    tpu.vector_store %arg10[%c208, %c0_33], %49 {strides = array<i32>} : memref<256x384xbf16, #tpu.memory_space<vmem>>, vector<16x384xbf16>,
    %51 = vector.extract_strided_slice %4 {offsets = [0, 149], sizes = [16, 384], strides = [1, 1]} : vector<16x640xbf16> to vector<16x384xbf16>
    %c224 = arith.constant 224 : index
    %c0_34 = arith.constant 0 : index
    %52 = vector.load %arg10[%c224, %c0_34] : memref<256x384xbf16, #tpu.memory_space<vmem>>, vector<16x384xbf16>
    tpu.vector_store %arg10[%c224, %c0_34], %51 {strides = array<i32>} : memref<256x384xbf16, #tpu.memory_space<vmem>>, vector<16x384xbf16>,
    %53 = vector.extract_strided_slice %4 {offsets = [0, 150], sizes = [16, 384], strides = [1, 1]} : vector<16x640xbf16> to vector<16x384xbf16>
    %c240 = arith.constant 240 : index
    %c0_35 = arith.constant 0 : index
    %54 = vector.load %arg10[%c240, %c0_35] : memref<256x384xbf16, #tpu.memory_space<vmem>>, vector<16x384xbf16>
    tpu.vector_store %arg10[%c240, %c0_35], %53 {strides = array<i32>} : memref<256x384xbf16, #tpu.memory_space<vmem>>, vector<16x384xbf16>,
    %55 = vector.extract_strided_slice %4 {offsets = [0, 25], sizes = [16, 384], strides = [1, 1]} : vector<16x640xbf16> to vector<16x384xbf16>
    %c0_36 = arith.constant 0 : index
    %c0_37 = arith.constant 0 : index
    %56 = vector.load %arg11[%c0_36, %c0_37] : memref<384x384xbf16, #tpu.memory_space<vmem>>, vector<16x384xbf16>
    tpu.vector_store %arg11[%c0_36, %c0_37], %55 {strides = array<i32>} : memref<384x384xbf16, #tpu.memory_space<vmem>>, vector<16x384xbf16>,
    %57 = vector.extract_strided_slice %4 {offsets = [0, 26], sizes = [16, 384], strides = [1, 1]} : vector<16x640xbf16> to vector<16x384xbf16>
    %c16_38 = arith.constant 16 : index
    %c0_39 = arith.constant 0 : index
    %58 = vector.load %arg11[%c16_38, %c0_39] : memref<384x384xbf16, #tpu.memory_space<vmem>>, vector<16x384xbf16>
    tpu.vector_store %arg11[%c16_38, %c0_39], %57 {strides = array<i32>} : memref<384x384xbf16, #tpu.memory_space<vmem>>, vector<16x384xbf16>,
    %59 = vector.extract_strided_slice %4 {offsets = [0, 27], sizes = [16, 384], strides = [1, 1]} : vector<16x640xbf16> to vector<16x384xbf16>
    %c32_40 = arith.constant 32 : index
    %c0_41 = arith.constant 0 : index
    %60 = vector.load %arg11[%c32_40, %c0_41] : memref<384x384xbf16, #tpu.memory_space<vmem>>, vector<16x384xbf16>
    tpu.vector_store %arg11[%c32_40, %c0_41], %59 {strides = array<i32>} : memref<384x384xbf16, #tpu.memory_space<vmem>>, vector<16x384xbf16>,
    %61 = vector.extract_strided_slice %4 {offsets = [0, 28], sizes = [16, 384], strides = [1, 1]} : vector<16x640xbf16> to vector<16x384xbf16>
    %c48_42 = arith.constant 48 : index
    %c0_43 = arith.constant 0 : index
    %62 = vector.load %arg11[%c48_42, %c0_43] : memref<384x384xbf16, #tpu.memory_space<vmem>>, vector<16x384xbf16>
    tpu.vector_store %arg11[%c48_42, %c0_43], %61 {strides = array<i32>} : memref<384x384xbf16, #tpu.memory_space<vmem>>, vector<16x384xbf16>,
    %63 = vector.extract_strided_slice %4 {offsets = [0, 29], sizes = [16, 384], strides = [1, 1]} : vector<16x640xbf16> to vector<16x384xbf16>
    %c64_44 = arith.constant 64 : index
    %c0_45 = arith.constant 0 : index
    %64 = vector.load %arg11[%c64_44, %c0_45] : memref<384x384xbf16, #tpu.memory_space<vmem>>, vector<16x384xbf16>
    tpu.vector_store %arg11[%c64_44, %c0_45], %63 {strides = array<i32>} : memref<384x384xbf16, #tpu.memory_space<vmem>>, vector<16x384xbf16>,
    %65 = vector.extract_strided_slice %4 {offsets = [0, 30], sizes = [16, 384], strides = [1, 1]} : vector<16x640xbf16> to vector<16x384xbf16>
    %c80_46 = arith.constant 80 : index
    %c0_47 = arith.constant 0 : index
    %66 = vector.load %arg11[%c80_46, %c0_47] : memref<384x384xbf16, #tpu.memory_space<vmem>>, vector<16x384xbf16>
    tpu.vector_store %arg11[%c80_46, %c0_47], %65 {strides = array<i32>} : memref<384x384xbf16, #tpu.memory_space<vmem>>, vector<16x384xbf16>,
    %67 = vector.extract_strided_slice %4 {offsets = [0, 31], sizes = [16, 384], strides = [1, 1]} : vector<16x640xbf16> to vector<16x384xbf16>
    %c96_48 = arith.constant 96 : index
    %c0_49 = arith.constant 0 : index
    %68 = vector.load %arg11[%c96_48, %c0_49] : memref<384x384xbf16, #tpu.memory_space<vmem>>, vector<16x384xbf16>
    tpu.vector_store %arg11[%c96_48, %c0_49], %67 {strides = array<i32>} : memref<384x384xbf16, #tpu.memory_space<vmem>>, vector<16x384xbf16>,
    %69 = vector.extract_strided_slice %4 {offsets = [0, 49], sizes = [16, 384], strides = [1, 1]} : vector<16x640xbf16> to vector<16x384xbf16>
    %c112_50 = arith.constant 112 : index
    %c0_51 = arith.constant 0 : index
    %70 = vector.load %arg11[%c112_50, %c0_51] : memref<384x384xbf16, #tpu.memory_space<vmem>>, vector<16x384xbf16>
    tpu.vector_store %arg11[%c112_50, %c0_51], %69 {strides = array<i32>} : memref<384x384xbf16, #tpu.memory_space<vmem>>, vector<16x384xbf16>,
    %71 = vector.extract_strided_slice %4 {offsets = [0, 55], sizes = [16, 384], strides = [1, 1]} : vector<16x640xbf16> to vector<16x384xbf16>
    %c128_52 = arith.constant 128 : index
    %c0_53 = arith.constant 0 : index
    %72 = vector.load %arg11[%c128_52, %c0_53] : memref<384x384xbf16, #tpu.memory_space<vmem>>, vector<16x384xbf16>
    tpu.vector_store %arg11[%c128_52, %c0_53], %71 {strides = array<i32>} : memref<384x384xbf16, #tpu.memory_space<vmem>>, vector<16x384xbf16>,
    %73 = vector.extract_strided_slice %4 {offsets = [0, 73], sizes = [16, 384], strides = [1, 1]} : vector<16x640xbf16> to vector<16x384xbf16>
    %c144_54 = arith.constant 144 : index
    %c0_55 = arith.constant 0 : index
    %74 = vector.load %arg11[%c144_54, %c0_55] : memref<384x384xbf16, #tpu.memory_space<vmem>>, vector<16x384xbf16>
    tpu.vector_store %arg11[%c144_54, %c0_55], %73 {strides = array<i32>} : memref<384x384xbf16, #tpu.memory_space<vmem>>, vector<16x384xbf16>,
    %75 = vector.extract_strided_slice %4 {offsets = [0, 79], sizes = [16, 384], strides = [1, 1]} : vector<16x640xbf16> to vector<16x384xbf16>
    %c160_56 = arith.constant 160 : index
    %c0_57 = arith.constant 0 : index
    %76 = vector.load %arg11[%c160_56, %c0_57] : memref<384x384xbf16, #tpu.memory_space<vmem>>, vector<16x384xbf16>
    tpu.vector_store %arg11[%c160_56, %c0_57], %75 {strides = array<i32>} : memref<384x384xbf16, #tpu.memory_space<vmem>>, vector<16x384xbf16>,
    %77 = vector.extract_strided_slice %4 {offsets = [0, 97], sizes = [16, 384], strides = [1, 1]} : vector<16x640xbf16> to vector<16x384xbf16>
    %c176_58 = arith.constant 176 : index
    %c0_59 = arith.constant 0 : index
    %78 = vector.load %arg11[%c176_58, %c0_59] : memref<384x384xbf16, #tpu.memory_space<vmem>>, vector<16x384xbf16>
    tpu.vector_store %arg11[%c176_58, %c0_59], %77 {strides = array<i32>} : memref<384x384xbf16, #tpu.memory_space<vmem>>, vector<16x384xbf16>,
    %79 = vector.extract_strided_slice %4 {offsets = [0, 103], sizes = [16, 384], strides = [1, 1]} : vector<16x640xbf16> to vector<16x384xbf16>
    %c192_60 = arith.constant 192 : index
    %c0_61 = arith.constant 0 : index
    %80 = vector.load %arg11[%c192_60, %c0_61] : memref<384x384xbf16, #tpu.memory_space<vmem>>, vector<16x384xbf16>
    tpu.vector_store %arg11[%c192_60, %c0_61], %79 {strides = array<i32>} : memref<384x384xbf16, #tpu.memory_space<vmem>>, vector<16x384xbf16>,
    %81 = vector.extract_strided_slice %4 {offsets = [0, 121], sizes = [16, 384], strides = [1, 1]} : vector<16x640xbf16> to vector<16x384xbf16>
    %c208_62 = arith.constant 208 : index
    %c0_63 = arith.constant 0 : index
    %82 = vector.load %arg11[%c208_62, %c0_63] : memref<384x384xbf16, #tpu.memory_space<vmem>>, vector<16x384xbf16>
    tpu.vector_store %arg11[%c208_62, %c0_63], %81 {strides = array<i32>} : memref<384x384xbf16, #tpu.memory_space<vmem>>, vector<16x384xbf16>,
    %83 = vector.extract_strided_slice %4 {offsets = [0, 127], sizes = [16, 384], strides = [1, 1]} : vector<16x640xbf16> to vector<16x384xbf16>
    %c224_64 = arith.constant 224 : index
    %c0_65 = arith.constant 0 : index
    %84 = vector.load %arg11[%c224_64, %c0_65] : memref<384x384xbf16, #tpu.memory_space<vmem>>, vector<16x384xbf16>
    tpu.vector_store %arg11[%c224_64, %c0_65], %83 {strides = array<i32>} : memref<384x384xbf16, #tpu.memory_space<vmem>>, vector<16x384xbf16>,
    %85 = vector.extract_strided_slice %4 {offsets = [0, 145], sizes = [16, 384], strides = [1, 1]} : vector<16x640xbf16> to vector<16x384xbf16>
    %c240_66 = arith.constant 240 : index
    %c0_67 = arith.constant 0 : index
    %86 = vector.load %arg11[%c240_66, %c0_67] : memref<384x384xbf16, #tpu.memory_space<vmem>>, vector<16x384xbf16>
    tpu.vector_store %arg11[%c240_66, %c0_67], %85 {strides = array<i32>} : memref<384x384xbf16, #tpu.memory_space<vmem>>, vector<16x384xbf16>,
    %87 = vector.extract_strided_slice %4 {offsets = [0, 151], sizes = [16, 384], strides = [1, 1]} : vector<16x640xbf16> to vector<16x384xbf16>
    %c256 = arith.constant 256 : index
    %c0_68 = arith.constant 0 : index
    %88 = vector.load %arg11[%c256, %c0_68] : memref<384x384xbf16, #tpu.memory_space<vmem>>, vector<16x384xbf16>
    tpu.vector_store %arg11[%c256, %c0_68], %87 {strides = array<i32>} : memref<384x384xbf16, #tpu.memory_space<vmem>>, vector<16x384xbf16>,
    %89 = vector.extract_strided_slice %4 {offsets = [0, 169], sizes = [16, 384], strides = [1, 1]} : vector<16x640xbf16> to vector<16x384xbf16>
    %c272 = arith.constant 272 : index
    %c0_69 = arith.constant 0 : index
    %90 = vector.load %arg11[%c272, %c0_69] : memref<384x384xbf16, #tpu.memory_space<vmem>>, vector<16x384xbf16>
    tpu.vector_store %arg11[%c272, %c0_69], %89 {strides = array<i32>} : memref<384x384xbf16, #tpu.memory_space<vmem>>, vector<16x384xbf16>,
    %91 = vector.extract_strided_slice %4 {offsets = [0, 170], sizes = [16, 384], strides = [1, 1]} : vector<16x640xbf16> to vector<16x384xbf16>
    %c288 = arith.constant 288 : index
    %c0_70 = arith.constant 0 : index
    %92 = vector.load %arg11[%c288, %c0_70] : memref<384x384xbf16, #tpu.memory_space<vmem>>, vector<16x384xbf16>
    tpu.vector_store %arg11[%c288, %c0_70], %91 {strides = array<i32>} : memref<384x384xbf16, #tpu.memory_space<vmem>>, vector<16x384xbf16>,
    %93 = vector.extract_strided_slice %4 {offsets = [0, 171], sizes = [16, 384], strides = [1, 1]} : vector<16x640xbf16> to vector<16x384xbf16>
    %c304 = arith.constant 304 : index
    %c0_71 = arith.constant 0 : index
    %94 = vector.load %arg11[%c304, %c0_71] : memref<384x384xbf16, #tpu.memory_space<vmem>>, vector<16x384xbf16>
    tpu.vector_store %arg11[%c304, %c0_71], %93 {strides = array<i32>} : memref<384x384xbf16, #tpu.memory_space<vmem>>, vector<16x384xbf16>,
    %95 = vector.extract_strided_slice %4 {offsets = [0, 172], sizes = [16, 384], strides = [1, 1]} : vector<16x640xbf16> to vector<16x384xbf16>
    %c320 = arith.constant 320 : index
    %c0_72 = arith.constant 0 : index
    %96 = vector.load %arg11[%c320, %c0_72] : memref<384x384xbf16, #tpu.memory_space<vmem>>, vector<16x384xbf16>
    tpu.vector_store %arg11[%c320, %c0_72], %95 {strides = array<i32>} : memref<384x384xbf16, #tpu.memory_space<vmem>>, vector<16x384xbf16>,
    %97 = vector.extract_strided_slice %4 {offsets = [0, 173], sizes = [16, 384], strides = [1, 1]} : vector<16x640xbf16> to vector<16x384xbf16>
    %c336 = arith.constant 336 : index
    %c0_73 = arith.constant 0 : index
    %98 = vector.load %arg11[%c336, %c0_73] : memref<384x384xbf16, #tpu.memory_space<vmem>>, vector<16x384xbf16>
    tpu.vector_store %arg11[%c336, %c0_73], %97 {strides = array<i32>} : memref<384x384xbf16, #tpu.memory_space<vmem>>, vector<16x384xbf16>,
    %99 = vector.extract_strided_slice %4 {offsets = [0, 174], sizes = [16, 384], strides = [1, 1]} : vector<16x640xbf16> to vector<16x384xbf16>
    %c352 = arith.constant 352 : index
    %c0_74 = arith.constant 0 : index
    %100 = vector.load %arg11[%c352, %c0_74] : memref<384x384xbf16, #tpu.memory_space<vmem>>, vector<16x384xbf16>
    tpu.vector_store %arg11[%c352, %c0_74], %99 {strides = array<i32>} : memref<384x384xbf16, #tpu.memory_space<vmem>>, vector<16x384xbf16>,
    %101 = vector.extract_strided_slice %4 {offsets = [0, 175], sizes = [16, 384], strides = [1, 1]} : vector<16x640xbf16> to vector<16x384xbf16>
    %c368 = arith.constant 368 : index
    %c0_75 = arith.constant 0 : index
    %102 = vector.load %arg11[%c368, %c0_75] : memref<384x384xbf16, #tpu.memory_space<vmem>>, vector<16x384xbf16>
    tpu.vector_store %arg11[%c368, %c0_75], %101 {strides = array<i32>} : memref<384x384xbf16, #tpu.memory_space<vmem>>, vector<16x384xbf16>,
    %103 = vector.extract_strided_slice %4 {offsets = [0, 0], sizes = [16, 384], strides = [1, 1]} : vector<16x640xbf16> to vector<16x384xbf16>
    %c0_76 = arith.constant 0 : index
    %c0_77 = arith.constant 0 : index
    %104 = vector.load %arg12[%c0_76, %c0_77] : memref<512x384xbf16, #tpu.memory_space<vmem>>, vector<16x384xbf16>
    tpu.vector_store %arg12[%c0_76, %c0_77], %103 {strides = array<i32>} : memref<512x384xbf16, #tpu.memory_space<vmem>>, vector<16x384xbf16>,
    %105 = vector.extract_strided_slice %4 {offsets = [0, 1], sizes = [16, 384], strides = [1, 1]} : vector<16x640xbf16> to vector<16x384xbf16>
    %c16_78 = arith.constant 16 : index
    %c0_79 = arith.constant 0 : index
    %106 = vector.load %arg12[%c16_78, %c0_79] : memref<512x384xbf16, #tpu.memory_space<vmem>>, vector<16x384xbf16>
    tpu.vector_store %arg12[%c16_78, %c0_79], %105 {strides = array<i32>} : memref<512x384xbf16, #tpu.memory_space<vmem>>, vector<16x384xbf16>,
    %107 = vector.extract_strided_slice %4 {offsets = [0, 2], sizes = [16, 384], strides = [1, 1]} : vector<16x640xbf16> to vector<16x384xbf16>
    %c32_80 = arith.constant 32 : index
    %c0_81 = arith.constant 0 : index
    %108 = vector.load %arg12[%c32_80, %c0_81] : memref<512x384xbf16, #tpu.memory_space<vmem>>, vector<16x384xbf16>
    tpu.vector_store %arg12[%c32_80, %c0_81], %107 {strides = array<i32>} : memref<512x384xbf16, #tpu.memory_space<vmem>>, vector<16x384xbf16>,
    %109 = vector.extract_strided_slice %4 {offsets = [0, 3], sizes = [16, 384], strides = [1, 1]} : vector<16x640xbf16> to vector<16x384xbf16>
    %c48_82 = arith.constant 48 : index
    %c0_83 = arith.constant 0 : index
    %110 = vector.load %arg12[%c48_82, %c0_83] : memref<512x384xbf16, #tpu.memory_space<vmem>>, vector<16x384xbf16>
    tpu.vector_store %arg12[%c48_82, %c0_83], %109 {strides = array<i32>} : memref<512x384xbf16, #tpu.memory_space<vmem>>, vector<16x384xbf16>,
    %111 = vector.extract_strided_slice %4 {offsets = [0, 4], sizes = [16, 384], strides = [1, 1]} : vector<16x640xbf16> to vector<16x384xbf16>
    %c64_84 = arith.constant 64 : index
    %c0_85 = arith.constant 0 : index
    %112 = vector.load %arg12[%c64_84, %c0_85] : memref<512x384xbf16, #tpu.memory_space<vmem>>, vector<16x384xbf16>
    tpu.vector_store %arg12[%c64_84, %c0_85], %111 {strides = array<i32>} : memref<512x384xbf16, #tpu.memory_space<vmem>>, vector<16x384xbf16>,
    %113 = vector.extract_strided_slice %4 {offsets = [0, 5], sizes = [16, 384], strides = [1, 1]} : vector<16x640xbf16> to vector<16x384xbf16>
    %c80_86 = arith.constant 80 : index
    %c0_87 = arith.constant 0 : index
    %114 = vector.load %arg12[%c80_86, %c0_87] : memref<512x384xbf16, #tpu.memory_space<vmem>>, vector<16x384xbf16>
    tpu.vector_store %arg12[%c80_86, %c0_87], %113 {strides = array<i32>} : memref<512x384xbf16, #tpu.memory_space<vmem>>, vector<16x384xbf16>,
    %115 = vector.extract_strided_slice %4 {offsets = [0, 6], sizes = [16, 384], strides = [1, 1]} : vector<16x640xbf16> to vector<16x384xbf16>
    %c96_88 = arith.constant 96 : index
    %c0_89 = arith.constant 0 : index
    %116 = vector.load %arg12[%c96_88, %c0_89] : memref<512x384xbf16, #tpu.memory_space<vmem>>, vector<16x384xbf16>
    tpu.vector_store %arg12[%c96_88, %c0_89], %115 {strides = array<i32>} : memref<512x384xbf16, #tpu.memory_space<vmem>>, vector<16x384xbf16>,
    %117 = vector.extract_strided_slice %4 {offsets = [0, 7], sizes = [16, 384], strides = [1, 1]} : vector<16x640xbf16> to vector<16x384xbf16>
    %c112_90 = arith.constant 112 : index
    %c0_91 = arith.constant 0 : index
    %118 = vector.load %arg12[%c112_90, %c0_91] : memref<512x384xbf16, #tpu.memory_space<vmem>>, vector<16x384xbf16>
    tpu.vector_store %arg12[%c112_90, %c0_91], %117 {strides = array<i32>} : memref<512x384xbf16, #tpu.memory_space<vmem>>, vector<16x384xbf16>,
    %119 = vector.extract_strided_slice %4 {offsets = [0, 8], sizes = [16, 384], strides = [1, 1]} : vector<16x640xbf16> to vector<16x384xbf16>
    %c128_92 = arith.constant 128 : index
    %c0_93 = arith.constant 0 : index
    %120 = vector.load %arg12[%c128_92, %c0_93] : memref<512x384xbf16, #tpu.memory_space<vmem>>, vector<16x384xbf16>
    tpu.vector_store %arg12[%c128_92, %c0_93], %119 {strides = array<i32>} : memref<512x384xbf16, #tpu.memory_space<vmem>>, vector<16x384xbf16>,
    %121 = vector.extract_strided_slice %4 {offsets = [0, 24], sizes = [16, 384], strides = [1, 1]} : vector<16x640xbf16> to vector<16x384xbf16>
    %c144_94 = arith.constant 144 : index
    %c0_95 = arith.constant 0 : index
    %122 = vector.load %arg12[%c144_94, %c0_95] : memref<512x384xbf16, #tpu.memory_space<vmem>>, vector<16x384xbf16>
    tpu.vector_store %arg12[%c144_94, %c0_95], %121 {strides = array<i32>} : memref<512x384xbf16, #tpu.memory_space<vmem>>, vector<16x384xbf16>,
    %123 = vector.extract_strided_slice %4 {offsets = [0, 32], sizes = [16, 384], strides = [1, 1]} : vector<16x640xbf16> to vector<16x384xbf16>
    %c160_96 = arith.constant 160 : index
    %c0_97 = arith.constant 0 : index
    %124 = vector.load %arg12[%c160_96, %c0_97] : memref<512x384xbf16, #tpu.memory_space<vmem>>, vector<16x384xbf16>
    tpu.vector_store %arg12[%c160_96, %c0_97], %123 {strides = array<i32>} : memref<512x384xbf16, #tpu.memory_space<vmem>>, vector<16x384xbf16>,
    %125 = vector.extract_strided_slice %4 {offsets = [0, 48], sizes = [16, 384], strides = [1, 1]} : vector<16x640xbf16> to vector<16x384xbf16>
    %c176_98 = arith.constant 176 : index
    %c0_99 = arith.constant 0 : index
    %126 = vector.load %arg12[%c176_98, %c0_99] : memref<512x384xbf16, #tpu.memory_space<vmem>>, vector<16x384xbf16>
    tpu.vector_store %arg12[%c176_98, %c0_99], %125 {strides = array<i32>} : memref<512x384xbf16, #tpu.memory_space<vmem>>, vector<16x384xbf16>,
    %127 = vector.extract_strided_slice %4 {offsets = [0, 56], sizes = [16, 384], strides = [1, 1]} : vector<16x640xbf16> to vector<16x384xbf16>
    %c192_100 = arith.constant 192 : index
    %c0_101 = arith.constant 0 : index
    %128 = vector.load %arg12[%c192_100, %c0_101] : memref<512x384xbf16, #tpu.memory_space<vmem>>, vector<16x384xbf16>
    tpu.vector_store %arg12[%c192_100, %c0_101], %127 {strides = array<i32>} : memref<512x384xbf16, #tpu.memory_space<vmem>>, vector<16x384xbf16>,
    %129 = vector.extract_strided_slice %4 {offsets = [0, 72], sizes = [16, 384], strides = [1, 1]} : vector<16x640xbf16> to vector<16x384xbf16>
    %c208_102 = arith.constant 208 : index
    %c0_103 = arith.constant 0 : index
    %130 = vector.load %arg12[%c208_102, %c0_103] : memref<512x384xbf16, #tpu.memory_space<vmem>>, vector<16x384xbf16>
    tpu.vector_store %arg12[%c208_102, %c0_103], %129 {strides = array<i32>} : memref<512x384xbf16, #tpu.memory_space<vmem>>, vector<16x384xbf16>,
    %131 = vector.extract_strided_slice %4 {offsets = [0, 80], sizes = [16, 384], strides = [1, 1]} : vector<16x640xbf16> to vector<16x384xbf16>
    %c224_104 = arith.constant 224 : index
    %c0_105 = arith.constant 0 : index
    %132 = vector.load %arg12[%c224_104, %c0_105] : memref<512x384xbf16, #tpu.memory_space<vmem>>, vector<16x384xbf16>
    tpu.vector_store %arg12[%c224_104, %c0_105], %131 {strides = array<i32>} : memref<512x384xbf16, #tpu.memory_space<vmem>>, vector<16x384xbf16>,
    %133 = vector.extract_strided_slice %4 {offsets = [0, 96], sizes = [16, 384], strides = [1, 1]} : vector<16x640xbf16> to vector<16x384xbf16>
    %c240_106 = arith.constant 240 : index
    %c0_107 = arith.constant 0 : index
    %134 = vector.load %arg12[%c240_106, %c0_107] : memref<512x384xbf16, #tpu.memory_space<vmem>>, vector<16x384xbf16>
    tpu.vector_store %arg12[%c240_106, %c0_107], %133 {strides = array<i32>} : memref<512x384xbf16, #tpu.memory_space<vmem>>, vector<16x384xbf16>,
    %135 = vector.extract_strided_slice %4 {offsets = [0, 104], sizes = [16, 384], strides = [1, 1]} : vector<16x640xbf16> to vector<16x384xbf16>
    %c256_108 = arith.constant 256 : index
    %c0_109 = arith.constant 0 : index
    %136 = vector.load %arg12[%c256_108, %c0_109] : memref<512x384xbf16, #tpu.memory_space<vmem>>, vector<16x384xbf16>
    tpu.vector_store %arg12[%c256_108, %c0_109], %135 {strides = array<i32>} : memref<512x384xbf16, #tpu.memory_space<vmem>>, vector<16x384xbf16>,
    %137 = vector.extract_strided_slice %4 {offsets = [0, 120], sizes = [16, 384], strides = [1, 1]} : vector<16x640xbf16> to vector<16x384xbf16>
    %c272_110 = arith.constant 272 : index
    %c0_111 = arith.constant 0 : index
    %138 = vector.load %arg12[%c272_110, %c0_111] : memref<512x384xbf16, #tpu.memory_space<vmem>>, vector<16x384xbf16>
    tpu.vector_store %arg12[%c272_110, %c0_111], %137 {strides = array<i32>} : memref<512x384xbf16, #tpu.memory_space<vmem>>, vector<16x384xbf16>,
    %139 = vector.extract_strided_slice %4 {offsets = [0, 128], sizes = [16, 384], strides = [1, 1]} : vector<16x640xbf16> to vector<16x384xbf16>
    %c288_112 = arith.constant 288 : index
    %c0_113 = arith.constant 0 : index
    %140 = vector.load %arg12[%c288_112, %c0_113] : memref<512x384xbf16, #tpu.memory_space<vmem>>, vector<16x384xbf16>
    tpu.vector_store %arg12[%c288_112, %c0_113], %139 {strides = array<i32>} : memref<512x384xbf16, #tpu.memory_space<vmem>>, vector<16x384xbf16>,
    %141 = vector.extract_strided_slice %4 {offsets = [0, 144], sizes = [16, 384], strides = [1, 1]} : vector<16x640xbf16> to vector<16x384xbf16>
    %c304_114 = arith.constant 304 : index
    %c0_115 = arith.constant 0 : index
    %142 = vector.load %arg12[%c304_114, %c0_115] : memref<512x384xbf16, #tpu.memory_space<vmem>>, vector<16x384xbf16>
    tpu.vector_store %arg12[%c304_114, %c0_115], %141 {strides = array<i32>} : memref<512x384xbf16, #tpu.memory_space<vmem>>, vector<16x384xbf16>,
    %143 = vector.extract_strided_slice %4 {offsets = [0, 152], sizes = [16, 384], strides = [1, 1]} : vector<16x640xbf16> to vector<16x384xbf16>
    %c320_116 = arith.constant 320 : index
    %c0_117 = arith.constant 0 : index
    %144 = vector.load %arg12[%c320_116, %c0_117] : memref<512x384xbf16, #tpu.memory_space<vmem>>, vector<16x384xbf16>
    tpu.vector_store %arg12[%c320_116, %c0_117], %143 {strides = array<i32>} : memref<512x384xbf16, #tpu.memory_space<vmem>>, vector<16x384xbf16>,
    %145 = vector.extract_strided_slice %4 {offsets = [0, 168], sizes = [16, 384], strides = [1, 1]} : vector<16x640xbf16> to vector<16x384xbf16>
    %c336_118 = arith.constant 336 : index
    %c0_119 = arith.constant 0 : index
    %146 = vector.load %arg12[%c336_118, %c0_119] : memref<512x384xbf16, #tpu.memory_space<vmem>>, vector<16x384xbf16>
    tpu.vector_store %arg12[%c336_118, %c0_119], %145 {strides = array<i32>} : memref<512x384xbf16, #tpu.memory_space<vmem>>, vector<16x384xbf16>,
    %147 = vector.extract_strided_slice %4 {offsets = [0, 176], sizes = [16, 384], strides = [1, 1]} : vector<16x640xbf16> to vector<16x384xbf16>
    %c352_120 = arith.constant 352 : index
    %c0_121 = arith.constant 0 : index
    %148 = vector.load %arg12[%c352_120, %c0_121] : memref<512x384xbf16, #tpu.memory_space<vmem>>, vector<16x384xbf16>
    tpu.vector_store %arg12[%c352_120, %c0_121], %147 {strides = array<i32>} : memref<512x384xbf16, #tpu.memory_space<vmem>>, vector<16x384xbf16>,
    %149 = vector.extract_strided_slice %4 {offsets = [0, 192], sizes = [16, 384], strides = [1, 1]} : vector<16x640xbf16> to vector<16x384xbf16>
    %c368_122 = arith.constant 368 : index
    %c0_123 = arith.constant 0 : index
    %150 = vector.load %arg12[%c368_122, %c0_123] : memref<512x384xbf16, #tpu.memory_space<vmem>>, vector<16x384xbf16>
    tpu.vector_store %arg12[%c368_122, %c0_123], %149 {strides = array<i32>} : memref<512x384xbf16, #tpu.memory_space<vmem>>, vector<16x384xbf16>,
    %151 = vector.extract_strided_slice %4 {offsets = [0, 193], sizes = [16, 384], strides = [1, 1]} : vector<16x640xbf16> to vector<16x384xbf16>
    %c384 = arith.constant 384 : index
    %c0_124 = arith.constant 0 : index
    %152 = vector.load %arg12[%c384, %c0_124] : memref<512x384xbf16, #tpu.memory_space<vmem>>, vector<16x384xbf16>
    tpu.vector_store %arg12[%c384, %c0_124], %151 {strides = array<i32>} : memref<512x384xbf16, #tpu.memory_space<vmem>>, vector<16x384xbf16>,
    %153 = vector.extract_strided_slice %4 {offsets = [0, 194], sizes = [16, 384], strides = [1, 1]} : vector<16x640xbf16> to vector<16x384xbf16>
    %c400 = arith.constant 400 : index
    %c0_125 = arith.constant 0 : index
    %154 = vector.load %arg12[%c400, %c0_125] : memref<512x384xbf16, #tpu.memory_space<vmem>>, vector<16x384xbf16>
    tpu.vector_store %arg12[%c400, %c0_125], %153 {strides = array<i32>} : memref<512x384xbf16, #tpu.memory_space<vmem>>, vector<16x384xbf16>,
    %155 = vector.extract_strided_slice %4 {offsets = [0, 195], sizes = [16, 384], strides = [1, 1]} : vector<16x640xbf16> to vector<16x384xbf16>
    %c416 = arith.constant 416 : index
    %c0_126 = arith.constant 0 : index
    %156 = vector.load %arg12[%c416, %c0_126] : memref<512x384xbf16, #tpu.memory_space<vmem>>, vector<16x384xbf16>
    tpu.vector_store %arg12[%c416, %c0_126], %155 {strides = array<i32>} : memref<512x384xbf16, #tpu.memory_space<vmem>>, vector<16x384xbf16>,
    %157 = vector.extract_strided_slice %4 {offsets = [0, 196], sizes = [16, 384], strides = [1, 1]} : vector<16x640xbf16> to vector<16x384xbf16>
    %c432 = arith.constant 432 : index
    %c0_127 = arith.constant 0 : index
    %158 = vector.load %arg12[%c432, %c0_127] : memref<512x384xbf16, #tpu.memory_space<vmem>>, vector<16x384xbf16>
    tpu.vector_store %arg12[%c432, %c0_127], %157 {strides = array<i32>} : memref<512x384xbf16, #tpu.memory_space<vmem>>, vector<16x384xbf16>,
    %159 = vector.extract_strided_slice %4 {offsets = [0, 197], sizes = [16, 384], strides = [1, 1]} : vector<16x640xbf16> to vector<16x384xbf16>
    %c448 = arith.constant 448 : index
    %c0_128 = arith.constant 0 : index
    %160 = vector.load %arg12[%c448, %c0_128] : memref<512x384xbf16, #tpu.memory_space<vmem>>, vector<16x384xbf16>
    tpu.vector_store %arg12[%c448, %c0_128], %159 {strides = array<i32>} : memref<512x384xbf16, #tpu.memory_space<vmem>>, vector<16x384xbf16>,
    %161 = vector.extract_strided_slice %4 {offsets = [0, 198], sizes = [16, 384], strides = [1, 1]} : vector<16x640xbf16> to vector<16x384xbf16>
    %c464 = arith.constant 464 : index
    %c0_129 = arith.constant 0 : index
    %162 = vector.load %arg12[%c464, %c0_129] : memref<512x384xbf16, #tpu.memory_space<vmem>>, vector<16x384xbf16>
    tpu.vector_store %arg12[%c464, %c0_129], %161 {strides = array<i32>} : memref<512x384xbf16, #tpu.memory_space<vmem>>, vector<16x384xbf16>,
    %163 = vector.extract_strided_slice %4 {offsets = [0, 199], sizes = [16, 384], strides = [1, 1]} : vector<16x640xbf16> to vector<16x384xbf16>
    %c480 = arith.constant 480 : index
    %c0_130 = arith.constant 0 : index
    %164 = vector.load %arg12[%c480, %c0_130] : memref<512x384xbf16, #tpu.memory_space<vmem>>, vector<16x384xbf16>
    tpu.vector_store %arg12[%c480, %c0_130], %163 {strides = array<i32>} : memref<512x384xbf16, #tpu.memory_space<vmem>>, vector<16x384xbf16>,
    %165 = vector.extract_strided_slice %4 {offsets = [0, 200], sizes = [16, 384], strides = [1, 1]} : vector<16x640xbf16> to vector<16x384xbf16>
    %c496 = arith.constant 496 : index
    %c0_131 = arith.constant 0 : index
    %166 = vector.load %arg12[%c496, %c0_131] : memref<512x384xbf16, #tpu.memory_space<vmem>>, vector<16x384xbf16>
    tpu.vector_store %arg12[%c496, %c0_131], %165 {strides = array<i32>} : memref<512x384xbf16, #tpu.memory_space<vmem>>, vector<16x384xbf16>,
    %c0_132 = arith.constant 0 : index
    %c0_133 = arith.constant 0 : index
    %167 = vector.load %arg3[%c0_132, %c0_133] : memref<64x144xbf16, #tpu.memory_space<vmem>>, vector<64x144xbf16>
    %c0_134 = arith.constant 0 : index
    %c0_135 = arith.constant 0 : index
    %168 = vector.load %arg9[%c0_134, %c0_135] : memref<144x384xbf16, #tpu.memory_space<vmem>>, vector<144x384xbf16>
    %cst = arith.constant dense<0.000000e+00> : vector<64x384xf32>
    %169 = tpu.matmul %167, %168, %cst {dimension_numbers = #tpu.dot_dimension_numbers<[1], [0], [0], [1], [0, 0, 1, 1], [], []>} : vector<64x144xbf16>, vector<144x384xbf16>, vector<64x384xf32> -> vector<64x384xf32>
    %c0_136 = arith.constant 0 : index
    %c0_137 = arith.constant 0 : index
    %170 = vector.load %arg4[%c0_136, %c0_137] : memref<48x256xbf16, #tpu.memory_space<vmem>>, vector<48x256xbf16>
    %c0_138 = arith.constant 0 : index
    %c0_139 = arith.constant 0 : index
    %171 = vector.load %arg10[%c0_138, %c0_139] : memref<256x384xbf16, #tpu.memory_space<vmem>>, vector<256x384xbf16>
    %cst_140 = arith.constant dense<0.000000e+00> : vector<48x384xf32>
    %172 = tpu.matmul %170, %171, %cst_140 {dimension_numbers = #tpu.dot_dimension_numbers<[1], [0], [0], [1], [0, 0, 1, 1], [], []>} : vector<48x256xbf16>, vector<256x384xbf16>, vector<48x384xf32> -> vector<48x384xf32>
    %c0_141 = arith.constant 0 : index
    %c0_142 = arith.constant 0 : index
    %173 = vector.load %arg5[%c0_141, %c0_142] : memref<32x384xbf16, #tpu.memory_space<vmem>>, vector<32x384xbf16>
    %c0_143 = arith.constant 0 : index
    %c0_144 = arith.constant 0 : index
    %174 = vector.load %arg11[%c0_143, %c0_144] : memref<384x384xbf16, #tpu.memory_space<vmem>>, vector<384x384xbf16>
    %cst_145 = arith.constant dense<0.000000e+00> : vector<32x384xf32>
    %175 = tpu.matmul %173, %174, %cst_145 {dimension_numbers = #tpu.dot_dimension_numbers<[1], [0], [0], [1], [0, 0, 1, 1], [], []>} : vector<32x384xbf16>, vector<384x384xbf16>, vector<32x384xf32> -> vector<32x384xf32>
    %c0_146 = arith.constant 0 : index
    %c0_147 = arith.constant 0 : index
    %176 = vector.load %arg6[%c0_146, %c0_147] : memref<16x512xbf16, #tpu.memory_space<vmem>>, vector<16x512xbf16>
    %c0_148 = arith.constant 0 : index
    %c0_149 = arith.constant 0 : index
    %177 = vector.load %arg12[%c0_148, %c0_149] : memref<512x384xbf16, #tpu.memory_space<vmem>>, vector<512x384xbf16>
    %cst_150 = arith.constant dense<0.000000e+00> : vector<16x384xf32>
    %178 = tpu.matmul %176, %177, %cst_150 {dimension_numbers = #tpu.dot_dimension_numbers<[1], [0], [0], [1], [0, 0, 1, 1], [], []>} : vector<16x512xbf16>, vector<512x384xbf16>, vector<16x384xf32> -> vector<16x384xf32>
    %c0_151 = arith.constant 0 : index
    %c0_152 = arith.constant 0 : index
    %c0_153 = arith.constant 0 : index
    %179 = vector.load %arg7[%c0_151, %c0_152, %c0_153] : memref<1x64x1xf32, #tpu.memory_space<vmem>>, vector<1x64x1xf32>
    %180 = vector.shape_cast %179 : vector<1x64x1xf32> to vector<64x1xf32>
    %181 = vector.extract_strided_slice %169 {offsets = [0, 0], sizes = [16, 384], strides = [1, 1]} : vector<64x384xf32> to vector<16x384xf32>
    %182 = vector.extract_strided_slice %172 {offsets = [0, 0], sizes = [16, 384], strides = [1, 1]} : vector<48x384xf32> to vector<16x384xf32>
    %183 = arith.addf %181, %182 : vector<16x384xf32>
    %184 = vector.extract_strided_slice %175 {offsets = [0, 0], sizes = [16, 384], strides = [1, 1]} : vector<32x384xf32> to vector<16x384xf32>
    %185 = arith.addf %183, %184 : vector<16x384xf32>
    %186 = arith.addf %185, %178 : vector<16x384xf32>
    %187 = vector.extract_strided_slice %180 {offsets = [0, 0], sizes = [16, 1], strides = [1, 1]} : vector<64x1xf32> to vector<16x1xf32>
    %188 = vector.broadcast %187 : vector<16x1xf32> to vector<16x384xf32>
    %189 = arith.mulf %186, %188 : vector<16x384xf32>
    %c0_154 = arith.constant 0 : index
    %c0_155 = arith.constant 0 : index
    %c0_156 = arith.constant 0 : index
    %190 = vector.load %arg8[%c0_154, %c0_155, %c0_156] : memref<1x64x384xf32, #tpu.memory_space<vmem>>, vector<1x16x384xf32>
    %191 = vector.shape_cast %190 : vector<1x16x384xf32> to vector<16x384xf32>
    %192 = vector.shape_cast %189 : vector<16x384xf32> to vector<1x16x384xf32>
    tpu.vector_store %arg8[%c0_154, %c0_155, %c0_156], %192 {strides = array<i32>} : memref<1x64x384xf32, #tpu.memory_space<vmem>>, vector<1x16x384xf32>,
    %193 = vector.extract_strided_slice %169 {offsets = [16, 0], sizes = [16, 384], strides = [1, 1]} : vector<64x384xf32> to vector<16x384xf32>
    %194 = vector.extract_strided_slice %172 {offsets = [16, 0], sizes = [16, 384], strides = [1, 1]} : vector<48x384xf32> to vector<16x384xf32>
    %195 = arith.addf %193, %194 : vector<16x384xf32>
    %196 = vector.extract_strided_slice %175 {offsets = [16, 0], sizes = [16, 384], strides = [1, 1]} : vector<32x384xf32> to vector<16x384xf32>
    %197 = arith.addf %195, %196 : vector<16x384xf32>
    %198 = vector.extract_strided_slice %180 {offsets = [16, 0], sizes = [16, 1], strides = [1, 1]} : vector<64x1xf32> to vector<16x1xf32>
    %199 = vector.broadcast %198 : vector<16x1xf32> to vector<16x384xf32>
    %200 = arith.mulf %197, %199 : vector<16x384xf32>
    %c0_157 = arith.constant 0 : index
    %c16_158 = arith.constant 16 : index
    %c0_159 = arith.constant 0 : index
    %201 = vector.load %arg8[%c0_157, %c16_158, %c0_159] : memref<1x64x384xf32, #tpu.memory_space<vmem>>, vector<1x16x384xf32>
    %202 = vector.shape_cast %201 : vector<1x16x384xf32> to vector<16x384xf32>
    %203 = vector.shape_cast %200 : vector<16x384xf32> to vector<1x16x384xf32>
    tpu.vector_store %arg8[%c0_157, %c16_158, %c0_159], %203 {strides = array<i32>} : memref<1x64x384xf32, #tpu.memory_space<vmem>>, vector<1x16x384xf32>,
    %204 = vector.extract_strided_slice %169 {offsets = [32, 0], sizes = [16, 384], strides = [1, 1]} : vector<64x384xf32> to vector<16x384xf32>
    %205 = vector.extract_strided_slice %172 {offsets = [32, 0], sizes = [16, 384], strides = [1, 1]} : vector<48x384xf32> to vector<16x384xf32>
    %206 = arith.addf %204, %205 : vector<16x384xf32>
    %207 = vector.extract_strided_slice %180 {offsets = [32, 0], sizes = [16, 1], strides = [1, 1]} : vector<64x1xf32> to vector<16x1xf32>
    %208 = vector.broadcast %207 : vector<16x1xf32> to vector<16x384xf32>
    %209 = arith.mulf %206, %208 : vector<16x384xf32>
    %c0_160 = arith.constant 0 : index
    %c32_161 = arith.constant 32 : index
    %c0_162 = arith.constant 0 : index
    %210 = vector.load %arg8[%c0_160, %c32_161, %c0_162] : memref<1x64x384xf32, #tpu.memory_space<vmem>>, vector<1x16x384xf32>
    %211 = vector.shape_cast %210 : vector<1x16x384xf32> to vector<16x384xf32>
    %212 = vector.shape_cast %209 : vector<16x384xf32> to vector<1x16x384xf32>
    tpu.vector_store %arg8[%c0_160, %c32_161, %c0_162], %212 {strides = array<i32>} : memref<1x64x384xf32, #tpu.memory_space<vmem>>, vector<1x16x384xf32>,
    %213 = vector.extract_strided_slice %169 {offsets = [48, 0], sizes = [16, 384], strides = [1, 1]} : vector<64x384xf32> to vector<16x384xf32>
    %214 = vector.extract_strided_slice %180 {offsets = [48, 0], sizes = [16, 1], strides = [1, 1]} : vector<64x1xf32> to vector<16x1xf32>
    %215 = vector.broadcast %214 : vector<16x1xf32> to vector<16x384xf32>
    %216 = arith.mulf %213, %215 : vector<16x384xf32>
    %c0_163 = arith.constant 0 : index
    %c48_164 = arith.constant 48 : index
    %c0_165 = arith.constant 0 : index
    %217 = vector.load %arg8[%c0_163, %c48_164, %c0_165] : memref<1x64x384xf32, #tpu.memory_space<vmem>>, vector<1x16x384xf32>
    %218 = vector.shape_cast %217 : vector<1x16x384xf32> to vector<16x384xf32>
    %219 = vector.shape_cast %216 : vector<16x384xf32> to vector<1x16x384xf32>
    tpu.vector_store %arg8[%c0_163, %c48_164, %c0_165], %219 {strides = array<i32>} : memref<1x64x384xf32, #tpu.memory_space<vmem>>, vector<1x16x384xf32>,
    return
  }
  func.func @transform_0(%arg0: i32, %arg1: i32) -> (i32, i32, i32) {
    %c0_i32 = arith.constant 0 : i32
    %c0_i32_0 = arith.constant 0 : i32
    %c0_i32_1 = arith.constant 0 : i32
    return %arg0, %c0_i32, %c0_i32_0 : i32, i32, i32
  }
  func.func @transform_1(%arg0: i32, %arg1: i32) -> (i32, i32) {
    %c0_i32 = arith.constant 0 : i32
    %c0_i32_0 = arith.constant 0 : i32
    %c0_i32_1 = arith.constant 0 : i32
    return %c0_i32, %c0_i32_0 : i32, i32
  }
  func.func @transform_2(%arg0: i32, %arg1: i32) -> (i32, i32) {
    %c0_i32 = arith.constant 0 : i32
    %c0_i32_0 = arith.constant 0 : i32
    %c0_i32_1 = arith.constant 0 : i32
    return %c0_i32, %c0_i32_0 : i32, i32
  }
  func.func @transform_3(%arg0: i32, %arg1: i32) -> (i32, i32) {
    %c0_i32 = arith.constant 0 : i32
    %c0_i32_0 = arith.constant 0 : i32
    %c0_i32_1 = arith.constant 0 : i32
    return %c0_i32, %c0_i32_0 : i32, i32
  }
  func.func @transform_4(%arg0: i32, %arg1: i32) -> (i32, i32) {
    %c0_i32 = arith.constant 0 : i32
    %c0_i32_0 = arith.constant 0 : i32
    %c0_i32_1 = arith.constant 0 : i32
    return %c0_i32, %c0_i32_0 : i32, i32
  }
  func.func @transform_5(%arg0: i32, %arg1: i32) -> (i32, i32, i32) {
    %c0_i32 = arith.constant 0 : i32
    %c0_i32_0 = arith.constant 0 : i32
    %c0_i32_1 = arith.constant 0 : i32
    return %arg0, %c0_i32, %c0_i32_0 : i32, i32, i32
  }
  func.func @transform_6(%arg0: i32, %arg1: i32) -> (i32, i32, i32) {
    %c0_i32 = arith.constant 0 : i32
    %c0_i32_0 = arith.constant 0 : i32
    return %arg0, %c0_i32, %arg1 : i32, i32, i32
  }
}

</mosaic_0001>

<llo_original>
// kernel: psa_forward.1
$region0: #{psa_forward.1}
  #allocation0 [shape = 'u32[]', space=smem, size = 0x4, offset = 0x4, fixed_abs, tag = 'smem constant byte address 0x4 - core index']
  #allocation1 [shape = 'u32[72,128]{1,0:T(1,128)}', space=vmem, size = 0x9000, scoped, tag = 'internal scratch']
  #allocation2 [shape = 'bf16[144,384]{1,0:T(8,128)(2,1)}', space=vmem, size = 0x1b000, scoped, tag = 'scratch operand']
  #allocation3 [shape = 'bf16[256,384]{1,0:T(8,128)(2,1)}', space=vmem, size = 0x30000, scoped, tag = 'scratch operand']
  #allocation4 [shape = 'bf16[384,384]{1,0:T(8,128)(2,1)}', space=vmem, size = 0x48000, scoped, tag = 'scratch operand']
  #allocation5 [shape = 'bf16[512,384]{1,0:T(8,128)(2,1)}', space=vmem, size = 0x60000, scoped, tag = 'scratch operand']
  %s0 = inlined_call_operand.vmem [shape: bf16[2,16,640], index: 0, kind: input, shape index: {}]
  %s1 = inlined_call_operand.vmem [shape: bf16[64,144], index: 1, kind: input, shape index: {}]
  %s2 = inlined_call_operand.vmem [shape: bf16[48,256], index: 2, kind: input, shape index: {}]
  %s3 = inlined_call_operand.vmem [shape: bf16[32,384], index: 3, kind: input, shape index: {}]
  %s4 = inlined_call_operand.vmem [shape: bf16[16,512], index: 4, kind: input, shape index: {}]
  %s5 = inlined_call_operand.vmem [shape: f32[2,64,1], index: 5, kind: input, shape index: {}]
  %s6 = inlined_call_operand.vmem [shape: f32[2,64,384], index: 6, kind: output, shape index: {}]
  %s7 = sld [smem:[#allocation0]]
  $region57: #{psa_forward.1} parent=0
    _
  %s9 = ssub.s32 1, %s7
  %s10 = scalar_select 0, %s9, %s7
  loop: start=0, step=1, limit=4
  $region2: #{psa_forward.1} parent=0 // loop_pre_header
    _
  $region3: #{psa_forward.1} parent=0 // loop_header
    %s12 = sphi 0, %s16
    %p13 = scmp.ge.s32.totalorder %s12, 4
    %s19 = sphi 0, %s31
    %s20 = sphi 0, %s27
    %s21 = sphi 0, %s19
    %s22 = sphi 0, %s20
    %s23 = sphi 0, %s21
    %s24 = sphi 0, %s22
    %s34 = sphi 0, %s36
    %s37 = sphi 0, %s34
    %s38 = sphi 0, %s37
    %s54 = sphi 0, %s38
    %s58 = sphi 0, %s58
    %s60 = sphi 0, %s58
    %s61 = sphi 0, %s60
    %s75 = sphi 0, %s61
    %s79 = sphi 0, %s79
    %s81 = sphi 0, %s79
    %s82 = sphi 0, %s81
    %s96 = sphi 0, %s82
    %s100 = sphi 0, %s100
    %s102 = sphi 0, %s100
    %s103 = sphi 0, %s102
    %s117 = sphi 0, %s103
    %s121 = sphi 0, %s121
    %s123 = sphi 0, %s121
    %s124 = sphi 0, %s123
    %s138 = sphi 0, %s124
    %s144 = sphi 0, %s146
    %s147 = sphi 0, %s144
    %s148 = sphi 0, %s147
    %s164 = sphi 0, %s148
    %s172 = sphi 0, %s174
    %s175 = sphi 0, %s172
    %s176 = sphi 0, %s175
    %s192 = sphi 0, %s176
  $region4: #{psa_forward.1} parent=0 // loop_header_branch
    %15 = sbr.rel (%p13) target = $region8
  $region5: #{psa_forward.1} parent=0 // loop_body
    %s17 = ssub.s32 %s12, 1
    %s18 = ssub.s32 %s12, 2
    %s25 = sadd.s32 1, %s20
    %p26 = scmp.ge.s32.totalorder %s25, 1
    %s27 = scalar_select %p26, 0, %s25
    %s28 = sadd.s32 1, %s19
    %s29 = scalar_select %p26, %s28, %s19
    %p30 = scmp.ge.s32.totalorder %s29, 2
    %s31 = scalar_select %p30, 0, %s29
    %s32 = ssub.s32 %s19, %s31
    %p33 = scmp.eq.s32.totalorder %s32, 0
    %s35 = sadd.s32 %s34, 1
    %s36 = scalar_select %p33, %s34, %s35
    %p39 = pneg %p33
    %p40 = scmp.eq.s32.totalorder %s12, 1
    %p41 = por %p39, %p40
    %p42 = scmp.ne.s32.totalorder %s34, %s37
    %p43 = scmp.eq.s32.totalorder %s12, 0
    %p44 = por %p42, %p43
    %p45 = scmp.ne.s32.totalorder %s34, %s37
    %p46 = scmp.eq.s32.totalorder %s17, 1
    %p47 = por %p45, %p46
    %p48 = scmp.ne.s32.totalorder %s37, %s38
    %p49 = scmp.eq.s32.totalorder %s17, 0
    %p50 = por %p48, %p49
    %p51 = scmp.ne.s32.totalorder %s37, %s38
    %p52 = scmp.eq.s32.totalorder %s18, 1
    %p53 = por %p51, %p52
    %p55 = scmp.ne.s32.totalorder %s38, %s54
    %p56 = scmp.eq.s32.totalorder %s18, 0
    %p57 = por %p55, %p56
    %s59 = sadd.s32 %s58, 1
    %p62 = scmp.eq.s32.totalorder %s12, 1
    %p63 = scmp.ne.s32.totalorder %s58, %s60
    %p64 = scmp.eq.s32.totalorder %s12, 0
    %p65 = por %p63, %p64
    %p66 = scmp.ne.s32.totalorder %s58, %s60
    %p67 = scmp.eq.s32.totalorder %s17, 1
    %p68 = por %p66, %p67
    %p69 = scmp.ne.s32.totalorder %s60, %s61
    %p70 = scmp.eq.s32.totalorder %s17, 0
    %p71 = por %p69, %p70
    %p72 = scmp.ne.s32.totalorder %s60, %s61
    %p73 = scmp.eq.s32.totalorder %s18, 1
    %p74 = por %p72, %p73
    %p76 = scmp.ne.s32.totalorder %s61, %s75
    %p77 = scmp.eq.s32.totalorder %s18, 0
    %p78 = por %p76, %p77
    %s80 = sadd.s32 %s79, 1
    %p83 = scmp.eq.s32.totalorder %s12, 1
    %p84 = scmp.ne.s32.totalorder %s79, %s81
    %p85 = scmp.eq.s32.totalorder %s12, 0
    %p86 = por %p84, %p85
    %p87 = scmp.ne.s32.totalorder %s79, %s81
    %p88 = scmp.eq.s32.totalorder %s17, 1
    %p89 = por %p87, %p88
    %p90 = scmp.ne.s32.totalorder %s81, %s82
    %p91 = scmp.eq.s32.totalorder %s17, 0
    %p92 = por %p90, %p91
    %p93 = scmp.ne.s32.totalorder %s81, %s82
    %p94 = scmp.eq.s32.totalorder %s18, 1
    %p95 = por %p93, %p94
    %p97 = scmp.ne.s32.totalorder %s82, %s96
    %p98 = scmp.eq.s32.totalorder %s18, 0
    %p99 = por %p97, %p98
    %s101 = sadd.s32 %s100, 1
    %p104 = scmp.eq.s32.totalorder %s12, 1
    %p105 = scmp.ne.s32.totalorder %s100, %s102
    %p106 = scmp.eq.s32.totalorder %s12, 0
    %p107 = por %p105, %p106
    %p108 = scmp.ne.s32.totalorder %s100, %s102
    %p109 = scmp.eq.s32.totalorder %s17, 1
    %p110 = por %p108, %p109
    %p111 = scmp.ne.s32.totalorder %s102, %s103
    %p112 = scmp.eq.s32.totalorder %s17, 0
    %p113 = por %p111, %p112
    %p114 = scmp.ne.s32.totalorder %s102, %s103
    %p115 = scmp.eq.s32.totalorder %s18, 1
    %p116 = por %p114, %p115
    %p118 = scmp.ne.s32.totalorder %s103, %s117
    %p119 = scmp.eq.s32.totalorder %s18, 0
    %p120 = por %p118, %p119
    %s122 = sadd.s32 %s121, 1
    %p125 = scmp.eq.s32.totalorder %s12, 1
    %p126 = scmp.ne.s32.totalorder %s121, %s123
    %p127 = scmp.eq.s32.totalorder %s12, 0
    %p128 = por %p126, %p127
    %p129 = scmp.ne.s32.totalorder %s121, %s123
    %p130 = scmp.eq.s32.totalorder %s17, 1
    %p131 = por %p129, %p130
    %p132 = scmp.ne.s32.totalorder %s123, %s124
    %p133 = scmp.eq.s32.totalorder %s17, 0
    %p134 = por %p132, %p133
    %p135 = scmp.ne.s32.totalorder %s123, %s124
    %p136 = scmp.eq.s32.totalorder %s18, 1
    %p137 = por %p135, %p136
    %p139 = scmp.ne.s32.totalorder %s124, %s138
    %p140 = scmp.eq.s32.totalorder %s18, 0
    %p141 = por %p139, %p140
    %s142 = ssub.s32 %s19, %s31
    %p143 = scmp.eq.s32.totalorder %s142, 0
    %s145 = sadd.s32 %s144, 1
    %s146 = scalar_select %p143, %s144, %s145
    %p149 = pneg %p143
    %p150 = scmp.eq.s32.totalorder %s12, 1
    %p151 = por %p149, %p150
    %p152 = scmp.ne.s32.totalorder %s144, %s147
    %p153 = scmp.eq.s32.totalorder %s12, 0
    %p154 = por %p152, %p153
    %p155 = scmp.ne.s32.totalorder %s144, %s147
    %p156 = scmp.eq.s32.totalorder %s17, 1
    %p157 = por %p155, %p156
    %p158 = scmp.ne.s32.totalorder %s147, %s148
    %p159 = scmp.eq.s32.totalorder %s17, 0
    %p160 = por %p158, %p159
    %p161 = scmp.ne.s32.totalorder %s147, %s148
    %p162 = scmp.eq.s32.totalorder %s18, 1
    %p163 = por %p161, %p162
    %p165 = scmp.ne.s32.totalorder %s148, %s164
    %p166 = scmp.eq.s32.totalorder %s18, 0
    %p167 = por %p165, %p166
    %s168 = ssub.s32 %s19, %s31
    %s169 = ssub.s32 %s20, %s27
    %s170 = sor.u32 %s168, %s169
    %p171 = scmp.eq.s32.totalorder %s170, 0
    %s173 = sadd.s32 %s172, 1
    %s174 = scalar_select %p171, %s172, %s173
    %p177 = pneg %p171
    %p178 = scmp.eq.s32.totalorder %s12, 1
    %p179 = por %p177, %p178
    %p180 = scmp.ne.s32.totalorder %s172, %s175
    %p181 = scmp.eq.s32.totalorder %s12, 0
    %p182 = por %p180, %p181
    %p183 = scmp.ne.s32.totalorder %s172, %s175
    %p184 = scmp.eq.s32.totalorder %s17, 1
    %p185 = por %p183, %p184
    %p186 = scmp.ne.s32.totalorder %s175, %s176
    %p187 = scmp.eq.s32.totalorder %s17, 0
    %p188 = por %p186, %p187
    %p189 = scmp.ne.s32.totalorder %s175, %s176
    %p190 = scmp.eq.s32.totalorder %s18, 1
    %p191 = por %p189, %p190
    %p193 = scmp.ne.s32.totalorder %s176, %s192
    %p194 = scmp.eq.s32.totalorder %s18, 0
    %p195 = por %p193, %p194
    %p196 = scmp.le.s32.totalorder 1, %s12
    %p197 = scmp.lt.s32.totalorder %s12, 3
    %p198 = pnand %p196, %p197
    %p199 = pneg %p198
    // Predicated region
    $region9: #{psa_forward.1} parent=5 // pred_check
      _
    $region10: #{psa_forward.1} parent=5 // pred_check_branch
      %201 = sbr.rel (%p198) target = $region12
    $region11: #{psa_forward.1} parent=5 // pred_region
      %s202 = ssub.s32 %s12, 1
      // Predicated region
      $region13: #{psa_forward.1} parent=11 // pred_check
        %p203 = pneg %p71
      $region14: #{psa_forward.1} parent=11 // pred_check_branch
        %205 = sbr.rel (%p203) target = $region16
      $region15: #{psa_forward.1} parent=11 // pred_region
        _
      $region16: #{psa_forward.1} parent=11 // pred_fallthru
        _
      // Predicated region
      $region17: #{psa_forward.1} parent=11 // pred_check
        %p206 = pneg %p92
      $region18: #{psa_forward.1} parent=11 // pred_check_branch
        %208 = sbr.rel (%p206) target = $region20
      $region19: #{psa_forward.1} parent=11 // pred_region
        _
      $region20: #{psa_forward.1} parent=11 // pred_fallthru
        _
      // Predicated region
      $region21: #{psa_forward.1} parent=11 // pred_check
        %p209 = pneg %p113
      $region22: #{psa_forward.1} parent=11 // pred_check_branch
        %211 = sbr.rel (%p209) target = $region24
      $region23: #{psa_forward.1} parent=11 // pred_region
        _
      $region24: #{psa_forward.1} parent=11 // pred_fallthru
        _
      // Predicated region
      $region25: #{psa_forward.1} parent=11 // pred_check
        %p212 = pneg %p134
      $region26: #{psa_forward.1} parent=11 // pred_check_branch
        %214 = sbr.rel (%p212) target = $region28
      $region27: #{psa_forward.1} parent=11 // pred_region
        _
      $region28: #{psa_forward.1} parent=11 // pred_fallthru
        _
    $region12: #{psa_forward.1} parent=5 // pred_fallthru
      _
    %p215 = scmp.lt.s32.totalorder %s12, 2
    // Predicated region
    $region29: #{psa_forward.1} parent=5 // pred_check
      %p216 = pneg %p215
    $region30: #{psa_forward.1} parent=5 // pred_check_branch
      %218 = sbr.rel (%p216) target = $region32
    $region31: #{psa_forward.1} parent=5 // pred_region
      // Predicated region
      $region33: #{psa_forward.1} parent=31 // pred_check
        %p219 = pneg %p44
      $region34: #{psa_forward.1} parent=31 // pred_check_branch
        %221 = sbr.rel (%p219) target = $region36
      $region35: #{psa_forward.1} parent=31 // pred_region
        %p222 = scmp.lt.s32.totalorder %s19, 1
        %s223 = scalar_select %p222, %s19, 1
        %s224 = smul.addr %s223, 10
        %s225 = smul.addr %s224, 4
        %s226 = scalar_lea.vmem %s0, %s225
      $region36: #{psa_forward.1} parent=31 // pred_fallthru
        _
      // Predicated region
      $region37: #{psa_forward.1} parent=31 // pred_check
        %p227 = pneg %p154
      $region38: #{psa_forward.1} parent=31 // pred_check_branch
        %229 = sbr.rel (%p227) target = $region40
      $region39: #{psa_forward.1} parent=31 // pred_region
        %p230 = scmp.lt.s32.totalorder %s19, 1
        %s231 = scalar_select %p230, %s19, 1
        %s232 = smul.addr %s231, 8
        %s233 = smul.addr %s232, 8
        %s234 = scalar_lea.vmem %s5, %s233
      $region40: #{psa_forward.1} parent=31 // pred_fallthru
        _
    $region32: #{psa_forward.1} parent=5 // pred_fallthru
      _
    %p235 = scmp.le.s32.totalorder 1, %s12
    %p236 = scmp.lt.s32.totalorder %s12, 3
    %p237 = pnand %p235, %p236
    %p238 = pneg %p237
    // Predicated region
    $region41: #{psa_forward.1} parent=5 // pred_check
      _
    $region42: #{psa_forward.1} parent=5 // pred_check_branch
      %240 = sbr.rel (%p237) target = $region44
    $region43: #{psa_forward.1} parent=5 // pred_region
      %s241 = ssub.s32 %s12, 1
      %p242 = scmp.lt.s32.totalorder %s21, 1
      %s243 = scalar_select %p242, %s21, 1
      %s244 = smul.addr %s243, 10
      %s245 = smul.addr %s244, 4
      %s246 = scalar_lea.vmem %s0, %s245
      %p247 = pneg %p50
      %p248 = pneg %p47
      %p249 = pneg %p71
      %p250 = pneg %p68
      %p251 = pneg %p92
      %p252 = pneg %p89
      %p253 = pneg %p113
      %p254 = pneg %p110
      %p255 = pneg %p134
      %p256 = pneg %p131
      %p257 = scmp.lt.s32.totalorder %s21, 1
      %s258 = scalar_select %p257, %s21, 1
      %s259 = smul.addr %s258, 8
      %s260 = smul.addr %s259, 8
      %s261 = scalar_lea.vmem %s5, %s260
      %p262 = pneg %p160
      %p263 = pneg %p157
      %p264 = pneg %p188
      %p265 = pneg %p185
      %s266 = smul.u32 3, %s22
      %p267 = scmp.lt.s32.totalorder %s21, 1
      %s268 = scalar_select %p267, %s21, 1
      %p269 = scmp.lt.s32.totalorder %s266, 2
      %s270 = scalar_select %p269, %s266, 2
      %s271 = smul.addr %s268, 24
      %s272 = sadd.s32 %s270, %s271
      %s273 = smul.addr %s272, 8
      %s274 = scalar_lea.vmem %s6, %s273
      %p275 = scmp.lt.s32.totalorder %s21, 1
      %s276 = scalar_select %p275, %s21, 1
      %s277 = smul.addr %s276, 10
      %s278 = smul.addr %s277, 4
      %s279 = scalar_lea.vmem %s0, %s278
      %p280 = scmp.lt.s32.totalorder %s21, 1
      %s281 = scalar_select %p280, %s21, 1
      %s282 = smul.addr %s281, 8
      %s283 = smul.addr %s282, 8
      %s284 = scalar_lea.vmem %s5, %s283
      %s285 = smul.u32 3, %s22
      %p286 = scmp.lt.s32.totalorder %s21, 1
      %s287 = scalar_select %p286, %s21, 1
      %p288 = scmp.lt.s32.totalorder %s285, 2
      %s289 = scalar_select %p288, %s285, 2
      %s290 = smul.addr %s287, 24
      %s291 = sadd.s32 %s289, %s290
      %s292 = smul.addr %s291, 8
      %s293 = scalar_lea.vmem %s6, %s292
      %s294 = smul.u32 3, %s22
      %s296 = smul.u32 %s22, 384
      %s297 = sshra.s32 %s296, 7
      %s298 = sand.u32 %s296, 127
      %s299 = smul.addr %s297, 4
      %s300 = scalar_lea.vmem %s279, %s299
      %v301 = vld [vmem:[%s300] sm:$0xff]
      %v302 = vld [vmem:[%s300 + $0x8] sm:$0xff]
      %v303 = vld [vmem:[%s300 + $0x10] sm:$0xf]
      %v304 = vld [vmem:[%s300 + $0x14] sm:$0xff]
      %v305 = vld [vmem:[%s300 + $0x1c] sm:$0xff]
      %v306 = vld [vmem:[%s300 + $0x24] sm:$0xf]
      %311 = vrot.lane.b32.xlu0 %v301, 53
      %v312 = vpop.permute.xlu0 %311
      %313 = vrot.lane.b32.xlu0 %v302, 53
      %v314 = vpop.permute.xlu0 %313
      %315 = vrot.lane.b32.xlu0 %v304, 53
      %v316 = vpop.permute.xlu0 %315
      %317 = vrot.lane.b32.xlu0 %v305, 53
      %v318 = vpop.permute.xlu0 %317
      %v319 = vrot.slane %v312, 4
      %v320 = vrot.slane %v314, 4
      %v321 = vrot.slane %v316, 4
      %v322 = vrot.slane %v318, 4
      %vm323 = vcmask 1043456
      %v324 = vsel %vm323, %v319, %v320
      %vm325 = vcmask 433152
      %v326 = vsel %vm325, %v312, %v324
      %v327 = vsel %vm325, %v314, %v320
      %v328 = vsel %vm323, %v321, %v322
      %v329 = vsel %vm325, %v316, %v328
      %v330 = vsel %vm325, %v318, %v322
      %335 = vst [vmem:[#allocation2] sm:$0xff] %v326
      %336 = vst [vmem:[#allocation2 + $0x8] sm:$0xf] %v327
      %337 = vst [vmem:[#allocation2 + $0xc] sm:$0xff] %v329
      %338 = vst [vmem:[#allocation2 + $0x14] sm:$0xf] %v330
      %339 = vrot.lane.b32.xlu0 %v301, 52
      %v340 = vpop.permute.xlu0 %339
      %341 = vrot.lane.b32.xlu0 %v302, 52
      %v342 = vpop.permute.xlu0 %341
      %343 = vrot.lane.b32.xlu0 %v304, 52
      %v344 = vpop.permute.xlu0 %343
      %345 = vrot.lane.b32.xlu0 %v305, 52
      %v346 = vpop.permute.xlu0 %345
      %v347 = vrot.slane %v340, 4
      %v348 = vrot.slane %v342, 4
      %v349 = vrot.slane %v344, 4
      %v350 = vrot.slane %v346, 4
      %v351 = vsel %vm323, %v347, %v348
      %vm352 = vcmask 424960
      %v353 = vsel %vm352, %v340, %v351
      %v354 = vsel %vm352, %v342, %v348
      %v355 = vsel %vm323, %v349, %v350
      %v356 = vsel %vm352, %v344, %v355
      %v357 = vsel %vm352, %v346, %v350
      %362 = vst [vmem:[#allocation2 + $0x18] sm:$0xff] %v353
      %363 = vst [vmem:[#allocation2 + $0x20] sm:$0xf] %v354
      %364 = vst [vmem:[#allocation2 + $0x24] sm:$0xff] %v356
      %365 = vst [vmem:[#allocation2 + $0x2c] sm:$0xf] %v357
      %366 = vrot.lane.b32.xlu0 %v301, 51
      %v367 = vpop.permute.xlu0 %366
      %368 = vrot.lane.b32.xlu0 %v302, 51
      %v369 = vpop.permute.xlu0 %368
      %370 = vrot.lane.b32.xlu0 %v304, 51
      %v371 = vpop.permute.xlu0 %370
      %372 = vrot.lane.b32.xlu0 %v305, 51
      %v373 = vpop.permute.xlu0 %372
      %v374 = vrot.slane %v367, 4
      %v375 = vrot.slane %v369, 4
      %v376 = vrot.slane %v371, 4
      %v377 = vrot.slane %v373, 4
      %v378 = vsel %vm323, %v374, %v375
      %vm379 = vcmask 416768
      %v380 = vsel %vm379, %v367, %v378
      %v381 = vsel %vm379, %v369, %v375
      %v382 = vsel %vm323, %v376, %v377
      %v383 = vsel %vm379, %v371, %v382
      %v384 = vsel %vm379, %v373, %v377
      %389 = vst [vmem:[#allocation2 + $0x30] sm:$0xff] %v380
      %390 = vst [vmem:[#allocation2 + $0x38] sm:$0xf] %v381
      %391 = vst [vmem:[#allocation2 + $0x3c] sm:$0xff] %v383
      %392 = vst [vmem:[#allocation2 + $0x44] sm:$0xf] %v384
      %393 = vrot.lane.b32.xlu0 %v301, 29
      %v394 = vpop.permute.xlu0 %393
      %395 = vrot.lane.b32.xlu0 %v302, 29
      %v396 = vpop.permute.xlu0 %395
      %397 = vrot.lane.b32.xlu0 %v304, 29
      %v398 = vpop.permute.xlu0 %397
      %399 = vrot.lane.b32.xlu0 %v305, 29
      %v400 = vpop.permute.xlu0 %399
      %v401 = vrot.slane %v394, 4
      %v402 = vrot.slane %v396, 4
      %v403 = vrot.slane %v398, 4
      %v404 = vrot.slane %v400, 4
      %v405 = vsel %vm323, %v401, %v402
      %vm406 = vcmask 236544
      %v407 = vsel %vm406, %v394, %v405
      %v408 = vsel %vm406, %v396, %v402
      %v409 = vsel %vm323, %v403, %v404
      %v410 = vsel %vm406, %v398, %v409
      %v411 = vsel %vm406, %v400, %v404
      %416 = vst [vmem:[#allocation2 + $0x48] sm:$0xff] %v407
      %417 = vst [vmem:[#allocation2 + $0x50] sm:$0xf] %v408
      %418 = vst [vmem:[#allocation2 + $0x54] sm:$0xff] %v410
      %419 = vst [vmem:[#allocation2 + $0x5c] sm:$0xf] %v411
      %420 = vrot.lane.b32.xlu0 %v301, 28
      %v421 = vpop.permute.xlu0 %420
      %422 = vrot.lane.b32.xlu0 %v302, 28
      %v423 = vpop.permute.xlu0 %422
      %424 = vrot.lane.b32.xlu0 %v304, 28
      %v425 = vpop.permute.xlu0 %424
      %426 = vrot.lane.b32.xlu0 %v305, 28
      %v427 = vpop.permute.xlu0 %426
      %v428 = vrot.slane %v421, 4
      %v429 = vrot.slane %v423, 4
      %v430 = vrot.slane %v425, 4
      %v431 = vrot.slane %v427, 4
      %v432 = vsel %vm323, %v428, %v429
      %vm433 = vcmask 228352
      %v434 = vsel %vm433, %v421, %v432
      %v435 = vsel %vm433, %v423, %v429
      %v436 = vsel %vm323, %v430, %v431
      %v437 = vsel %vm433, %v425, %v436
      %v438 = vsel %vm433, %v427, %v431
      %443 = vst [vmem:[#allocation2 + $0x60] sm:$0xff] %v434
      %444 = vst [vmem:[#allocation2 + $0x68] sm:$0xf] %v435
      %445 = vst [vmem:[#allocation2 + $0x6c] sm:$0xff] %v437
      %446 = vst [vmem:[#allocation2 + $0x74] sm:$0xf] %v438
      %447 = vrot.lane.b32.xlu0 %v301, 27
      %v448 = vpop.permute.xlu0 %447
      %449 = vrot.lane.b32.xlu0 %v302, 27
      %v450 = vpop.permute.xlu0 %449
      %451 = vrot.lane.b32.xlu0 %v304, 27
      %v452 = vpop.permute.xlu0 %451
      %453 = vrot.lane.b32.xlu0 %v305, 27
      %v454 = vpop.permute.xlu0 %453
      %v455 = vrot.slane %v448, 4
      %v456 = vrot.slane %v450, 4
      %v457 = vrot.slane %v452, 4
      %v458 = vrot.slane %v454, 4
      %v459 = vsel %vm323, %v455, %v456
      %vm460 = vcmask 220160
      %v461 = vsel %vm460, %v448, %v459
      %v462 = vsel %vm460, %v450, %v456
      %v463 = vsel %vm323, %v457, %v458
      %v464 = vsel %vm460, %v452, %v463
      %v465 = vsel %vm460, %v454, %v458
      %470 = vst [vmem:[#allocation2 + $0x78] sm:$0xff] %v461
      %471 = vst [vmem:[#allocation2 + $0x80] sm:$0xf] %v462
      %472 = vst [vmem:[#allocation2 + $0x84] sm:$0xff] %v464
      %473 = vst [vmem:[#allocation2 + $0x8c] sm:$0xf] %v465
      %474 = vrot.lane.b32.xlu0 %v301, 5
      %v475 = vpop.permute.xlu0 %474
      %476 = vrot.lane.b32.xlu0 %v302, 5
      %v477 = vpop.permute.xlu0 %476
      %478 = vrot.lane.b32.xlu0 %v304, 5
      %v479 = vpop.permute.xlu0 %478
      %480 = vrot.lane.b32.xlu0 %v305, 5
      %v481 = vpop.permute.xlu0 %480
      %v482 = vrot.slane %v475, 4
      %v483 = vrot.slane %v477, 4
      %v484 = vrot.slane %v479, 4
      %v485 = vrot.slane %v481, 4
      %v486 = vsel %vm323, %v482, %v483
      %vm487 = vcmask 39936
      %v488 = vsel %vm487, %v475, %v486
      %v489 = vsel %vm487, %v477, %v483
      %v490 = vsel %vm323, %v484, %v485
      %v491 = vsel %vm487, %v479, %v490
      %v492 = vsel %vm487, %v481, %v485
      %497 = vst [vmem:[#allocation2 + $0x90] sm:$0xff] %v488
      %498 = vst [vmem:[#allocation2 + $0x98] sm:$0xf] %v489
      %499 = vst [vmem:[#allocation2 + $0x9c] sm:$0xff] %v491
      %500 = vst [vmem:[#allocation2 + $0xa4] sm:$0xf] %v492
      %501 = vrot.lane.b32.xlu0 %v301, 4
      %v502 = vpop.permute.xlu0 %501
      %503 = vrot.lane.b32.xlu0 %v302, 4
      %v504 = vpop.permute.xlu0 %503
      %505 = vrot.lane.b32.xlu0 %v304, 4
      %v506 = vpop.permute.xlu0 %505
      %507 = vrot.lane.b32.xlu0 %v305, 4
      %v508 = vpop.permute.xlu0 %507
      %v509 = vrot.slane %v502, 4
      %v510 = vrot.slane %v504, 4
      %v511 = vrot.slane %v506, 4
      %v512 = vrot.slane %v508, 4
      %v513 = vsel %vm323, %v509, %v510
      %vm514 = vcmask 31744
      %v515 = vsel %vm514, %v502, %v513
      %v516 = vsel %vm514, %v504, %v510
      %v517 = vsel %vm323, %v511, %v512
      %v518 = vsel %vm514, %v506, %v517
      %v519 = vsel %vm514, %v508, %v512
      %524 = vst [vmem:[#allocation2 + $0xa8] sm:$0xff] %v515
      %525 = vst [vmem:[#allocation2 + $0xb0] sm:$0xf] %v516
      %526 = vst [vmem:[#allocation2 + $0xb4] sm:$0xff] %v518
      %527 = vst [vmem:[#allocation2 + $0xbc] sm:$0xf] %v519
      %528 = vrot.lane.b32.xlu0 %v301, 3
      %v529 = vpop.permute.xlu0 %528
      %530 = vrot.lane.b32.xlu0 %v302, 3
      %v531 = vpop.permute.xlu0 %530
      %532 = vrot.lane.b32.xlu0 %v304, 3
      %v533 = vpop.permute.xlu0 %532
      %534 = vrot.lane.b32.xlu0 %v305, 3
      %v535 = vpop.permute.xlu0 %534
      %v536 = vrot.slane %v529, 4
      %v537 = vrot.slane %v531, 4
      %v538 = vrot.slane %v533, 4
      %v539 = vrot.slane %v535, 4
      %v540 = vsel %vm323, %v536, %v537
      %vm541 = vcmask 23552
      %v542 = vsel %vm541, %v529, %v540
      %v543 = vsel %vm541, %v531, %v537
      %v544 = vsel %vm323, %v538, %v539
      %v545 = vsel %vm541, %v533, %v544
      %v546 = vsel %vm541, %v535, %v539
      %551 = vst [vmem:[#allocation2 + $0xc0] sm:$0xff] %v542
      %552 = vst [vmem:[#allocation2 + $0xc8] sm:$0xf] %v543
      %553 = vst [vmem:[#allocation2 + $0xcc] sm:$0xff] %v545
      %554 = vst [vmem:[#allocation2 + $0xd4] sm:$0xf] %v546
      %555 = vrot.lane.b32.xlu0 %v301, 78
      %v556 = vpop.permute.xlu0 %555
      %557 = vrot.lane.b32.xlu0 %v302, 78
      %v558 = vpop.permute.xlu0 %557
      %559 = vrot.lane.b32.xlu0 %v304, 78
      %v560 = vpop.permute.xlu0 %559
      %561 = vrot.lane.b32.xlu0 %v305, 78
      %v562 = vpop.permute.xlu0 %561
      %v563 = vrot.slane %v556, 4
      %v564 = vrot.slane %v558, 4
      %v565 = vrot.slane %v560, 4
      %v566 = vrot.slane %v562, 4
      %v567 = vsel %vm323, %v563, %v564
      %vm568 = vcmask 637952
      %v569 = vsel %vm568, %v556, %v567
      %v570 = vsel %vm568, %v558, %v564
      %v571 = vsel %vm323, %v565, %v566
      %v572 = vsel %vm568, %v560, %v571
      %v573 = vsel %vm568, %v562, %v566
      %578 = vst [vmem:[#allocation3] sm:$0xff] %v569
      %579 = vst [vmem:[#allocation3 + $0x8] sm:$0xf] %v570
      %580 = vst [vmem:[#allocation3 + $0xc] sm:$0xff] %v572
      %581 = vst [vmem:[#allocation3 + $0x14] sm:$0xf] %v573
      %582 = vrot.lane.b32.xlu0 %v301, 77
      %v583 = vpop.permute.xlu0 %582
      %584 = vrot.lane.b32.xlu0 %v302, 77
      %v585 = vpop.permute.xlu0 %584
      %586 = vrot.lane.b32.xlu0 %v304, 77
      %v587 = vpop.permute.xlu0 %586
      %588 = vrot.lane.b32.xlu0 %v305, 77
      %v589 = vpop.permute.xlu0 %588
      %v590 = vrot.slane %v583, 4
      %v591 = vrot.slane %v585, 4
      %v592 = vrot.slane %v587, 4
      %v593 = vrot.slane %v589, 4
      %v594 = vsel %vm323, %v590, %v591
      %vm595 = vcmask 629760
      %v596 = vsel %vm595, %v583, %v594
      %v597 = vsel %vm595, %v585, %v591
      %v598 = vsel %vm323, %v592, %v593
      %v599 = vsel %vm595, %v587, %v598
      %v600 = vsel %vm595, %v589, %v593
      %605 = vst [vmem:[#allocation3 + $0x18] sm:$0xff] %v596
      %606 = vst [vmem:[#allocation3 + $0x20] sm:$0xf] %v597
      %607 = vst [vmem:[#allocation3 + $0x24] sm:$0xff] %v599
      %608 = vst [vmem:[#allocation3 + $0x2c] sm:$0xf] %v600
      %609 = vrot.lane.b32.xlu0 %v301, 76
      %v610 = vpop.permute.xlu0 %609
      %611 = vrot.lane.b32.xlu0 %v302, 76
      %v612 = vpop.permute.xlu0 %611
      %613 = vrot.lane.b32.xlu0 %v304, 76
      %v614 = vpop.permute.xlu0 %613
      %615 = vrot.lane.b32.xlu0 %v305, 76
      %v616 = vpop.permute.xlu0 %615
      %v617 = vrot.slane %v610, 4
      %v618 = vrot.slane %v612, 4
      %v619 = vrot.slane %v614, 4
      %v620 = vrot.slane %v616, 4
      %v621 = vsel %vm323, %v617, %v618
      %vm622 = vcmask 621568
      %v623 = vsel %vm622, %v610, %v621
      %v624 = vsel %vm622, %v612, %v618
      %v625 = vsel %vm323, %v619, %v620
      %v626 = vsel %vm622, %v614, %v625
      %v627 = vsel %vm622, %v616, %v620
      %632 = vst [vmem:[#allocation3 + $0x30] sm:$0xff] %v623
      %633 = vst [vmem:[#allocation3 + $0x38] sm:$0xf] %v624
      %634 = vst [vmem:[#allocation3 + $0x3c] sm:$0xff] %v626
      %635 = vst [vmem:[#allocation3 + $0x44] sm:$0xf] %v627
      %636 = vrot.lane.b32.xlu0 %v301, 75
      %v637 = vpop.permute.xlu0 %636
      %638 = vrot.lane.b32.xlu0 %v302, 75
      %v639 = vpop.permute.xlu0 %638
      %640 = vrot.lane.b32.xlu0 %v304, 75
      %v641 = vpop.permute.xlu0 %640
      %642 = vrot.lane.b32.xlu0 %v305, 75
      %v643 = vpop.permute.xlu0 %642
      %v644 = vrot.slane %v637, 4
      %v645 = vrot.slane %v639, 4
      %v646 = vrot.slane %v641, 4
      %v647 = vrot.slane %v643, 4
      %v648 = vsel %vm323, %v644, %v645
      %vm649 = vcmask 613376
      %v650 = vsel %vm649, %v637, %v648
      %v651 = vsel %vm649, %v639, %v645
      %v652 = vsel %vm323, %v646, %v647
      %v653 = vsel %vm649, %v641, %v652
      %v654 = vsel %vm649, %v643, %v647
      %659 = vst [vmem:[#allocation3 + $0x48] sm:$0xff] %v650
      %660 = vst [vmem:[#allocation3 + $0x50] sm:$0xf] %v651
      %661 = vst [vmem:[#allocation3 + $0x54] sm:$0xff] %v653
      %662 = vst [vmem:[#allocation3 + $0x5c] sm:$0xf] %v654
      %663 = vrot.lane.b32.xlu0 %v301, 74
      %v664 = vpop.permute.xlu0 %663
      %665 = vrot.lane.b32.xlu0 %v302, 74
      %v666 = vpop.permute.xlu0 %665
      %667 = vrot.lane.b32.xlu0 %v304, 74
      %v668 = vpop.permute.xlu0 %667
      %669 = vrot.lane.b32.xlu0 %v305, 74
      %v670 = vpop.permute.xlu0 %669
      %v671 = vrot.slane %v664, 4
      %v672 = vrot.slane %v666, 4
      %v673 = vrot.slane %v668, 4
      %v674 = vrot.slane %v670, 4
      %v675 = vsel %vm323, %v671, %v672
      %vm676 = vcmask 605184
      %v677 = vsel %vm676, %v664, %v675
      %v678 = vsel %vm676, %v666, %v672
      %v679 = vsel %vm323, %v673, %v674
      %v680 = vsel %vm676, %v668, %v679
      %v681 = vsel %vm676, %v670, %v674
      %686 = vst [vmem:[#allocation3 + $0x60] sm:$0xff] %v677
      %687 = vst [vmem:[#allocation3 + $0x68] sm:$0xf] %v678
      %688 = vst [vmem:[#allocation3 + $0x6c] sm:$0xff] %v680
      %689 = vst [vmem:[#allocation3 + $0x74] sm:$0xf] %v681
      %690 = vrot.lane.b32.xlu0 %v301, 54
      %v691 = vpop.permute.xlu0 %690
      %692 = vrot.lane.b32.xlu0 %v302, 54
      %v693 = vpop.permute.xlu0 %692
      %694 = vrot.lane.b32.xlu0 %v304, 54
      %v695 = vpop.permute.xlu0 %694
      %696 = vrot.lane.b32.xlu0 %v305, 54
      %v697 = vpop.permute.xlu0 %696
      %v698 = vrot.slane %v691, 4
      %v699 = vrot.slane %v693, 4
      %v700 = vrot.slane %v695, 4
      %v701 = vrot.slane %v697, 4
      %v702 = vsel %vm323, %v698, %v699
      %vm703 = vcmask 441344
      %v704 = vsel %vm703, %v691, %v702
      %v705 = vsel %vm703, %v693, %v699
      %v706 = vsel %vm323, %v700, %v701
      %v707 = vsel %vm703, %v695, %v706
      %v708 = vsel %vm703, %v697, %v701
      %713 = vst [vmem:[#allocation3 + $0x78] sm:$0xff] %v704
      %714 = vst [vmem:[#allocation3 + $0x80] sm:$0xf] %v705
      %715 = vst [vmem:[#allocation3 + $0x84] sm:$0xff] %v707
      %716 = vst [vmem:[#allocation3 + $0x8c] sm:$0xf] %v708
      %717 = vrot.lane.b32.xlu0 %v301, 50
      %v718 = vpop.permute.xlu0 %717
      %719 = vrot.lane.b32.xlu0 %v302, 50
      %v720 = vpop.permute.xlu0 %719
      %721 = vrot.lane.b32.xlu0 %v304, 50
      %v722 = vpop.permute.xlu0 %721
      %723 = vrot.lane.b32.xlu0 %v305, 50
      %v724 = vpop.permute.xlu0 %723
      %v725 = vrot.slane %v718, 4
      %v726 = vrot.slane %v720, 4
      %v727 = vrot.slane %v722, 4
      %v728 = vrot.slane %v724, 4
      %v729 = vsel %vm323, %v725, %v726
      %vm730 = vcmask 408576
      %v731 = vsel %vm730, %v718, %v729
      %v732 = vsel %vm730, %v720, %v726
      %v733 = vsel %vm323, %v727, %v728
      %v734 = vsel %vm730, %v722, %v733
      %v735 = vsel %vm730, %v724, %v728
      %740 = vst [vmem:[#allocation3 + $0x90] sm:$0xff] %v731
      %741 = vst [vmem:[#allocation3 + $0x98] sm:$0xf] %v732
      %742 = vst [vmem:[#allocation3 + $0x9c] sm:$0xff] %v734
      %743 = vst [vmem:[#allocation3 + $0xa4] sm:$0xf] %v735
      %744 = vrot.lane.b32.xlu0 %v301, 30
      %v745 = vpop.permute.xlu0 %744
      %746 = vrot.lane.b32.xlu0 %v302, 30
      %v747 = vpop.permute.xlu0 %746
      %748 = vrot.lane.b32.xlu0 %v304, 30
      %v749 = vpop.permute.xlu0 %748
      %750 = vrot.lane.b32.xlu0 %v305, 30
      %v751 = vpop.permute.xlu0 %750
      %v752 = vrot.slane %v745, 4
      %v753 = vrot.slane %v747, 4
      %v754 = vrot.slane %v749, 4
      %v755 = vrot.slane %v751, 4
      %v756 = vsel %vm323, %v752, %v753
      %vm757 = vcmask 244736
      %v758 = vsel %vm757, %v745, %v756
      %v759 = vsel %vm757, %v747, %v753
      %v760 = vsel %vm323, %v754, %v755
      %v761 = vsel %vm757, %v749, %v760
      %v762 = vsel %vm757, %v751, %v755
      %767 = vst [vmem:[#allocation3 + $0xa8] sm:$0xff] %v758
      %768 = vst [vmem:[#allocation3 + $0xb0] sm:$0xf] %v759
      %769 = vst [vmem:[#allocation3 + $0xb4] sm:$0xff] %v761
      %770 = vst [vmem:[#allocation3 + $0xbc] sm:$0xf] %v762
      %771 = vrot.lane.b32.xlu0 %v301, 26
      %v772 = vpop.permute.xlu0 %771
      %773 = vrot.lane.b32.xlu0 %v302, 26
      %v774 = vpop.permute.xlu0 %773
      %775 = vrot.lane.b32.xlu0 %v304, 26
      %v776 = vpop.permute.xlu0 %775
      %777 = vrot.lane.b32.xlu0 %v305, 26
      %v778 = vpop.permute.xlu0 %777
      %v779 = vrot.slane %v772, 4
      %v780 = vrot.slane %v774, 4
      %v781 = vrot.slane %v776, 4
      %v782 = vrot.slane %v778, 4
      %v783 = vsel %vm323, %v779, %v780
      %vm784 = vcmask 211968
      %v785 = vsel %vm784, %v772, %v783
      %v786 = vsel %vm784, %v774, %v780
      %v787 = vsel %vm323, %v781, %v782
      %v788 = vsel %vm784, %v776, %v787
      %v789 = vsel %vm784, %v778, %v782
      %794 = vst [vmem:[#allocation3 + $0xc0] sm:$0xff] %v785
      %795 = vst [vmem:[#allocation3 + $0xc8] sm:$0xf] %v786
      %796 = vst [vmem:[#allocation3 + $0xcc] sm:$0xff] %v788
      %797 = vst [vmem:[#allocation3 + $0xd4] sm:$0xf] %v789
      %798 = vrot.lane.b32.xlu0 %v301, 6
      %v799 = vpop.permute.xlu0 %798
      %800 = vrot.lane.b32.xlu0 %v302, 6
      %v801 = vpop.permute.xlu0 %800
      %802 = vrot.lane.b32.xlu0 %v304, 6
      %v803 = vpop.permute.xlu0 %802
      %804 = vrot.lane.b32.xlu0 %v305, 6
      %v805 = vpop.permute.xlu0 %804
      %v806 = vrot.slane %v799, 4
      %v807 = vrot.slane %v801, 4
      %v808 = vrot.slane %v803, 4
      %v809 = vrot.slane %v805, 4
      %v810 = vsel %vm323, %v806, %v807
      %vm811 = vcmask 48128
      %v812 = vsel %vm811, %v799, %v810
      %v813 = vsel %vm811, %v801, %v807
      %v814 = vsel %vm323, %v808, %v809
      %v815 = vsel %vm811, %v803, %v814
      %v816 = vsel %vm811, %v805, %v809
      %821 = vst [vmem:[#allocation3 + $0xd8] sm:$0xff] %v812
      %822 = vst [vmem:[#allocation3 + $0xe0] sm:$0xf] %v813
      %823 = vst [vmem:[#allocation3 + $0xe4] sm:$0xff] %v815
      %824 = vst [vmem:[#allocation3 + $0xec] sm:$0xf] %v816
      %825 = vrot.lane.b32.xlu0 %v301, 2
      %v826 = vpop.permute.xlu0 %825
      %827 = vrot.lane.b32.xlu0 %v302, 2
      %v828 = vpop.permute.xlu0 %827
      %829 = vrot.lane.b32.xlu0 %v304, 2
      %v830 = vpop.permute.xlu0 %829
      %831 = vrot.lane.b32.xlu0 %v305, 2
      %v832 = vpop.permute.xlu0 %831
      %v833 = vrot.slane %v826, 4
      %v834 = vrot.slane %v828, 4
      %v835 = vrot.slane %v830, 4
      %v836 = vrot.slane %v832, 4
      %v837 = vsel %vm323, %v833, %v834
      %vm838 = vcmask 15360
      %v839 = vsel %vm838, %v826, %v837
      %v840 = vsel %vm838, %v828, %v834
      %v841 = vsel %vm323, %v835, %v836
      %v842 = vsel %vm838, %v830, %v841
      %v843 = vsel %vm838, %v832, %v836
      %848 = vst [vmem:[#allocation3 + $0xf0] sm:$0xff] %v839
      %849 = vst [vmem:[#allocation3 + $0xf8] sm:$0xf] %v840
      %850 = vst [vmem:[#allocation3 + $0xfc] sm:$0xff] %v842
      %851 = vst [vmem:[#allocation3 + $0x104] sm:$0xf] %v843
      %854 = vrot.lane.b32.xlu0 %v301, 110
      %v855 = vpop.permute.xlu0 %854
      %856 = vrot.lane.b32.xlu0 %v302, 110
      %v857 = vpop.permute.xlu0 %856
      %858 = vrot.lane.b32.xlu0 %v303, 110
      %v859 = vpop.permute.xlu0 %858
      %860 = vrot.lane.b32.xlu0 %v304, 110
      %v861 = vpop.permute.xlu0 %860
      %862 = vrot.lane.b32.xlu0 %v305, 110
      %v863 = vpop.permute.xlu0 %862
      %864 = vrot.lane.b32.xlu0 %v306, 110
      %v865 = vpop.permute.xlu0 %864
      %v866 = vrot.slane %v855, 4
      %v867 = vrot.slane %v857, 4
      %v868 = vrot.slane %v861, 4
      %v869 = vrot.slane %v863, 4
      %v870 = vsel %vm323, %v866, %v867
      %vm871 = vcmask 900096
      %v872 = vsel %vm871, %v870, %v857
      %v873 = vsel %vm871, %v867, %v859
      %v874 = vsel %vm323, %v868, %v869
      %v875 = vsel %vm871, %v874, %v863
      %v876 = vsel %vm871, %v869, %v865
      %881 = vst [vmem:[#allocation3 + $0x108] sm:$0xff] %v872
      %882 = vst [vmem:[#allocation3 + $0x110] sm:$0xf] %v873
      %883 = vst [vmem:[#allocation3 + $0x114] sm:$0xff] %v875
      %884 = vst [vmem:[#allocation3 + $0x11c] sm:$0xf] %v876
      %885 = vrot.lane.b32.xlu0 %v301, 109
      %v886 = vpop.permute.xlu0 %885
      %887 = vrot.lane.b32.xlu0 %v302, 109
      %v888 = vpop.permute.xlu0 %887
      %889 = vrot.lane.b32.xlu0 %v303, 109
      %v890 = vpop.permute.xlu0 %889
      %891 = vrot.lane.b32.xlu0 %v304, 109
      %v892 = vpop.permute.xlu0 %891
      %893 = vrot.lane.b32.xlu0 %v305, 109
      %v894 = vpop.permute.xlu0 %893
      %895 = vrot.lane.b32.xlu0 %v306, 109
      %v896 = vpop.permute.xlu0 %895
      %v897 = vrot.slane %v886, 4
      %v898 = vrot.slane %v888, 4
      %v899 = vrot.slane %v892, 4
      %v900 = vrot.slane %v894, 4
      %v901 = vsel %vm323, %v897, %v898
      %vm902 = vcmask 891904
      %v903 = vsel %vm902, %v901, %v888
      %v904 = vsel %vm902, %v898, %v890
      %v905 = vsel %vm323, %v899, %v900
      %v906 = vsel %vm902, %v905, %v894
      %v907 = vsel %vm902, %v900, %v896
      %912 = vst [vmem:[#allocation3 + $0x120] sm:$0xff] %v903
      %913 = vst [vmem:[#allocation3 + $0x128] sm:$0xf] %v904
      %914 = vst [vmem:[#allocation3 + $0x12c] sm:$0xff] %v906
      %915 = vst [vmem:[#allocation3 + $0x134] sm:$0xf] %v907
      %916 = vrot.lane.b32.xlu0 %v301, 108
      %v917 = vpop.permute.xlu0 %916
      %918 = vrot.lane.b32.xlu0 %v302, 108
      %v919 = vpop.permute.xlu0 %918
      %920 = vrot.lane.b32.xlu0 %v303, 108
      %v921 = vpop.permute.xlu0 %920
      %922 = vrot.lane.b32.xlu0 %v304, 108
      %v923 = vpop.permute.xlu0 %922
      %924 = vrot.lane.b32.xlu0 %v305, 108
      %v925 = vpop.permute.xlu0 %924
      %926 = vrot.lane.b32.xlu0 %v306, 108
      %v927 = vpop.permute.xlu0 %926
      %v928 = vrot.slane %v917, 4
      %v929 = vrot.slane %v919, 4
      %v930 = vrot.slane %v923, 4
      %v931 = vrot.slane %v925, 4
      %v932 = vsel %vm323, %v928, %v929
      %vm933 = vcmask 883712
      %v934 = vsel %vm933, %v932, %v919
      %v935 = vsel %vm933, %v929, %v921
      %v936 = vsel %vm323, %v930, %v931
      %v937 = vsel %vm933, %v936, %v925
      %v938 = vsel %vm933, %v931, %v927
      %943 = vst [vmem:[#allocation3 + $0x138] sm:$0xff] %v934
      %944 = vst [vmem:[#allocation3 + $0x140] sm:$0xf] %v935
      %945 = vst [vmem:[#allocation3 + $0x144] sm:$0xff] %v937
      %946 = vst [vmem:[#allocation3 + $0x14c] sm:$0xf] %v938
      %947 = vrot.lane.b32.xlu0 %v301, 107
      %v948 = vpop.permute.xlu0 %947
      %949 = vrot.lane.b32.xlu0 %v302, 107
      %v950 = vpop.permute.xlu0 %949
      %951 = vrot.lane.b32.xlu0 %v303, 107
      %v952 = vpop.permute.xlu0 %951
      %953 = vrot.lane.b32.xlu0 %v304, 107
      %v954 = vpop.permute.xlu0 %953
      %955 = vrot.lane.b32.xlu0 %v305, 107
      %v956 = vpop.permute.xlu0 %955
      %957 = vrot.lane.b32.xlu0 %v306, 107
      %v958 = vpop.permute.xlu0 %957
      %v959 = vrot.slane %v948, 4
      %v960 = vrot.slane %v950, 4
      %v961 = vrot.slane %v954, 4
      %v962 = vrot.slane %v956, 4
      %v963 = vsel %vm323, %v959, %v960
      %vm964 = vcmask 875520
      %v965 = vsel %vm964, %v963, %v950
      %v966 = vsel %vm964, %v960, %v952
      %v967 = vsel %vm323, %v961, %v962
      %v968 = vsel %vm964, %v967, %v956
      %v969 = vsel %vm964, %v962, %v958
      %974 = vst [vmem:[#allocation3 + $0x150] sm:$0xff] %v965
      %975 = vst [vmem:[#allocation3 + $0x158] sm:$0xf] %v966
      %976 = vst [vmem:[#allocation3 + $0x15c] sm:$0xff] %v968
      %977 = vst [vmem:[#allocation3 + $0x164] sm:$0xf] %v969
      %978 = vrot.lane.b32.xlu0 %v301, 106
      %v979 = vpop.permute.xlu0 %978
      %980 = vrot.lane.b32.xlu0 %v302, 106
      %v981 = vpop.permute.xlu0 %980
      %982 = vrot.lane.b32.xlu0 %v303, 106
      %v983 = vpop.permute.xlu0 %982
      %984 = vrot.lane.b32.xlu0 %v304, 106
      %v985 = vpop.permute.xlu0 %984
      %986 = vrot.lane.b32.xlu0 %v305, 106
      %v987 = vpop.permute.xlu0 %986
      %988 = vrot.lane.b32.xlu0 %v306, 106
      %v989 = vpop.permute.xlu0 %988
      %v990 = vrot.slane %v979, 4
      %v991 = vrot.slane %v981, 4
      %v992 = vrot.slane %v985, 4
      %v993 = vrot.slane %v987, 4
      %v994 = vsel %vm323, %v990, %v991
      %vm995 = vcmask 867328
      %v996 = vsel %vm995, %v994, %v981
      %v997 = vsel %vm995, %v991, %v983
      %v998 = vsel %vm323, %v992, %v993
      %v999 = vsel %vm995, %v998, %v987
      %v1000 = vsel %vm995, %v993, %v989
      %1005 = vst [vmem:[#allocation3 + $0x168] sm:$0xff] %v996
      %1006 = vst [vmem:[#allocation3 + $0x170] sm:$0xf] %v997
      %1007 = vst [vmem:[#allocation3 + $0x174] sm:$0xff] %v999
      %1008 = vst [vmem:[#allocation3 + $0x17c] sm:$0xf] %v1000
      %1009 = vrot.lane.b32.xlu0 %v301, 103
      %v1010 = vpop.permute.xlu0 %1009
      %1011 = vrot.lane.b32.xlu0 %v302, 103
      %v1012 = vpop.permute.xlu0 %1011
      %1013 = vrot.lane.b32.xlu0 %v304, 103
      %v1014 = vpop.permute.xlu0 %1013
      %1015 = vrot.lane.b32.xlu0 %v305, 103
      %v1016 = vpop.permute.xlu0 %1015
      %v1017 = vrot.slane %v1010, 4
      %v1018 = vrot.slane %v1012, 4
      %v1019 = vrot.slane %v1014, 4
      %v1020 = vrot.slane %v1016, 4
      %v1021 = vsel %vm323, %v1017, %v1018
      %vm1022 = vcmask 842752
      %v1023 = vsel %vm1022, %v1010, %v1021
      %v1024 = vsel %vm1022, %v1012, %v1018
      %v1025 = vsel %vm323, %v1019, %v1020
      %v1026 = vsel %vm1022, %v1014, %v1025
      %v1027 = vsel %vm1022, %v1016, %v1020
      %1032 = vst [vmem:[#allocation4] sm:$0xff] %v1023
      %1033 = vst [vmem:[#allocation4 + $0x8] sm:$0xf] %v1024
      %1034 = vst [vmem:[#allocation4 + $0xc] sm:$0xff] %v1026
      %1035 = vst [vmem:[#allocation4 + $0x14] sm:$0xf] %v1027
      %1036 = vrot.lane.b32.xlu0 %v301, 102
      %v1037 = vpop.permute.xlu0 %1036
      %1038 = vrot.lane.b32.xlu0 %v302, 102
      %v1039 = vpop.permute.xlu0 %1038
      %1040 = vrot.lane.b32.xlu0 %v304, 102
      %v1041 = vpop.permute.xlu0 %1040
      %1042 = vrot.lane.b32.xlu0 %v305, 102
      %v1043 = vpop.permute.xlu0 %1042
      %v1044 = vrot.slane %v1037, 4
      %v1045 = vrot.slane %v1039, 4
      %v1046 = vrot.slane %v1041, 4
      %v1047 = vrot.slane %v1043, 4
      %v1048 = vsel %vm323, %v1044, %v1045
      %vm1049 = vcmask 834560
      %v1050 = vsel %vm1049, %v1037, %v1048
      %v1051 = vsel %vm1049, %v1039, %v1045
      %v1052 = vsel %vm323, %v1046, %v1047
      %v1053 = vsel %vm1049, %v1041, %v1052
      %v1054 = vsel %vm1049, %v1043, %v1047
      %1059 = vst [vmem:[#allocation4 + $0x18] sm:$0xff] %v1050
      %1060 = vst [vmem:[#allocation4 + $0x20] sm:$0xf] %v1051
      %1061 = vst [vmem:[#allocation4 + $0x24] sm:$0xff] %v1053
      %1062 = vst [vmem:[#allocation4 + $0x2c] sm:$0xf] %v1054
      %1063 = vrot.lane.b32.xlu0 %v301, 101
      %v1064 = vpop.permute.xlu0 %1063
      %1065 = vrot.lane.b32.xlu0 %v302, 101
      %v1066 = vpop.permute.xlu0 %1065
      %1067 = vrot.lane.b32.xlu0 %v304, 101
      %v1068 = vpop.permute.xlu0 %1067
      %1069 = vrot.lane.b32.xlu0 %v305, 101
      %v1070 = vpop.permute.xlu0 %1069
      %v1071 = vrot.slane %v1064, 4
      %v1072 = vrot.slane %v1066, 4
      %v1073 = vrot.slane %v1068, 4
      %v1074 = vrot.slane %v1070, 4
      %v1075 = vsel %vm323, %v1071, %v1072
      %vm1076 = vcmask 826368
      %v1077 = vsel %vm1076, %v1064, %v1075
      %v1078 = vsel %vm1076, %v1066, %v1072
      %v1079 = vsel %vm323, %v1073, %v1074
      %v1080 = vsel %vm1076, %v1068, %v1079
      %v1081 = vsel %vm1076, %v1070, %v1074
      %1086 = vst [vmem:[#allocation4 + $0x30] sm:$0xff] %v1077
      %1087 = vst [vmem:[#allocation4 + $0x38] sm:$0xf] %v1078
      %1088 = vst [vmem:[#allocation4 + $0x3c] sm:$0xff] %v1080
      %1089 = vst [vmem:[#allocation4 + $0x44] sm:$0xf] %v1081
      %1090 = vrot.lane.b32.xlu0 %v301, 100
      %v1091 = vpop.permute.xlu0 %1090
      %1092 = vrot.lane.b32.xlu0 %v302, 100
      %v1093 = vpop.permute.xlu0 %1092
      %1094 = vrot.lane.b32.xlu0 %v304, 100
      %v1095 = vpop.permute.xlu0 %1094
      %1096 = vrot.lane.b32.xlu0 %v305, 100
      %v1097 = vpop.permute.xlu0 %1096
      %v1098 = vrot.slane %v1091, 4
      %v1099 = vrot.slane %v1093, 4
      %v1100 = vrot.slane %v1095, 4
      %v1101 = vrot.slane %v1097, 4
      %v1102 = vsel %vm323, %v1098, %v1099
      %vm1103 = vcmask 818176
      %v1104 = vsel %vm1103, %v1091, %v1102
      %v1105 = vsel %vm1103, %v1093, %v1099
      %v1106 = vsel %vm323, %v1100, %v1101
      %v1107 = vsel %vm1103, %v1095, %v1106
      %v1108 = vsel %vm1103, %v1097, %v1101
      %1113 = vst [vmem:[#allocation4 + $0x48] sm:$0xff] %v1104
      %1114 = vst [vmem:[#allocation4 + $0x50] sm:$0xf] %v1105
      %1115 = vst [vmem:[#allocation4 + $0x54] sm:$0xff] %v1107
      %1116 = vst [vmem:[#allocation4 + $0x5c] sm:$0xf] %v1108
      %1117 = vrot.lane.b32.xlu0 %v301, 99
      %v1118 = vpop.permute.xlu0 %1117
      %1119 = vrot.lane.b32.xlu0 %v302, 99
      %v1120 = vpop.permute.xlu0 %1119
      %1121 = vrot.lane.b32.xlu0 %v304, 99
      %v1122 = vpop.permute.xlu0 %1121
      %1123 = vrot.lane.b32.xlu0 %v305, 99
      %v1124 = vpop.permute.xlu0 %1123
      %v1125 = vrot.slane %v1118, 4
      %v1126 = vrot.slane %v1120, 4
      %v1127 = vrot.slane %v1122, 4
      %v1128 = vrot.slane %v1124, 4
      %v1129 = vsel %vm323, %v1125, %v1126
      %vm1130 = vcmask 809984
      %v1131 = vsel %vm1130, %v1118, %v1129
      %v1132 = vsel %vm1130, %v1120, %v1126
      %v1133 = vsel %vm323, %v1127, %v1128
      %v1134 = vsel %vm1130, %v1122, %v1133
      %v1135 = vsel %vm1130, %v1124, %v1128
      %1140 = vst [vmem:[#allocation4 + $0x60] sm:$0xff] %v1131
      %1141 = vst [vmem:[#allocation4 + $0x68] sm:$0xf] %v1132
      %1142 = vst [vmem:[#allocation4 + $0x6c] sm:$0xff] %v1134
      %1143 = vst [vmem:[#allocation4 + $0x74] sm:$0xf] %v1135
      %1144 = vrot.lane.b32.xlu0 %v301, 98
      %v1145 = vpop.permute.xlu0 %1144
      %1146 = vrot.lane.b32.xlu0 %v302, 98
      %v1147 = vpop.permute.xlu0 %1146
      %1148 = vrot.lane.b32.xlu0 %v304, 98
      %v1149 = vpop.permute.xlu0 %1148
      %1150 = vrot.lane.b32.xlu0 %v305, 98
      %v1151 = vpop.permute.xlu0 %1150
      %v1152 = vrot.slane %v1145, 4
      %v1153 = vrot.slane %v1147, 4
      %v1154 = vrot.slane %v1149, 4
      %v1155 = vrot.slane %v1151, 4
      %v1156 = vsel %vm323, %v1152, %v1153
      %vm1157 = vcmask 801792
      %v1158 = vsel %vm1157, %v1145, %v1156
      %v1159 = vsel %vm1157, %v1147, %v1153
      %v1160 = vsel %vm323, %v1154, %v1155
      %v1161 = vsel %vm1157, %v1149, %v1160
      %v1162 = vsel %vm1157, %v1151, %v1155
      %1167 = vst [vmem:[#allocation4 + $0x78] sm:$0xff] %v1158
      %1168 = vst [vmem:[#allocation4 + $0x80] sm:$0xf] %v1159
      %1169 = vst [vmem:[#allocation4 + $0x84] sm:$0xff] %v1161
      %1170 = vst [vmem:[#allocation4 + $0x8c] sm:$0xf] %v1162
      %1171 = vrot.lane.b32.xlu0 %v301, 97
      %v1172 = vpop.permute.xlu0 %1171
      %1173 = vrot.lane.b32.xlu0 %v302, 97
      %v1174 = vpop.permute.xlu0 %1173
      %1175 = vrot.lane.b32.xlu0 %v304, 97
      %v1176 = vpop.permute.xlu0 %1175
      %1177 = vrot.lane.b32.xlu0 %v305, 97
      %v1178 = vpop.permute.xlu0 %1177
      %v1179 = vrot.slane %v1172, 4
      %v1180 = vrot.slane %v1174, 4
      %v1181 = vrot.slane %v1176, 4
      %v1182 = vrot.slane %v1178, 4
      %v1183 = vsel %vm323, %v1179, %v1180
      %vm1184 = vcmask 793600
      %v1185 = vsel %vm1184, %v1172, %v1183
      %v1186 = vsel %vm1184, %v1174, %v1180
      %v1187 = vsel %vm323, %v1181, %v1182
      %v1188 = vsel %vm1184, %v1176, %v1187
      %v1189 = vsel %vm1184, %v1178, %v1182
      %1194 = vst [vmem:[#allocation4 + $0x90] sm:$0xff] %v1185
      %1195 = vst [vmem:[#allocation4 + $0x98] sm:$0xf] %v1186
      %1196 = vst [vmem:[#allocation4 + $0x9c] sm:$0xff] %v1188
      %1197 = vst [vmem:[#allocation4 + $0xa4] sm:$0xf] %v1189
      %1198 = vrot.lane.b32.xlu0 %v301, 79
      %v1199 = vpop.permute.xlu0 %1198
      %1200 = vrot.lane.b32.xlu0 %v302, 79
      %v1201 = vpop.permute.xlu0 %1200
      %1202 = vrot.lane.b32.xlu0 %v304, 79
      %v1203 = vpop.permute.xlu0 %1202
      %1204 = vrot.lane.b32.xlu0 %v305, 79
      %v1205 = vpop.permute.xlu0 %1204
      %v1206 = vrot.slane %v1199, 4
      %v1207 = vrot.slane %v1201, 4
      %v1208 = vrot.slane %v1203, 4
      %v1209 = vrot.slane %v1205, 4
      %v1210 = vsel %vm323, %v1206, %v1207
      %vm1211 = vcmask 646144
      %v1212 = vsel %vm1211, %v1199, %v1210
      %v1213 = vsel %vm1211, %v1201, %v1207
      %v1214 = vsel %vm323, %v1208, %v1209
      %v1215 = vsel %vm1211, %v1203, %v1214
      %v1216 = vsel %vm1211, %v1205, %v1209
      %1221 = vst [vmem:[#allocation4 + $0xa8] sm:$0xff] %v1212
      %1222 = vst [vmem:[#allocation4 + $0xb0] sm:$0xf] %v1213
      %1223 = vst [vmem:[#allocation4 + $0xb4] sm:$0xff] %v1215
      %1224 = vst [vmem:[#allocation4 + $0xbc] sm:$0xf] %v1216
      %1225 = vrot.lane.b32.xlu0 %v301, 73
      %v1226 = vpop.permute.xlu0 %1225
      %1227 = vrot.lane.b32.xlu0 %v302, 73
      %v1228 = vpop.permute.xlu0 %1227
      %1229 = vrot.lane.b32.xlu0 %v304, 73
      %v1230 = vpop.permute.xlu0 %1229
      %1231 = vrot.lane.b32.xlu0 %v305, 73
      %v1232 = vpop.permute.xlu0 %1231
      %v1233 = vrot.slane %v1226, 4
      %v1234 = vrot.slane %v1228, 4
      %v1235 = vrot.slane %v1230, 4
      %v1236 = vrot.slane %v1232, 4
      %v1237 = vsel %vm323, %v1233, %v1234
      %vm1238 = vcmask 596992
      %v1239 = vsel %vm1238, %v1226, %v1237
      %v1240 = vsel %vm1238, %v1228, %v1234
      %v1241 = vsel %vm323, %v1235, %v1236
      %v1242 = vsel %vm1238, %v1230, %v1241
      %v1243 = vsel %vm1238, %v1232, %v1236
      %1248 = vst [vmem:[#allocation4 + $0xc0] sm:$0xff] %v1239
      %1249 = vst [vmem:[#allocation4 + $0xc8] sm:$0xf] %v1240
      %1250 = vst [vmem:[#allocation4 + $0xcc] sm:$0xff] %v1242
      %1251 = vst [vmem:[#allocation4 + $0xd4] sm:$0xf] %v1243
      %1252 = vrot.lane.b32.xlu0 %v301, 55
      %v1253 = vpop.permute.xlu0 %1252
      %1254 = vrot.lane.b32.xlu0 %v302, 55
      %v1255 = vpop.permute.xlu0 %1254
      %1256 = vrot.lane.b32.xlu0 %v304, 55
      %v1257 = vpop.permute.xlu0 %1256
      %1258 = vrot.lane.b32.xlu0 %v305, 55
      %v1259 = vpop.permute.xlu0 %1258
      %v1260 = vrot.slane %v1253, 4
      %v1261 = vrot.slane %v1255, 4
      %v1262 = vrot.slane %v1257, 4
      %v1263 = vrot.slane %v1259, 4
      %v1264 = vsel %vm323, %v1260, %v1261
      %vm1265 = vcmask 449536
      %v1266 = vsel %vm1265, %v1253, %v1264
      %v1267 = vsel %vm1265, %v1255, %v1261
      %v1268 = vsel %vm323, %v1262, %v1263
      %v1269 = vsel %vm1265, %v1257, %v1268
      %v1270 = vsel %vm1265, %v1259, %v1263
      %1275 = vst [vmem:[#allocation4 + $0xd8] sm:$0xff] %v1266
      %1276 = vst [vmem:[#allocation4 + $0xe0] sm:$0xf] %v1267
      %1277 = vst [vmem:[#allocation4 + $0xe4] sm:$0xff] %v1269
      %1278 = vst [vmem:[#allocation4 + $0xec] sm:$0xf] %v1270
      %1279 = vrot.lane.b32.xlu0 %v301, 49
      %v1280 = vpop.permute.xlu0 %1279
      %1281 = vrot.lane.b32.xlu0 %v302, 49
      %v1282 = vpop.permute.xlu0 %1281
      %1283 = vrot.lane.b32.xlu0 %v304, 49
      %v1284 = vpop.permute.xlu0 %1283
      %1285 = vrot.lane.b32.xlu0 %v305, 49
      %v1286 = vpop.permute.xlu0 %1285
      %v1287 = vrot.slane %v1280, 4
      %v1288 = vrot.slane %v1282, 4
      %v1289 = vrot.slane %v1284, 4
      %v1290 = vrot.slane %v1286, 4
      %v1291 = vsel %vm323, %v1287, %v1288
      %vm1292 = vcmask 400384
      %v1293 = vsel %vm1292, %v1280, %v1291
      %v1294 = vsel %vm1292, %v1282, %v1288
      %v1295 = vsel %vm323, %v1289, %v1290
      %v1296 = vsel %vm1292, %v1284, %v1295
      %v1297 = vsel %vm1292, %v1286, %v1290
      %1302 = vst [vmem:[#allocation4 + $0xf0] sm:$0xff] %v1293
      %1303 = vst [vmem:[#allocation4 + $0xf8] sm:$0xf] %v1294
      %1304 = vst [vmem:[#allocation4 + $0xfc] sm:$0xff] %v1296
      %1305 = vst [vmem:[#allocation4 + $0x104] sm:$0xf] %v1297
      %1306 = vrot.lane.b32.xlu0 %v301, 31
      %v1307 = vpop.permute.xlu0 %1306
      %1308 = vrot.lane.b32.xlu0 %v302, 31
      %v1309 = vpop.permute.xlu0 %1308
      %1310 = vrot.lane.b32.xlu0 %v304, 31
      %v1311 = vpop.permute.xlu0 %1310
      %1312 = vrot.lane.b32.xlu0 %v305, 31
      %v1313 = vpop.permute.xlu0 %1312
      %v1314 = vrot.slane %v1307, 4
      %v1315 = vrot.slane %v1309, 4
      %v1316 = vrot.slane %v1311, 4
      %v1317 = vrot.slane %v1313, 4
      %v1318 = vsel %vm323, %v1314, %v1315
      %vm1319 = vcmask 252928
      %v1320 = vsel %vm1319, %v1307, %v1318
      %v1321 = vsel %vm1319, %v1309, %v1315
      %v1322 = vsel %vm323, %v1316, %v1317
      %v1323 = vsel %vm1319, %v1311, %v1322
      %v1324 = vsel %vm1319, %v1313, %v1317
      %1329 = vst [vmem:[#allocation4 + $0x108] sm:$0xff] %v1320
      %1330 = vst [vmem:[#allocation4 + $0x110] sm:$0xf] %v1321
      %1331 = vst [vmem:[#allocation4 + $0x114] sm:$0xff] %v1323
      %1332 = vst [vmem:[#allocation4 + $0x11c] sm:$0xf] %v1324
      %1333 = vrot.lane.b32.xlu0 %v301, 25
      %v1334 = vpop.permute.xlu0 %1333
      %1335 = vrot.lane.b32.xlu0 %v302, 25
      %v1336 = vpop.permute.xlu0 %1335
      %1337 = vrot.lane.b32.xlu0 %v304, 25
      %v1338 = vpop.permute.xlu0 %1337
      %1339 = vrot.lane.b32.xlu0 %v305, 25
      %v1340 = vpop.permute.xlu0 %1339
      %v1341 = vrot.slane %v1334, 4
      %v1342 = vrot.slane %v1336, 4
      %v1343 = vrot.slane %v1338, 4
      %v1344 = vrot.slane %v1340, 4
      %v1345 = vsel %vm323, %v1341, %v1342
      %vm1346 = vcmask 203776
      %v1347 = vsel %vm1346, %v1334, %v1345
      %v1348 = vsel %vm1346, %v1336, %v1342
      %v1349 = vsel %vm323, %v1343, %v1344
      %v1350 = vsel %vm1346, %v1338, %v1349
      %v1351 = vsel %vm1346, %v1340, %v1344
      %1356 = vst [vmem:[#allocation4 + $0x120] sm:$0xff] %v1347
      %1357 = vst [vmem:[#allocation4 + $0x128] sm:$0xf] %v1348
      %1358 = vst [vmem:[#allocation4 + $0x12c] sm:$0xff] %v1350
      %1359 = vst [vmem:[#allocation4 + $0x134] sm:$0xf] %v1351
      %1360 = vrot.lane.b32.xlu0 %v301, 7
      %v1361 = vpop.permute.xlu0 %1360
      %1362 = vrot.lane.b32.xlu0 %v302, 7
      %v1363 = vpop.permute.xlu0 %1362
      %1364 = vrot.lane.b32.xlu0 %v304, 7
      %v1365 = vpop.permute.xlu0 %1364
      %1366 = vrot.lane.b32.xlu0 %v305, 7
      %v1367 = vpop.permute.xlu0 %1366
      %v1368 = vrot.slane %v1361, 4
      %v1369 = vrot.slane %v1363, 4
      %v1370 = vrot.slane %v1365, 4
      %v1371 = vrot.slane %v1367, 4
      %v1372 = vsel %vm323, %v1368, %v1369
      %vm1373 = vcmask 56320
      %v1374 = vsel %vm1373, %v1361, %v1372
      %v1375 = vsel %vm1373, %v1363, %v1369
      %v1376 = vsel %vm323, %v1370, %v1371
      %v1377 = vsel %vm1373, %v1365, %v1376
      %v1378 = vsel %vm1373, %v1367, %v1371
      %1383 = vst [vmem:[#allocation4 + $0x138] sm:$0xff] %v1374
      %1384 = vst [vmem:[#allocation4 + $0x140] sm:$0xf] %v1375
      %1385 = vst [vmem:[#allocation4 + $0x144] sm:$0xff] %v1377
      %1386 = vst [vmem:[#allocation4 + $0x14c] sm:$0xf] %v1378
      %1387 = vrot.lane.b32.xlu0 %v301, 1
      %v1388 = vpop.permute.xlu0 %1387
      %1389 = vrot.lane.b32.xlu0 %v302, 1
      %v1390 = vpop.permute.xlu0 %1389
      %1391 = vrot.lane.b32.xlu0 %v304, 1
      %v1392 = vpop.permute.xlu0 %1391
      %1393 = vrot.lane.b32.xlu0 %v305, 1
      %v1394 = vpop.permute.xlu0 %1393
      %v1395 = vrot.slane %v1388, 4
      %v1396 = vrot.slane %v1390, 4
      %v1397 = vrot.slane %v1392, 4
      %v1398 = vrot.slane %v1394, 4
      %v1399 = vsel %vm323, %v1395, %v1396
      %vm1400 = vcmask 7168
      %v1401 = vsel %vm1400, %v1388, %v1399
      %v1402 = vsel %vm1400, %v1390, %v1396
      %v1403 = vsel %vm323, %v1397, %v1398
      %v1404 = vsel %vm1400, %v1392, %v1403
      %v1405 = vsel %vm1400, %v1394, %v1398
      %1410 = vst [vmem:[#allocation4 + $0x150] sm:$0xff] %v1401
      %1411 = vst [vmem:[#allocation4 + $0x158] sm:$0xf] %v1402
      %1412 = vst [vmem:[#allocation4 + $0x15c] sm:$0xff] %v1404
      %1413 = vst [vmem:[#allocation4 + $0x164] sm:$0xf] %v1405
      %1414 = vrot.lane.b32.xlu0 %v301, 111
      %v1415 = vpop.permute.xlu0 %1414
      %1416 = vrot.lane.b32.xlu0 %v302, 111
      %v1417 = vpop.permute.xlu0 %1416
      %1418 = vrot.lane.b32.xlu0 %v303, 111
      %v1419 = vpop.permute.xlu0 %1418
      %1420 = vrot.lane.b32.xlu0 %v304, 111
      %v1421 = vpop.permute.xlu0 %1420
      %1422 = vrot.lane.b32.xlu0 %v305, 111
      %v1423 = vpop.permute.xlu0 %1422
      %1424 = vrot.lane.b32.xlu0 %v306, 111
      %v1425 = vpop.permute.xlu0 %1424
      %v1426 = vrot.slane %v1415, 4
      %v1427 = vrot.slane %v1417, 4
      %v1428 = vrot.slane %v1421, 4
      %v1429 = vrot.slane %v1423, 4
      %v1430 = vsel %vm323, %v1426, %v1427
      %vm1431 = vcmask 908288
      %v1432 = vsel %vm1431, %v1430, %v1417
      %v1433 = vsel %vm1431, %v1427, %v1419
      %v1434 = vsel %vm323, %v1428, %v1429
      %v1435 = vsel %vm1431, %v1434, %v1423
      %v1436 = vsel %vm1431, %v1429, %v1425
      %1441 = vst [vmem:[#allocation4 + $0x168] sm:$0xff] %v1432
      %1442 = vst [vmem:[#allocation4 + $0x170] sm:$0xf] %v1433
      %1443 = vst [vmem:[#allocation4 + $0x174] sm:$0xff] %v1435
      %1444 = vst [vmem:[#allocation4 + $0x17c] sm:$0xf] %v1436
      %1445 = vrot.lane.b32.xlu0 %v301, 105
      %v1446 = vpop.permute.xlu0 %1445
      %1447 = vrot.lane.b32.xlu0 %v302, 105
      %v1448 = vpop.permute.xlu0 %1447
      %1449 = vrot.lane.b32.xlu0 %v303, 105
      %v1450 = vpop.permute.xlu0 %1449
      %1451 = vrot.lane.b32.xlu0 %v304, 105
      %v1452 = vpop.permute.xlu0 %1451
      %1453 = vrot.lane.b32.xlu0 %v305, 105
      %v1454 = vpop.permute.xlu0 %1453
      %1455 = vrot.lane.b32.xlu0 %v306, 105
      %v1456 = vpop.permute.xlu0 %1455
      %v1457 = vrot.slane %v1446, 4
      %v1458 = vrot.slane %v1448, 4
      %v1459 = vrot.slane %v1452, 4
      %v1460 = vrot.slane %v1454, 4
      %v1461 = vsel %vm323, %v1457, %v1458
      %vm1462 = vcmask 859136
      %v1463 = vsel %vm1462, %v1461, %v1448
      %v1464 = vsel %vm1462, %v1458, %v1450
      %v1465 = vsel %vm323, %v1459, %v1460
      %v1466 = vsel %vm1462, %v1465, %v1454
      %v1467 = vsel %vm1462, %v1460, %v1456
      %1472 = vst [vmem:[#allocation4 + $0x180] sm:$0xff] %v1463
      %1473 = vst [vmem:[#allocation4 + $0x188] sm:$0xf] %v1464
      %1474 = vst [vmem:[#allocation4 + $0x18c] sm:$0xff] %v1466
      %1475 = vst [vmem:[#allocation4 + $0x194] sm:$0xf] %v1467
      %1476 = vrot.lane.b32.xlu0 %v301, 87
      %v1477 = vpop.permute.xlu0 %1476
      %1478 = vrot.lane.b32.xlu0 %v302, 87
      %v1479 = vpop.permute.xlu0 %1478
      %1480 = vrot.lane.b32.xlu0 %v303, 87
      %v1481 = vpop.permute.xlu0 %1480
      %1482 = vrot.lane.b32.xlu0 %v304, 87
      %v1483 = vpop.permute.xlu0 %1482
      %1484 = vrot.lane.b32.xlu0 %v305, 87
      %v1485 = vpop.permute.xlu0 %1484
      %1486 = vrot.lane.b32.xlu0 %v306, 87
      %v1487 = vpop.permute.xlu0 %1486
      %v1488 = vrot.slane %v1477, 4
      %v1489 = vrot.slane %v1479, 4
      %v1490 = vrot.slane %v1483, 4
      %v1491 = vrot.slane %v1485, 4
      %v1492 = vsel %vm323, %v1488, %v1489
      %vm1493 = vcmask 711680
      %v1494 = vsel %vm1493, %v1492, %v1479
      %v1495 = vsel %vm1493, %v1489, %v1481
      %v1496 = vsel %vm323, %v1490, %v1491
      %v1497 = vsel %vm1493, %v1496, %v1485
      %v1498 = vsel %vm1493, %v1491, %v1487
      %1503 = vst [vmem:[#allocation4 + $0x198] sm:$0xff] %v1494
      %1504 = vst [vmem:[#allocation4 + $0x1a0] sm:$0xf] %v1495
      %1505 = vst [vmem:[#allocation4 + $0x1a4] sm:$0xff] %v1497
      %1506 = vst [vmem:[#allocation4 + $0x1ac] sm:$0xf] %v1498
      %1507 = vrot.lane.b32.xlu0 %v301, 86
      %v1508 = vpop.permute.xlu0 %1507
      %1509 = vrot.lane.b32.xlu0 %v302, 86
      %v1510 = vpop.permute.xlu0 %1509
      %1511 = vrot.lane.b32.xlu0 %v303, 86
      %v1512 = vpop.permute.xlu0 %1511
      %1513 = vrot.lane.b32.xlu0 %v304, 86
      %v1514 = vpop.permute.xlu0 %1513
      %1515 = vrot.lane.b32.xlu0 %v305, 86
      %v1516 = vpop.permute.xlu0 %1515
      %1517 = vrot.lane.b32.xlu0 %v306, 86
      %v1518 = vpop.permute.xlu0 %1517
      %v1519 = vrot.slane %v1508, 4
      %v1520 = vrot.slane %v1510, 4
      %v1521 = vrot.slane %v1514, 4
      %v1522 = vrot.slane %v1516, 4
      %v1523 = vsel %vm323, %v1519, %v1520
      %vm1524 = vcmask 703488
      %v1525 = vsel %vm1524, %v1523, %v1510
      %v1526 = vsel %vm1524, %v1520, %v1512
      %v1527 = vsel %vm323, %v1521, %v1522
      %v1528 = vsel %vm1524, %v1527, %v1516
      %v1529 = vsel %vm1524, %v1522, %v1518
      %1534 = vst [vmem:[#allocation4 + $0x1b0] sm:$0xff] %v1525
      %1535 = vst [vmem:[#allocation4 + $0x1b8] sm:$0xf] %v1526
      %1536 = vst [vmem:[#allocation4 + $0x1bc] sm:$0xff] %v1528
      %1537 = vst [vmem:[#allocation4 + $0x1c4] sm:$0xf] %v1529
      %1538 = vrot.lane.b32.xlu0 %v301, 85
      %v1539 = vpop.permute.xlu0 %1538
      %1540 = vrot.lane.b32.xlu0 %v302, 85
      %v1541 = vpop.permute.xlu0 %1540
      %1542 = vrot.lane.b32.xlu0 %v303, 85
      %v1543 = vpop.permute.xlu0 %1542
      %1544 = vrot.lane.b32.xlu0 %v304, 85
      %v1545 = vpop.permute.xlu0 %1544
      %1546 = vrot.lane.b32.xlu0 %v305, 85
      %v1547 = vpop.permute.xlu0 %1546
      %1548 = vrot.lane.b32.xlu0 %v306, 85
      %v1549 = vpop.permute.xlu0 %1548
      %v1550 = vrot.slane %v1539, 4
      %v1551 = vrot.slane %v1541, 4
      %v1552 = vrot.slane %v1545, 4
      %v1553 = vrot.slane %v1547, 4
      %v1554 = vsel %vm323, %v1550, %v1551
      %vm1555 = vcmask 695296
      %v1556 = vsel %vm1555, %v1554, %v1541
      %v1557 = vsel %vm1555, %v1551, %v1543
      %v1558 = vsel %vm323, %v1552, %v1553
      %v1559 = vsel %vm1555, %v1558, %v1547
      %v1560 = vsel %vm1555, %v1553, %v1549
      %1565 = vst [vmem:[#allocation4 + $0x1c8] sm:$0xff] %v1556
      %1566 = vst [vmem:[#allocation4 + $0x1d0] sm:$0xf] %v1557
      %1567 = vst [vmem:[#allocation4 + $0x1d4] sm:$0xff] %v1559
      %1568 = vst [vmem:[#allocation4 + $0x1dc] sm:$0xf] %v1560
      %1569 = vrot.lane.b32.xlu0 %v301, 84
      %v1570 = vpop.permute.xlu0 %1569
      %1571 = vrot.lane.b32.xlu0 %v302, 84
      %v1572 = vpop.permute.xlu0 %1571
      %1573 = vrot.lane.b32.xlu0 %v303, 84
      %v1574 = vpop.permute.xlu0 %1573
      %1575 = vrot.lane.b32.xlu0 %v304, 84
      %v1576 = vpop.permute.xlu0 %1575
      %1577 = vrot.lane.b32.xlu0 %v305, 84
      %v1578 = vpop.permute.xlu0 %1577
      %1579 = vrot.lane.b32.xlu0 %v306, 84
      %v1580 = vpop.permute.xlu0 %1579
      %v1581 = vrot.slane %v1570, 4
      %v1582 = vrot.slane %v1572, 4
      %v1583 = vrot.slane %v1576, 4
      %v1584 = vrot.slane %v1578, 4
      %v1585 = vsel %vm323, %v1581, %v1582
      %vm1586 = vcmask 687104
      %v1587 = vsel %vm1586, %v1585, %v1572
      %v1588 = vsel %vm1586, %v1582, %v1574
      %v1589 = vsel %vm323, %v1583, %v1584
      %v1590 = vsel %vm1586, %v1589, %v1578
      %v1591 = vsel %vm1586, %v1584, %v1580
      %1596 = vst [vmem:[#allocation4 + $0x1e0] sm:$0xff] %v1587
      %1597 = vst [vmem:[#allocation4 + $0x1e8] sm:$0xf] %v1588
      %1598 = vst [vmem:[#allocation4 + $0x1ec] sm:$0xff] %v1590
      %1599 = vst [vmem:[#allocation4 + $0x1f4] sm:$0xf] %v1591
      %1600 = vrot.lane.b32.xlu0 %v301, 83
      %v1601 = vpop.permute.xlu0 %1600
      %1602 = vrot.lane.b32.xlu0 %v302, 83
      %v1603 = vpop.permute.xlu0 %1602
      %1604 = vrot.lane.b32.xlu0 %v303, 83
      %v1605 = vpop.permute.xlu0 %1604
      %1606 = vrot.lane.b32.xlu0 %v304, 83
      %v1607 = vpop.permute.xlu0 %1606
      %1608 = vrot.lane.b32.xlu0 %v305, 83
      %v1609 = vpop.permute.xlu0 %1608
      %1610 = vrot.lane.b32.xlu0 %v306, 83
      %v1611 = vpop.permute.xlu0 %1610
      %v1612 = vrot.slane %v1601, 4
      %v1613 = vrot.slane %v1603, 4
      %v1614 = vrot.slane %v1607, 4
      %v1615 = vrot.slane %v1609, 4
      %v1616 = vsel %vm323, %v1612, %v1613
      %vm1617 = vcmask 678912
      %v1618 = vsel %vm1617, %v1616, %v1603
      %v1619 = vsel %vm1617, %v1613, %v1605
      %v1620 = vsel %vm323, %v1614, %v1615
      %v1621 = vsel %vm1617, %v1620, %v1609
      %v1622 = vsel %vm1617, %v1615, %v1611
      %1627 = vst [vmem:[#allocation4 + $0x1f8] sm:$0xff] %v1618
      %1628 = vst [vmem:[#allocation4 + $0x200] sm:$0xf] %v1619
      %1629 = vst [vmem:[#allocation4 + $0x204] sm:$0xff] %v1621
      %1630 = vst [vmem:[#allocation4 + $0x20c] sm:$0xf] %v1622
      %1631 = vrot.lane.b32.xlu0 %v301, 82
      %v1632 = vpop.permute.xlu0 %1631
      %1633 = vrot.lane.b32.xlu0 %v302, 82
      %v1634 = vpop.permute.xlu0 %1633
      %1635 = vrot.lane.b32.xlu0 %v303, 82
      %v1636 = vpop.permute.xlu0 %1635
      %1637 = vrot.lane.b32.xlu0 %v304, 82
      %v1638 = vpop.permute.xlu0 %1637
      %1639 = vrot.lane.b32.xlu0 %v305, 82
      %v1640 = vpop.permute.xlu0 %1639
      %1641 = vrot.lane.b32.xlu0 %v306, 82
      %v1642 = vpop.permute.xlu0 %1641
      %v1643 = vrot.slane %v1632, 4
      %v1644 = vrot.slane %v1634, 4
      %v1645 = vrot.slane %v1638, 4
      %v1646 = vrot.slane %v1640, 4
      %v1647 = vsel %vm323, %v1643, %v1644
      %vm1648 = vcmask 670720
      %v1649 = vsel %vm1648, %v1647, %v1634
      %v1650 = vsel %vm1648, %v1644, %v1636
      %v1651 = vsel %vm323, %v1645, %v1646
      %v1652 = vsel %vm1648, %v1651, %v1640
      %v1653 = vsel %vm1648, %v1646, %v1642
      %1658 = vst [vmem:[#allocation4 + $0x210] sm:$0xff] %v1649
      %1659 = vst [vmem:[#allocation4 + $0x218] sm:$0xf] %v1650
      %1660 = vst [vmem:[#allocation4 + $0x21c] sm:$0xff] %v1652
      %1661 = vst [vmem:[#allocation4 + $0x224] sm:$0xf] %v1653
      %1662 = vrot.lane.b32.xlu0 %v301, 81
      %v1663 = vpop.permute.xlu0 %1662
      %1664 = vrot.lane.b32.xlu0 %v302, 81
      %v1665 = vpop.permute.xlu0 %1664
      %1666 = vrot.lane.b32.xlu0 %v303, 81
      %v1667 = vpop.permute.xlu0 %1666
      %1668 = vrot.lane.b32.xlu0 %v304, 81
      %v1669 = vpop.permute.xlu0 %1668
      %1670 = vrot.lane.b32.xlu0 %v305, 81
      %v1671 = vpop.permute.xlu0 %1670
      %1672 = vrot.lane.b32.xlu0 %v306, 81
      %v1673 = vpop.permute.xlu0 %1672
      %v1674 = vrot.slane %v1663, 4
      %v1675 = vrot.slane %v1665, 4
      %v1676 = vrot.slane %v1669, 4
      %v1677 = vrot.slane %v1671, 4
      %v1678 = vsel %vm323, %v1674, %v1675
      %vm1679 = vcmask 662528
      %v1680 = vsel %vm1679, %v1678, %v1665
      %v1681 = vsel %vm1679, %v1675, %v1667
      %v1682 = vsel %vm323, %v1676, %v1677
      %v1683 = vsel %vm1679, %v1682, %v1671
      %v1684 = vsel %vm1679, %v1677, %v1673
      %1689 = vst [vmem:[#allocation4 + $0x228] sm:$0xff] %v1680
      %1690 = vst [vmem:[#allocation4 + $0x230] sm:$0xf] %v1681
      %1691 = vst [vmem:[#allocation4 + $0x234] sm:$0xff] %v1683
      %1692 = vst [vmem:[#allocation4 + $0x23c] sm:$0xf] %v1684
      %1693 = vst [vmem:[#allocation5] sm:$0xff] %v301
      %1694 = vst [vmem:[#allocation5 + $0x8] sm:$0xf] %v302
      %1695 = vst [vmem:[#allocation5 + $0xc] sm:$0xff] %v304
      %1696 = vst [vmem:[#allocation5 + $0x14] sm:$0xf] %v305
      %1697 = vrot.lane.b32.xlu0 %v301, 127
      %v1698 = vpop.permute.xlu0 %1697
      %1699 = vrot.lane.b32.xlu0 %v302, 127
      %v1700 = vpop.permute.xlu0 %1699
      %1701 = vrot.lane.b32.xlu0 %v304, 127
      %v1702 = vpop.permute.xlu0 %1701
      %1703 = vrot.lane.b32.xlu0 %v305, 127
      %v1704 = vpop.permute.xlu0 %1703
      %v1705 = vrot.slane %v1698, 4
      %v1706 = vrot.slane %v1700, 4
      %v1707 = vrot.slane %v1702, 4
      %v1708 = vrot.slane %v1704, 4
      %v1709 = vsel %vm323, %v1705, %v1706
      %vm1710 = vcmask 1039360
      %v1711 = vsel %vm1710, %v1698, %v1709
      %v1712 = vsel %vm1710, %v1700, %v1706
      %v1713 = vsel %vm323, %v1707, %v1708
      %v1714 = vsel %vm1710, %v1702, %v1713
      %v1715 = vsel %vm1710, %v1704, %v1708
      %1720 = vst [vmem:[#allocation5 + $0x18] sm:$0xff] %v1711
      %1721 = vst [vmem:[#allocation5 + $0x20] sm:$0xf] %v1712
      %1722 = vst [vmem:[#allocation5 + $0x24] sm:$0xff] %v1714
      %1723 = vst [vmem:[#allocation5 + $0x2c] sm:$0xf] %v1715
      %1724 = vrot.lane.b32.xlu0 %v301, 126
      %v1725 = vpop.permute.xlu0 %1724
      %1726 = vrot.lane.b32.xlu0 %v302, 126
      %v1727 = vpop.permute.xlu0 %1726
      %1728 = vrot.lane.b32.xlu0 %v304, 126
      %v1729 = vpop.permute.xlu0 %1728
      %1730 = vrot.lane.b32.xlu0 %v305, 126
      %v1731 = vpop.permute.xlu0 %1730
      %v1732 = vrot.slane %v1725, 4
      %v1733 = vrot.slane %v1727, 4
      %v1734 = vrot.slane %v1729, 4
      %v1735 = vrot.slane %v1731, 4
      %v1736 = vsel %vm323, %v1732, %v1733
      %vm1737 = vcmask 1031168
      %v1738 = vsel %vm1737, %v1725, %v1736
      %v1739 = vsel %vm1737, %v1727, %v1733
      %v1740 = vsel %vm323, %v1734, %v1735
      %v1741 = vsel %vm1737, %v1729, %v1740
      %v1742 = vsel %vm1737, %v1731, %v1735
      %1747 = vst [vmem:[#allocation5 + $0x30] sm:$0xff] %v1738
      %1748 = vst [vmem:[#allocation5 + $0x38] sm:$0xf] %v1739
      %1749 = vst [vmem:[#allocation5 + $0x3c] sm:$0xff] %v1741
      %1750 = vst [vmem:[#allocation5 + $0x44] sm:$0xf] %v1742
      %1751 = vrot.lane.b32.xlu0 %v301, 125
      %v1752 = vpop.permute.xlu0 %1751
      %1753 = vrot.lane.b32.xlu0 %v302, 125
      %v1754 = vpop.permute.xlu0 %1753
      %1755 = vrot.lane.b32.xlu0 %v304, 125
      %v1756 = vpop.permute.xlu0 %1755
      %1757 = vrot.lane.b32.xlu0 %v305, 125
      %v1758 = vpop.permute.xlu0 %1757
      %v1759 = vrot.slane %v1752, 4
      %v1760 = vrot.slane %v1754, 4
      %v1761 = vrot.slane %v1756, 4
      %v1762 = vrot.slane %v1758, 4
      %v1763 = vsel %vm323, %v1759, %v1760
      %vm1764 = vcmask 1022976
      %v1765 = vsel %vm1764, %v1752, %v1763
      %v1766 = vsel %vm1764, %v1754, %v1760
      %v1767 = vsel %vm323, %v1761, %v1762
      %v1768 = vsel %vm1764, %v1756, %v1767
      %v1769 = vsel %vm1764, %v1758, %v1762
      %1774 = vst [vmem:[#allocation5 + $0x48] sm:$0xff] %v1765
      %1775 = vst [vmem:[#allocation5 + $0x50] sm:$0xf] %v1766
      %1776 = vst [vmem:[#allocation5 + $0x54] sm:$0xff] %v1768
      %1777 = vst [vmem:[#allocation5 + $0x5c] sm:$0xf] %v1769
      %1778 = vrot.lane.b32.xlu0 %v301, 124
      %v1779 = vpop.permute.xlu0 %1778
      %1780 = vrot.lane.b32.xlu0 %v302, 124
      %v1781 = vpop.permute.xlu0 %1780
      %1782 = vrot.lane.b32.xlu0 %v304, 124
      %v1783 = vpop.permute.xlu0 %1782
      %1784 = vrot.lane.b32.xlu0 %v305, 124
      %v1785 = vpop.permute.xlu0 %1784
      %v1786 = vrot.slane %v1779, 4
      %v1787 = vrot.slane %v1781, 4
      %v1788 = vrot.slane %v1783, 4
      %v1789 = vrot.slane %v1785, 4
      %v1790 = vsel %vm323, %v1786, %v1787
      %vm1791 = vcmask 1014784
      %v1792 = vsel %vm1791, %v1779, %v1790
      %v1793 = vsel %vm1791, %v1781, %v1787
      %v1794 = vsel %vm323, %v1788, %v1789
      %v1795 = vsel %vm1791, %v1783, %v1794
      %v1796 = vsel %vm1791, %v1785, %v1789
      %1801 = vst [vmem:[#allocation5 + $0x60] sm:$0xff] %v1792
      %1802 = vst [vmem:[#allocation5 + $0x68] sm:$0xf] %v1793
      %1803 = vst [vmem:[#allocation5 + $0x6c] sm:$0xff] %v1795
      %1804 = vst [vmem:[#allocation5 + $0x74] sm:$0xf] %v1796
      %1805 = vrot.lane.b32.xlu0 %v301, 123
      %v1806 = vpop.permute.xlu0 %1805
      %1807 = vrot.lane.b32.xlu0 %v302, 123
      %v1808 = vpop.permute.xlu0 %1807
      %1809 = vrot.lane.b32.xlu0 %v304, 123
      %v1810 = vpop.permute.xlu0 %1809
      %1811 = vrot.lane.b32.xlu0 %v305, 123
      %v1812 = vpop.permute.xlu0 %1811
      %v1813 = vrot.slane %v1806, 4
      %v1814 = vrot.slane %v1808, 4
      %v1815 = vrot.slane %v1810, 4
      %v1816 = vrot.slane %v1812, 4
      %v1817 = vsel %vm323, %v1813, %v1814
      %vm1818 = vcmask 1006592
      %v1819 = vsel %vm1818, %v1806, %v1817
      %v1820 = vsel %vm1818, %v1808, %v1814
      %v1821 = vsel %vm323, %v1815, %v1816
      %v1822 = vsel %vm1818, %v1810, %v1821
      %v1823 = vsel %vm1818, %v1812, %v1816
      %1828 = vst [vmem:[#allocation5 + $0x78] sm:$0xff] %v1819
      %1829 = vst [vmem:[#allocation5 + $0x80] sm:$0xf] %v1820
      %1830 = vst [vmem:[#allocation5 + $0x84] sm:$0xff] %v1822
      %1831 = vst [vmem:[#allocation5 + $0x8c] sm:$0xf] %v1823
      %1832 = vrot.lane.b32.xlu0 %v301, 122
      %v1833 = vpop.permute.xlu0 %1832
      %1834 = vrot.lane.b32.xlu0 %v302, 122
      %v1835 = vpop.permute.xlu0 %1834
      %1836 = vrot.lane.b32.xlu0 %v304, 122
      %v1837 = vpop.permute.xlu0 %1836
      %1838 = vrot.lane.b32.xlu0 %v305, 122
      %v1839 = vpop.permute.xlu0 %1838
      %v1840 = vrot.slane %v1833, 4
      %v1841 = vrot.slane %v1835, 4
      %v1842 = vrot.slane %v1837, 4
      %v1843 = vrot.slane %v1839, 4
      %v1844 = vsel %vm323, %v1840, %v1841
      %vm1845 = vcmask 998400
      %v1846 = vsel %vm1845, %v1833, %v1844
      %v1847 = vsel %vm1845, %v1835, %v1841
      %v1848 = vsel %vm323, %v1842, %v1843
      %v1849 = vsel %vm1845, %v1837, %v1848
      %v1850 = vsel %vm1845, %v1839, %v1843
      %1855 = vst [vmem:[#allocation5 + $0x90] sm:$0xff] %v1846
      %1856 = vst [vmem:[#allocation5 + $0x98] sm:$0xf] %v1847
      %1857 = vst [vmem:[#allocation5 + $0x9c] sm:$0xff] %v1849
      %1858 = vst [vmem:[#allocation5 + $0xa4] sm:$0xf] %v1850
      %1859 = vrot.lane.b32.xlu0 %v301, 121
      %v1860 = vpop.permute.xlu0 %1859
      %1861 = vrot.lane.b32.xlu0 %v302, 121
      %v1862 = vpop.permute.xlu0 %1861
      %1863 = vrot.lane.b32.xlu0 %v304, 121
      %v1864 = vpop.permute.xlu0 %1863
      %1865 = vrot.lane.b32.xlu0 %v305, 121
      %v1866 = vpop.permute.xlu0 %1865
      %v1867 = vrot.slane %v1860, 4
      %v1868 = vrot.slane %v1862, 4
      %v1869 = vrot.slane %v1864, 4
      %v1870 = vrot.slane %v1866, 4
      %v1871 = vsel %vm323, %v1867, %v1868
      %vm1872 = vcmask 990208
      %v1873 = vsel %vm1872, %v1860, %v1871
      %v1874 = vsel %vm1872, %v1862, %v1868
      %v1875 = vsel %vm323, %v1869, %v1870
      %v1876 = vsel %vm1872, %v1864, %v1875
      %v1877 = vsel %vm1872, %v1866, %v1870
      %1882 = vst [vmem:[#allocation5 + $0xa8] sm:$0xff] %v1873
      %1883 = vst [vmem:[#allocation5 + $0xb0] sm:$0xf] %v1874
      %1884 = vst [vmem:[#allocation5 + $0xb4] sm:$0xff] %v1876
      %1885 = vst [vmem:[#allocation5 + $0xbc] sm:$0xf] %v1877
      %1886 = vrot.lane.b32.xlu0 %v301, 120
      %v1887 = vpop.permute.xlu0 %1886
      %1888 = vrot.lane.b32.xlu0 %v302, 120
      %v1889 = vpop.permute.xlu0 %1888
      %1890 = vrot.lane.b32.xlu0 %v304, 120
      %v1891 = vpop.permute.xlu0 %1890
      %1892 = vrot.lane.b32.xlu0 %v305, 120
      %v1893 = vpop.permute.xlu0 %1892
      %v1894 = vrot.slane %v1887, 4
      %v1895 = vrot.slane %v1889, 4
      %v1896 = vrot.slane %v1891, 4
      %v1897 = vrot.slane %v1893, 4
      %v1898 = vsel %vm323, %v1894, %v1895
      %vm1899 = vcmask 982016
      %v1900 = vsel %vm1899, %v1887, %v1898
      %v1901 = vsel %vm1899, %v1889, %v1895
      %v1902 = vsel %vm323, %v1896, %v1897
      %v1903 = vsel %vm1899, %v1891, %v1902
      %v1904 = vsel %vm1899, %v1893, %v1897
      %1909 = vst [vmem:[#allocation5 + $0xc0] sm:$0xff] %v1900
      %1910 = vst [vmem:[#allocation5 + $0xc8] sm:$0xf] %v1901
      %1911 = vst [vmem:[#allocation5 + $0xcc] sm:$0xff] %v1903
      %1912 = vst [vmem:[#allocation5 + $0xd4] sm:$0xf] %v1904
      %1913 = vrot.lane.b32.xlu0 %v301, 104
      %v1914 = vpop.permute.xlu0 %1913
      %1915 = vrot.lane.b32.xlu0 %v302, 104
      %v1916 = vpop.permute.xlu0 %1915
      %1917 = vrot.lane.b32.xlu0 %v304, 104
      %v1918 = vpop.permute.xlu0 %1917
      %1919 = vrot.lane.b32.xlu0 %v305, 104
      %v1920 = vpop.permute.xlu0 %1919
      %v1921 = vrot.slane %v1914, 4
      %v1922 = vrot.slane %v1916, 4
      %v1923 = vrot.slane %v1918, 4
      %v1924 = vrot.slane %v1920, 4
      %v1925 = vsel %vm323, %v1921, %v1922
      %vm1926 = vcmask 850944
      %v1927 = vsel %vm1926, %v1914, %v1925
      %v1928 = vsel %vm1926, %v1916, %v1922
      %v1929 = vsel %vm323, %v1923, %v1924
      %v1930 = vsel %vm1926, %v1918, %v1929
      %v1931 = vsel %vm1926, %v1920, %v1924
      %1936 = vst [vmem:[#allocation5 + $0xd8] sm:$0xff] %v1927
      %1937 = vst [vmem:[#allocation5 + $0xe0] sm:$0xf] %v1928
      %1938 = vst [vmem:[#allocation5 + $0xe4] sm:$0xff] %v1930
      %1939 = vst [vmem:[#allocation5 + $0xec] sm:$0xf] %v1931
      %1940 = vrot.lane.b32.xlu0 %v301, 96
      %v1941 = vpop.permute.xlu0 %1940
      %1942 = vrot.lane.b32.xlu0 %v302, 96
      %v1943 = vpop.permute.xlu0 %1942
      %1944 = vrot.lane.b32.xlu0 %v304, 96
      %v1945 = vpop.permute.xlu0 %1944
      %1946 = vrot.lane.b32.xlu0 %v305, 96
      %v1947 = vpop.permute.xlu0 %1946
      %v1948 = vrot.slane %v1941, 4
      %v1949 = vrot.slane %v1943, 4
      %v1950 = vrot.slane %v1945, 4
      %v1951 = vrot.slane %v1947, 4
      %v1952 = vsel %vm323, %v1948, %v1949
      %vm1953 = vcmask 785408
      %v1954 = vsel %vm1953, %v1941, %v1952
      %v1955 = vsel %vm1953, %v1943, %v1949
      %v1956 = vsel %vm323, %v1950, %v1951
      %v1957 = vsel %vm1953, %v1945, %v1956
      %v1958 = vsel %vm1953, %v1947, %v1951
      %1963 = vst [vmem:[#allocation5 + $0xf0] sm:$0xff] %v1954
      %1964 = vst [vmem:[#allocation5 + $0xf8] sm:$0xf] %v1955
      %1965 = vst [vmem:[#allocation5 + $0xfc] sm:$0xff] %v1957
      %1966 = vst [vmem:[#allocation5 + $0x104] sm:$0xf] %v1958
      %1967 = vrot.lane.b32.xlu0 %v301, 80
      %v1968 = vpop.permute.xlu0 %1967
      %1969 = vrot.lane.b32.xlu0 %v302, 80
      %v1970 = vpop.permute.xlu0 %1969
      %1971 = vrot.lane.b32.xlu0 %v304, 80
      %v1972 = vpop.permute.xlu0 %1971
      %1973 = vrot.lane.b32.xlu0 %v305, 80
      %v1974 = vpop.permute.xlu0 %1973
      %v1975 = vrot.slane %v1968, 4
      %v1976 = vrot.slane %v1970, 4
      %v1977 = vrot.slane %v1972, 4
      %v1978 = vrot.slane %v1974, 4
      %v1979 = vsel %vm323, %v1975, %v1976
      %vm1980 = vcmask 654336
      %v1981 = vsel %vm1980, %v1968, %v1979
      %v1982 = vsel %vm1980, %v1970, %v1976
      %v1983 = vsel %vm323, %v1977, %v1978
      %v1984 = vsel %vm1980, %v1972, %v1983
      %v1985 = vsel %vm1980, %v1974, %v1978
      %1990 = vst [vmem:[#allocation5 + $0x108] sm:$0xff] %v1981
      %1991 = vst [vmem:[#allocation5 + $0x110] sm:$0xf] %v1982
      %1992 = vst [vmem:[#allocation5 + $0x114] sm:$0xff] %v1984
      %1993 = vst [vmem:[#allocation5 + $0x11c] sm:$0xf] %v1985
      %1994 = vrot.lane.b32.xlu0 %v301, 72
      %v1995 = vpop.permute.xlu0 %1994
      %1996 = vrot.lane.b32.xlu0 %v302, 72
      %v1997 = vpop.permute.xlu0 %1996
      %1998 = vrot.lane.b32.xlu0 %v304, 72
      %v1999 = vpop.permute.xlu0 %1998
      %2000 = vrot.lane.b32.xlu0 %v305, 72
      %v2001 = vpop.permute.xlu0 %2000
      %v2002 = vrot.slane %v1995, 4
      %v2003 = vrot.slane %v1997, 4
      %v2004 = vrot.slane %v1999, 4
      %v2005 = vrot.slane %v2001, 4
      %v2006 = vsel %vm323, %v2002, %v2003
      %vm2007 = vcmask 588800
      %v2008 = vsel %vm2007, %v1995, %v2006
      %v2009 = vsel %vm2007, %v1997, %v2003
      %v2010 = vsel %vm323, %v2004, %v2005
      %v2011 = vsel %vm2007, %v1999, %v2010
      %v2012 = vsel %vm2007, %v2001, %v2005
      %2017 = vst [vmem:[#allocation5 + $0x120] sm:$0xff] %v2008
      %2018 = vst [vmem:[#allocation5 + $0x128] sm:$0xf] %v2009
      %2019 = vst [vmem:[#allocation5 + $0x12c] sm:$0xff] %v2011
      %2020 = vst [vmem:[#allocation5 + $0x134] sm:$0xf] %v2012
      %2021 = vrot.lane.b32.xlu0 %v301, 56
      %v2022 = vpop.permute.xlu0 %2021
      %2023 = vrot.lane.b32.xlu0 %v302, 56
      %v2024 = vpop.permute.xlu0 %2023
      %2025 = vrot.lane.b32.xlu0 %v304, 56
      %v2026 = vpop.permute.xlu0 %2025
      %2027 = vrot.lane.b32.xlu0 %v305, 56
      %v2028 = vpop.permute.xlu0 %2027
      %v2029 = vrot.slane %v2022, 4
      %v2030 = vrot.slane %v2024, 4
      %v2031 = vrot.slane %v2026, 4
      %v2032 = vrot.slane %v2028, 4
      %v2033 = vsel %vm323, %v2029, %v2030
      %vm2034 = vcmask 457728
      %v2035 = vsel %vm2034, %v2022, %v2033
      %v2036 = vsel %vm2034, %v2024, %v2030
      %v2037 = vsel %vm323, %v2031, %v2032
      %v2038 = vsel %vm2034, %v2026, %v2037
      %v2039 = vsel %vm2034, %v2028, %v2032
      %2044 = vst [vmem:[#allocation5 + $0x138] sm:$0xff] %v2035
      %2045 = vst [vmem:[#allocation5 + $0x140] sm:$0xf] %v2036
      %2046 = vst [vmem:[#allocation5 + $0x144] sm:$0xff] %v2038
      %2047 = vst [vmem:[#allocation5 + $0x14c] sm:$0xf] %v2039
      %2048 = vrot.lane.b32.xlu0 %v301, 48
      %v2049 = vpop.permute.xlu0 %2048
      %2050 = vrot.lane.b32.xlu0 %v302, 48
      %v2051 = vpop.permute.xlu0 %2050
      %2052 = vrot.lane.b32.xlu0 %v304, 48
      %v2053 = vpop.permute.xlu0 %2052
      %2054 = vrot.lane.b32.xlu0 %v305, 48
      %v2055 = vpop.permute.xlu0 %2054
      %v2056 = vrot.slane %v2049, 4
      %v2057 = vrot.slane %v2051, 4
      %v2058 = vrot.slane %v2053, 4
      %v2059 = vrot.slane %v2055, 4
      %v2060 = vsel %vm323, %v2056, %v2057
      %vm2061 = vcmask 392192
      %v2062 = vsel %vm2061, %v2049, %v2060
      %v2063 = vsel %vm2061, %v2051, %v2057
      %v2064 = vsel %vm323, %v2058, %v2059
      %v2065 = vsel %vm2061, %v2053, %v2064
      %v2066 = vsel %vm2061, %v2055, %v2059
      %2071 = vst [vmem:[#allocation5 + $0x150] sm:$0xff] %v2062
      %2072 = vst [vmem:[#allocation5 + $0x158] sm:$0xf] %v2063
      %2073 = vst [vmem:[#allocation5 + $0x15c] sm:$0xff] %v2065
      %2074 = vst [vmem:[#allocation5 + $0x164] sm:$0xf] %v2066
      %2075 = vrot.lane.b32.xlu0 %v301, 32
      %v2076 = vpop.permute.xlu0 %2075
      %2077 = vrot.lane.b32.xlu0 %v302, 32
      %v2078 = vpop.permute.xlu0 %2077
      %2079 = vrot.lane.b32.xlu0 %v304, 32
      %v2080 = vpop.permute.xlu0 %2079
      %2081 = vrot.lane.b32.xlu0 %v305, 32
      %v2082 = vpop.permute.xlu0 %2081
      %v2083 = vrot.slane %v2076, 4
      %v2084 = vrot.slane %v2078, 4
      %v2085 = vrot.slane %v2080, 4
      %v2086 = vrot.slane %v2082, 4
      %v2087 = vsel %vm323, %v2083, %v2084
      %vm2088 = vcmask 261120
      %v2089 = vsel %vm2088, %v2076, %v2087
      %v2090 = vsel %vm2088, %v2078, %v2084
      %v2091 = vsel %vm323, %v2085, %v2086
      %v2092 = vsel %vm2088, %v2080, %v2091
      %v2093 = vsel %vm2088, %v2082, %v2086
      %2098 = vst [vmem:[#allocation5 + $0x168] sm:$0xff] %v2089
      %2099 = vst [vmem:[#allocation5 + $0x170] sm:$0xf] %v2090
      %2100 = vst [vmem:[#allocation5 + $0x174] sm:$0xff] %v2092
      %2101 = vst [vmem:[#allocation5 + $0x17c] sm:$0xf] %v2093
      %2102 = vrot.lane.b32.xlu0 %v301, 24
      %v2103 = vpop.permute.xlu0 %2102
      %2104 = vrot.lane.b32.xlu0 %v302, 24
      %v2105 = vpop.permute.xlu0 %2104
      %2106 = vrot.lane.b32.xlu0 %v304, 24
      %v2107 = vpop.permute.xlu0 %2106
      %2108 = vrot.lane.b32.xlu0 %v305, 24
      %v2109 = vpop.permute.xlu0 %2108
      %v2110 = vrot.slane %v2103, 4
      %v2111 = vrot.slane %v2105, 4
      %v2112 = vrot.slane %v2107, 4
      %v2113 = vrot.slane %v2109, 4
      %v2114 = vsel %vm323, %v2110, %v2111
      %vm2115 = vcmask 195584
      %v2116 = vsel %vm2115, %v2103, %v2114
      %v2117 = vsel %vm2115, %v2105, %v2111
      %v2118 = vsel %vm323, %v2112, %v2113
      %v2119 = vsel %vm2115, %v2107, %v2118
      %v2120 = vsel %vm2115, %v2109, %v2113
      %2125 = vst [vmem:[#allocation5 + $0x180] sm:$0xff] %v2116
      %2126 = vst [vmem:[#allocation5 + $0x188] sm:$0xf] %v2117
      %2127 = vst [vmem:[#allocation5 + $0x18c] sm:$0xff] %v2119
      %2128 = vst [vmem:[#allocation5 + $0x194] sm:$0xf] %v2120
      %2129 = vrot.lane.b32.xlu0 %v301, 8
      %v2130 = vpop.permute.xlu0 %2129
      %2131 = vrot.lane.b32.xlu0 %v302, 8
      %v2132 = vpop.permute.xlu0 %2131
      %2133 = vrot.lane.b32.xlu0 %v304, 8
      %v2134 = vpop.permute.xlu0 %2133
      %2135 = vrot.lane.b32.xlu0 %v305, 8
      %v2136 = vpop.permute.xlu0 %2135
      %v2137 = vrot.slane %v2130, 4
      %v2138 = vrot.slane %v2132, 4
      %v2139 = vrot.slane %v2134, 4
      %v2140 = vrot.slane %v2136, 4
      %v2141 = vsel %vm323, %v2137, %v2138
      %vm2142 = vcmask 64512
      %v2143 = vsel %vm2142, %v2130, %v2141
      %v2144 = vsel %vm2142, %v2132, %v2138
      %v2145 = vsel %vm323, %v2139, %v2140
      %v2146 = vsel %vm2142, %v2134, %v2145
      %v2147 = vsel %vm2142, %v2136, %v2140
      %2152 = vst [vmem:[#allocation5 + $0x198] sm:$0xff] %v2143
      %2153 = vst [vmem:[#allocation5 + $0x1a0] sm:$0xf] %v2144
      %2154 = vst [vmem:[#allocation5 + $0x1a4] sm:$0xff] %v2146
      %2155 = vst [vmem:[#allocation5 + $0x1ac] sm:$0xf] %v2147
      %v2156 = vrot.slane %v301, 4
      %v2157 = vrot.slane %v302, 4
      %v2158 = vrot.slane %v304, 4
      %v2159 = vrot.slane %v305, 4
      %v2160 = vsel %vm323, %v2156, %v2157
      %v2161 = vsel %vm323, %v2158, %v2159
      %2166 = vst [vmem:[#allocation5 + $0x1b0] sm:$0xff] %v2160
      %2167 = vst [vmem:[#allocation5 + $0x1b8] sm:$0xf] %v2157
      %2168 = vst [vmem:[#allocation5 + $0x1bc] sm:$0xff] %v2161
      %2169 = vst [vmem:[#allocation5 + $0x1c4] sm:$0xf] %v2159
      %2170 = vrot.lane.b32.xlu0 %v301, 112
      %v2171 = vpop.permute.xlu0 %2170
      %2172 = vrot.lane.b32.xlu0 %v302, 112
      %v2173 = vpop.permute.xlu0 %2172
      %2174 = vrot.lane.b32.xlu0 %v303, 112
      %v2175 = vpop.permute.xlu0 %2174
      %2176 = vrot.lane.b32.xlu0 %v304, 112
      %v2177 = vpop.permute.xlu0 %2176
      %2178 = vrot.lane.b32.xlu0 %v305, 112
      %v2179 = vpop.permute.xlu0 %2178
      %2180 = vrot.lane.b32.xlu0 %v306, 112
      %v2181 = vpop.permute.xlu0 %2180
      %v2182 = vrot.slane %v2171, 4
      %v2183 = vrot.slane %v2173, 4
      %v2184 = vrot.slane %v2177, 4
      %v2185 = vrot.slane %v2179, 4
      %v2186 = vsel %vm323, %v2182, %v2183
      %vm2187 = vcmask 916480
      %v2188 = vsel %vm2187, %v2186, %v2173
      %v2189 = vsel %vm2187, %v2183, %v2175
      %v2190 = vsel %vm323, %v2184, %v2185
      %v2191 = vsel %vm2187, %v2190, %v2179
      %v2192 = vsel %vm2187, %v2185, %v2181
      %2197 = vst [vmem:[#allocation5 + $0x1c8] sm:$0xff] %v2188
      %2198 = vst [vmem:[#allocation5 + $0x1d0] sm:$0xf] %v2189
      %2199 = vst [vmem:[#allocation5 + $0x1d4] sm:$0xff] %v2191
      %2200 = vst [vmem:[#allocation5 + $0x1dc] sm:$0xf] %v2192
      %2201 = vrot.lane.b32.xlu0 %v303, 104
      %v2202 = vpop.permute.xlu0 %2201
      %2203 = vrot.lane.b32.xlu0 %v306, 104
      %v2204 = vpop.permute.xlu0 %2203
      %v2205 = vsel %vm1926, %v1925, %v1916
      %v2206 = vsel %vm1926, %v1922, %v2202
      %v2207 = vsel %vm1926, %v1929, %v1920
      %v2208 = vsel %vm1926, %v1924, %v2204
      %2213 = vst [vmem:[#allocation5 + $0x1e0] sm:$0xff] %v2205
      %2214 = vst [vmem:[#allocation5 + $0x1e8] sm:$0xf] %v2206
      %2215 = vst [vmem:[#allocation5 + $0x1ec] sm:$0xff] %v2207
      %2216 = vst [vmem:[#allocation5 + $0x1f4] sm:$0xf] %v2208
      %2217 = vrot.lane.b32.xlu0 %v301, 88
      %v2218 = vpop.permute.xlu0 %2217
      %2219 = vrot.lane.b32.xlu0 %v302, 88
      %v2220 = vpop.permute.xlu0 %2219
      %2221 = vrot.lane.b32.xlu0 %v303, 88
      %v2222 = vpop.permute.xlu0 %2221
      %2223 = vrot.lane.b32.xlu0 %v304, 88
      %v2224 = vpop.permute.xlu0 %2223
      %2225 = vrot.lane.b32.xlu0 %v305, 88
      %v2226 = vpop.permute.xlu0 %2225
      %2227 = vrot.lane.b32.xlu0 %v306, 88
      %v2228 = vpop.permute.xlu0 %2227
      %v2229 = vrot.slane %v2218, 4
      %v2230 = vrot.slane %v2220, 4
      %v2231 = vrot.slane %v2224, 4
      %v2232 = vrot.slane %v2226, 4
      %v2233 = vsel %vm323, %v2229, %v2230
      %vm2234 = vcmask 719872
      %v2235 = vsel %vm2234, %v2233, %v2220
      %v2236 = vsel %vm2234, %v2230, %v2222
      %v2237 = vsel %vm323, %v2231, %v2232
      %v2238 = vsel %vm2234, %v2237, %v2226
      %v2239 = vsel %vm2234, %v2232, %v2228
      %2244 = vst [vmem:[#allocation5 + $0x1f8] sm:$0xff] %v2235
      %2245 = vst [vmem:[#allocation5 + $0x200] sm:$0xf] %v2236
      %2246 = vst [vmem:[#allocation5 + $0x204] sm:$0xff] %v2238
      %2247 = vst [vmem:[#allocation5 + $0x20c] sm:$0xf] %v2239
      %2248 = vrot.lane.b32.xlu0 %v303, 80
      %v2249 = vpop.permute.xlu0 %2248
      %2250 = vrot.lane.b32.xlu0 %v306, 80
      %v2251 = vpop.permute.xlu0 %2250
      %v2252 = vsel %vm1980, %v1979, %v1970
      %v2253 = vsel %vm1980, %v1976, %v2249
      %v2254 = vsel %vm1980, %v1983, %v1974
      %v2255 = vsel %vm1980, %v1978, %v2251
      %2260 = vst [vmem:[#allocation5 + $0x210] sm:$0xff] %v2252
      %2261 = vst [vmem:[#allocation5 + $0x218] sm:$0xf] %v2253
      %2262 = vst [vmem:[#allocation5 + $0x21c] sm:$0xff] %v2254
      %2263 = vst [vmem:[#allocation5 + $0x224] sm:$0xf] %v2255
      %2264 = vrot.lane.b32.xlu0 %v301, 64
      %v2265 = vpop.permute.xlu0 %2264
      %2266 = vrot.lane.b32.xlu0 %v302, 64
      %v2267 = vpop.permute.xlu0 %2266
      %2268 = vrot.lane.b32.xlu0 %v303, 64
      %v2269 = vpop.permute.xlu0 %2268
      %2270 = vrot.lane.b32.xlu0 %v304, 64
      %v2271 = vpop.permute.xlu0 %2270
      %2272 = vrot.lane.b32.xlu0 %v305, 64
      %v2273 = vpop.permute.xlu0 %2272
      %2274 = vrot.lane.b32.xlu0 %v306, 64
      %v2275 = vpop.permute.xlu0 %2274
      %v2276 = vrot.slane %v2265, 4
      %v2277 = vrot.slane %v2267, 4
      %v2278 = vrot.slane %v2271, 4
      %v2279 = vrot.slane %v2273, 4
      %v2280 = vsel %vm323, %v2276, %v2277
      %vm2281 = vcmask 523264
      %v2282 = vsel %vm2281, %v2280, %v2267
      %v2283 = vsel %vm2281, %v2277, %v2269
      %v2284 = vsel %vm323, %v2278, %v2279
      %v2285 = vsel %vm2281, %v2284, %v2273
      %v2286 = vsel %vm2281, %v2279, %v2275
      %2291 = vst [vmem:[#allocation5 + $0x228] sm:$0xff] %v2282
      %2292 = vst [vmem:[#allocation5 + $0x230] sm:$0xf] %v2283
      %2293 = vst [vmem:[#allocation5 + $0x234] sm:$0xff] %v2285
      %2294 = vst [vmem:[#allocation5 + $0x23c] sm:$0xf] %v2286
      %2295 = vrot.lane.b32.xlu0 %v301, 63
      %v2296 = vpop.permute.xlu0 %2295
      %2297 = vrot.lane.b32.xlu0 %v302, 63
      %v2298 = vpop.permute.xlu0 %2297
      %2299 = vrot.lane.b32.xlu0 %v303, 63
      %v2300 = vpop.permute.xlu0 %2299
      %2301 = vrot.lane.b32.xlu0 %v304, 63
      %v2302 = vpop.permute.xlu0 %2301
      %2303 = vrot.lane.b32.xlu0 %v305, 63
      %v2304 = vpop.permute.xlu0 %2303
      %2305 = vrot.lane.b32.xlu0 %v306, 63
      %v2306 = vpop.permute.xlu0 %2305
      %v2307 = vrot.slane %v2296, 4
      %v2308 = vrot.slane %v2298, 4
      %v2309 = vrot.slane %v2302, 4
      %v2310 = vrot.slane %v2304, 4
      %v2311 = vsel %vm323, %v2307, %v2308
      %vm2312 = vcmask 515072
      %v2313 = vsel %vm2312, %v2311, %v2298
      %v2314 = vsel %vm2312, %v2308, %v2300
      %v2315 = vsel %vm323, %v2309, %v2310
      %v2316 = vsel %vm2312, %v2315, %v2304
      %v2317 = vsel %vm2312, %v2310, %v2306
      %2322 = vst [vmem:[#allocation5 + $0x240] sm:$0xff] %v2313
      %2323 = vst [vmem:[#allocation5 + $0x248] sm:$0xf] %v2314
      %2324 = vst [vmem:[#allocation5 + $0x24c] sm:$0xff] %v2316
      %2325 = vst [vmem:[#allocation5 + $0x254] sm:$0xf] %v2317
      %2326 = vrot.lane.b32.xlu0 %v301, 62
      %v2327 = vpop.permute.xlu0 %2326
      %2328 = vrot.lane.b32.xlu0 %v302, 62
      %v2329 = vpop.permute.xlu0 %2328
      %2330 = vrot.lane.b32.xlu0 %v303, 62
      %v2331 = vpop.permute.xlu0 %2330
      %2332 = vrot.lane.b32.xlu0 %v304, 62
      %v2333 = vpop.permute.xlu0 %2332
      %2334 = vrot.lane.b32.xlu0 %v305, 62
      %v2335 = vpop.permute.xlu0 %2334
      %2336 = vrot.lane.b32.xlu0 %v306, 62
      %v2337 = vpop.permute.xlu0 %2336
      %v2338 = vrot.slane %v2327, 4
      %v2339 = vrot.slane %v2329, 4
      %v2340 = vrot.slane %v2333, 4
      %v2341 = vrot.slane %v2335, 4
      %v2342 = vsel %vm323, %v2338, %v2339
      %vm2343 = vcmask 506880
      %v2344 = vsel %vm2343, %v2342, %v2329
      %v2345 = vsel %vm2343, %v2339, %v2331
      %v2346 = vsel %vm323, %v2340, %v2341
      %v2347 = vsel %vm2343, %v2346, %v2335
      %v2348 = vsel %vm2343, %v2341, %v2337
      %2353 = vst [vmem:[#allocation5 + $0x258] sm:$0xff] %v2344
      %2354 = vst [vmem:[#allocation5 + $0x260] sm:$0xf] %v2345
      %2355 = vst [vmem:[#allocation5 + $0x264] sm:$0xff] %v2347
      %2356 = vst [vmem:[#allocation5 + $0x26c] sm:$0xf] %v2348
      %2357 = vrot.lane.b32.xlu0 %v301, 61
      %v2358 = vpop.permute.xlu0 %2357
      %2359 = vrot.lane.b32.xlu0 %v302, 61
      %v2360 = vpop.permute.xlu0 %2359
      %2361 = vrot.lane.b32.xlu0 %v303, 61
      %v2362 = vpop.permute.xlu0 %2361
      %2363 = vrot.lane.b32.xlu0 %v304, 61
      %v2364 = vpop.permute.xlu0 %2363
      %2365 = vrot.lane.b32.xlu0 %v305, 61
      %v2366 = vpop.permute.xlu0 %2365
      %2367 = vrot.lane.b32.xlu0 %v306, 61
      %v2368 = vpop.permute.xlu0 %2367
      %v2369 = vrot.slane %v2358, 4
      %v2370 = vrot.slane %v2360, 4
      %v2371 = vrot.slane %v2364, 4
      %v2372 = vrot.slane %v2366, 4
      %v2373 = vsel %vm323, %v2369, %v2370
      %vm2374 = vcmask 498688
      %v2375 = vsel %vm2374, %v2373, %v2360
      %v2376 = vsel %vm2374, %v2370, %v2362
      %v2377 = vsel %vm323, %v2371, %v2372
      %v2378 = vsel %vm2374, %v2377, %v2366
      %v2379 = vsel %vm2374, %v2372, %v2368
      %2384 = vst [vmem:[#allocation5 + $0x270] sm:$0xff] %v2375
      %2385 = vst [vmem:[#allocation5 + $0x278] sm:$0xf] %v2376
      %2386 = vst [vmem:[#allocation5 + $0x27c] sm:$0xff] %v2378
      %2387 = vst [vmem:[#allocation5 + $0x284] sm:$0xf] %v2379
      %2388 = vrot.lane.b32.xlu0 %v301, 60
      %v2389 = vpop.permute.xlu0 %2388
      %2390 = vrot.lane.b32.xlu0 %v302, 60
      %v2391 = vpop.permute.xlu0 %2390
      %2392 = vrot.lane.b32.xlu0 %v303, 60
      %v2393 = vpop.permute.xlu0 %2392
      %2394 = vrot.lane.b32.xlu0 %v304, 60
      %v2395 = vpop.permute.xlu0 %2394
      %2396 = vrot.lane.b32.xlu0 %v305, 60
      %v2397 = vpop.permute.xlu0 %2396
      %2398 = vrot.lane.b32.xlu0 %v306, 60
      %v2399 = vpop.permute.xlu0 %2398
      %v2400 = vrot.slane %v2389, 4
      %v2401 = vrot.slane %v2391, 4
      %v2402 = vrot.slane %v2395, 4
      %v2403 = vrot.slane %v2397, 4
      %v2404 = vsel %vm323, %v2400, %v2401
      %vm2405 = vcmask 490496
      %v2406 = vsel %vm2405, %v2404, %v2391
      %v2407 = vsel %vm2405, %v2401, %v2393
      %v2408 = vsel %vm323, %v2402, %v2403
      %v2409 = vsel %vm2405, %v2408, %v2397
      %v2410 = vsel %vm2405, %v2403, %v2399
      %2415 = vst [vmem:[#allocation5 + $0x288] sm:$0xff] %v2406
      %2416 = vst [vmem:[#allocation5 + $0x290] sm:$0xf] %v2407
      %2417 = vst [vmem:[#allocation5 + $0x294] sm:$0xff] %v2409
      %2418 = vst [vmem:[#allocation5 + $0x29c] sm:$0xf] %v2410
      %2419 = vrot.lane.b32.xlu0 %v301, 59
      %v2420 = vpop.permute.xlu0 %2419
      %2421 = vrot.lane.b32.xlu0 %v302, 59
      %v2422 = vpop.permute.xlu0 %2421
      %2423 = vrot.lane.b32.xlu0 %v303, 59
      %v2424 = vpop.permute.xlu0 %2423
      %2425 = vrot.lane.b32.xlu0 %v304, 59
      %v2426 = vpop.permute.xlu0 %2425
      %2427 = vrot.lane.b32.xlu0 %v305, 59
      %v2428 = vpop.permute.xlu0 %2427
      %2429 = vrot.lane.b32.xlu0 %v306, 59
      %v2430 = vpop.permute.xlu0 %2429
      %v2431 = vrot.slane %v2420, 4
      %v2432 = vrot.slane %v2422, 4
      %v2433 = vrot.slane %v2426, 4
      %v2434 = vrot.slane %v2428, 4
      %v2435 = vsel %vm323, %v2431, %v2432
      %vm2436 = vcmask 482304
      %v2437 = vsel %vm2436, %v2435, %v2422
      %v2438 = vsel %vm2436, %v2432, %v2424
      %v2439 = vsel %vm323, %v2433, %v2434
      %v2440 = vsel %vm2436, %v2439, %v2428
      %v2441 = vsel %vm2436, %v2434, %v2430
      %2446 = vst [vmem:[#allocation5 + $0x2a0] sm:$0xff] %v2437
      %2447 = vst [vmem:[#allocation5 + $0x2a8] sm:$0xf] %v2438
      %2448 = vst [vmem:[#allocation5 + $0x2ac] sm:$0xff] %v2440
      %2449 = vst [vmem:[#allocation5 + $0x2b4] sm:$0xf] %v2441
      %2450 = vrot.lane.b32.xlu0 %v301, 58
      %v2451 = vpop.permute.xlu0 %2450
      %2452 = vrot.lane.b32.xlu0 %v302, 58
      %v2453 = vpop.permute.xlu0 %2452
      %2454 = vrot.lane.b32.xlu0 %v303, 58
      %v2455 = vpop.permute.xlu0 %2454
      %2456 = vrot.lane.b32.xlu0 %v304, 58
      %v2457 = vpop.permute.xlu0 %2456
      %2458 = vrot.lane.b32.xlu0 %v305, 58
      %v2459 = vpop.permute.xlu0 %2458
      %2460 = vrot.lane.b32.xlu0 %v306, 58
      %v2461 = vpop.permute.xlu0 %2460
      %v2462 = vrot.slane %v2451, 4
      %v2463 = vrot.slane %v2453, 4
      %v2464 = vrot.slane %v2457, 4
      %v2465 = vrot.slane %v2459, 4
      %v2466 = vsel %vm323, %v2462, %v2463
      %vm2467 = vcmask 474112
      %v2468 = vsel %vm2467, %v2466, %v2453
      %v2469 = vsel %vm2467, %v2463, %v2455
      %v2470 = vsel %vm323, %v2464, %v2465
      %v2471 = vsel %vm2467, %v2470, %v2459
      %v2472 = vsel %vm2467, %v2465, %v2461
      %2477 = vst [vmem:[#allocation5 + $0x2b8] sm:$0xff] %v2468
      %2478 = vst [vmem:[#allocation5 + $0x2c0] sm:$0xf] %v2469
      %2479 = vst [vmem:[#allocation5 + $0x2c4] sm:$0xff] %v2471
      %2480 = vst [vmem:[#allocation5 + $0x2cc] sm:$0xf] %v2472
      %2481 = vrot.lane.b32.xlu0 %v301, 57
      %v2482 = vpop.permute.xlu0 %2481
      %2483 = vrot.lane.b32.xlu0 %v302, 57
      %v2484 = vpop.permute.xlu0 %2483
      %2485 = vrot.lane.b32.xlu0 %v303, 57
      %v2486 = vpop.permute.xlu0 %2485
      %2487 = vrot.lane.b32.xlu0 %v304, 57
      %v2488 = vpop.permute.xlu0 %2487
      %2489 = vrot.lane.b32.xlu0 %v305, 57
      %v2490 = vpop.permute.xlu0 %2489
      %2491 = vrot.lane.b32.xlu0 %v306, 57
      %v2492 = vpop.permute.xlu0 %2491
      %v2493 = vrot.slane %v2482, 4
      %v2494 = vrot.slane %v2484, 4
      %v2495 = vrot.slane %v2488, 4
      %v2496 = vrot.slane %v2490, 4
      %v2497 = vsel %vm323, %v2493, %v2494
      %vm2498 = vcmask 465920
      %v2499 = vsel %vm2498, %v2497, %v2484
      %v2500 = vsel %vm2498, %v2494, %v2486
      %v2501 = vsel %vm323, %v2495, %v2496
      %v2502 = vsel %vm2498, %v2501, %v2490
      %v2503 = vsel %vm2498, %v2496, %v2492
      %2508 = vst [vmem:[#allocation5 + $0x2d0] sm:$0xff] %v2499
      %2509 = vst [vmem:[#allocation5 + $0x2d8] sm:$0xf] %v2500
      %2510 = vst [vmem:[#allocation5 + $0x2dc] sm:$0xff] %v2502
      %2511 = vst [vmem:[#allocation5 + $0x2e4] sm:$0xf] %v2503
      %2512 = vrot.lane.b32.xlu0 %v303, 56
      %v2513 = vpop.permute.xlu0 %2512
      %2514 = vrot.lane.b32.xlu0 %v306, 56
      %v2515 = vpop.permute.xlu0 %2514
      %v2516 = vsel %vm2034, %v2033, %v2024
      %v2517 = vsel %vm2034, %v2030, %v2513
      %v2518 = vsel %vm2034, %v2037, %v2028
      %v2519 = vsel %vm2034, %v2032, %v2515
      %2524 = vst [vmem:[#allocation5 + $0x2e8] sm:$0xff] %v2516
      %2525 = vst [vmem:[#allocation5 + $0x2f0] sm:$0xf] %v2517
      %2526 = vst [vmem:[#allocation5 + $0x2f4] sm:$0xff] %v2518
      %2527 = vst [vmem:[#allocation5 + $0x2fc] sm:$0xf] %v2519
      %v2528 = vld [vmem:[%s1] sm:$0xff]
      %v2529 = vld [vmem:[%s1 + $0x8] sm:$0xff]
      %v2530 = vld [vmem:[%s1 + $0x10] sm:$0xff]
      %v2531 = vld [vmem:[%s1 + $0x18] sm:$0xff]
      %v2532 = vld [vmem:[%s1 + $0x20] sm:$0xff]
      %v2533 = vld [vmem:[%s1 + $0x28] sm:$0xff]
      %v2534 = vld [vmem:[%s1 + $0x30] sm:$0xff]
      %v2535 = vld [vmem:[%s1 + $0x38] sm:$0xff]
      %v2536 = vld [vmem:[#allocation2] sm:$0xff]
      %v2537 = vld [vmem:[#allocation2 + $0x8] sm:$0xf]
      %v2538 = vld [vmem:[#allocation2 + $0xc] sm:$0xff]
      %v2539 = vld [vmem:[#allocation2 + $0x14] sm:$0xf]
      %v2540 = vld [vmem:[#allocation2 + $0x18] sm:$0xff]
      %v2541 = vld [vmem:[#allocation2 + $0x20] sm:$0xf]
      %v2542 = vld [vmem:[#allocation2 + $0x24] sm:$0xff]
      %v2543 = vld [vmem:[#allocation2 + $0x2c] sm:$0xf]
      %v2544 = vld [vmem:[#allocation2 + $0x30] sm:$0xff]
      %v2545 = vld [vmem:[#allocation2 + $0x38] sm:$0xf]
      %v2546 = vld [vmem:[#allocation2 + $0x3c] sm:$0xff]
      %v2547 = vld [vmem:[#allocation2 + $0x44] sm:$0xf]
      %v2548 = vld [vmem:[#allocation2 + $0x48] sm:$0xff]
      %v2549 = vld [vmem:[#allocation2 + $0x50] sm:$0xf]
      %v2550 = vld [vmem:[#allocation2 + $0x54] sm:$0xff]
      %v2551 = vld [vmem:[#allocation2 + $0x5c] sm:$0xf]
      %v2552 = vld [vmem:[#allocation2 + $0x60] sm:$0xff]
      %v2553 = vld [vmem:[#allocation2 + $0x68] sm:$0xf]
      %v2554 = vld [vmem:[#allocation2 + $0x6c] sm:$0xff]
      %v2555 = vld [vmem:[#allocation2 + $0x74] sm:$0xf]
      %v2556 = vld [vmem:[#allocation2 + $0x78] sm:$0xff]
      %v2557 = vld [vmem:[#allocation2 + $0x80] sm:$0xf]
      %v2558 = vld [vmem:[#allocation2 + $0x84] sm:$0xff]
      %v2559 = vld [vmem:[#allocation2 + $0x8c] sm:$0xf]
      %v2560 = vld [vmem:[#allocation2 + $0x90] sm:$0xff]
      %v2561 = vld [vmem:[#allocation2 + $0x98] sm:$0xf]
      %v2562 = vld [vmem:[#allocation2 + $0x9c] sm:$0xff]
      %v2563 = vld [vmem:[#allocation2 + $0xa4] sm:$0xf]
      %v2564 = vld [vmem:[#allocation2 + $0xa8] sm:$0xff]
      %v2565 = vld [vmem:[#allocation2 + $0xb0] sm:$0xf]
      %v2566 = vld [vmem:[#allocation2 + $0xb4] sm:$0xff]
      %v2567 = vld [vmem:[#allocation2 + $0xbc] sm:$0xf]
      %v2568 = vld [vmem:[#allocation2 + $0xc0] sm:$0xff]
      %v2569 = vld [vmem:[#allocation2 + $0xc8] sm:$0xf]
      %v2570 = vld [vmem:[#allocation2 + $0xcc] sm:$0xff]
      %v2571 = vld [vmem:[#allocation2 + $0xd4] sm:$0xf]
      %v2580 = vunpack.c.l.b16 %v2528
      %v2581 = vunpack.c.h.b16 %v2528
      %v2582 = vunpack.c.l.b16 %v2529
      %v2583 = vunpack.c.h.b16 %v2529
      %v2584 = vunpack.c.l.b16 %v2530
      %v2585 = vunpack.c.h.b16 %v2530
      %v2586 = vunpack.c.l.b16 %v2531
      %v2587 = vunpack.c.h.b16 %v2531
      %v2588 = vunpack.c.l.b16 %v2532
      %v2589 = vunpack.c.h.b16 %v2532
      %v2590 = vunpack.c.l.b16 %v2533
      %v2591 = vunpack.c.h.b16 %v2533
      %v2592 = vunpack.c.l.b16 %v2534
      %v2593 = vunpack.c.h.b16 %v2534
      %v2594 = vunpack.c.l.b16 %v2535
      %v2595 = vunpack.c.h.b16 %v2535
      %v2596 = vpack.c.b16 %v2582, %v2580
      %v2597 = vpack.c.b16 %v2583, %v2581
      %v2598 = vpack.c.b16 %v2586, %v2584
      %v2599 = vpack.c.b16 %v2587, %v2585
      %v2600 = vpack.c.b16 %v2590, %v2588
      %v2601 = vpack.c.b16 %v2591, %v2589
      %v2602 = vpack.c.b16 %v2594, %v2592
      %v2603 = vpack.c.b16 %v2595, %v2593
      %v2644 = vunpack.c.l.b16 %v2536
      %v2645 = vunpack.c.h.b16 %v2536
      %v2646 = vunpack.c.l.b16 %v2537
      %v2647 = vunpack.c.l.b16 %v2538
      %v2648 = vunpack.c.h.b16 %v2538
      %v2649 = vunpack.c.l.b16 %v2539
      %v2650 = vunpack.c.l.b16 %v2540
      %v2651 = vunpack.c.h.b16 %v2540
      %v2652 = vunpack.c.l.b16 %v2541
      %v2653 = vunpack.c.l.b16 %v2542
      %v2654 = vunpack.c.h.b16 %v2542
      %v2655 = vunpack.c.l.b16 %v2543
      %v2656 = vunpack.c.l.b16 %v2544
      %v2657 = vunpack.c.h.b16 %v2544
      %v2658 = vunpack.c.l.b16 %v2545
      %v2659 = vunpack.c.l.b16 %v2546
      %v2660 = vunpack.c.h.b16 %v2546
      %v2661 = vunpack.c.l.b16 %v2547
      %v2662 = vunpack.c.l.b16 %v2548
      %v2663 = vunpack.c.h.b16 %v2548
      %v2664 = vunpack.c.l.b16 %v2549
      %v2665 = vunpack.c.l.b16 %v2550
      %v2666 = vunpack.c.h.b16 %v2550
      %v2667 = vunpack.c.l.b16 %v2551
      %v2668 = vunpack.c.l.b16 %v2552
      %v2669 = vunpack.c.h.b16 %v2552
      %v2670 = vunpack.c.l.b16 %v2553
      %v2671 = vunpack.c.l.b16 %v2554
      %v2672 = vunpack.c.h.b16 %v2554
      %v2673 = vunpack.c.l.b16 %v2555
      %v2674 = vunpack.c.l.b16 %v2556
      %v2675 = vunpack.c.h.b16 %v2556
      %v2676 = vunpack.c.l.b16 %v2557
      %v2677 = vunpack.c.l.b16 %v2558
      %v2678 = vunpack.c.h.b16 %v2558
      %v2679 = vunpack.c.l.b16 %v2559
      %v2680 = vunpack.c.l.b16 %v2560
      %v2681 = vunpack.c.h.b16 %v2560
      %v2682 = vunpack.c.l.b16 %v2561
      %v2683 = vunpack.c.l.b16 %v2562
      %v2684 = vunpack.c.h.b16 %v2562
      %v2685 = vunpack.c.l.b16 %v2563
      %v2686 = vunpack.c.l.b16 %v2564
      %v2687 = vunpack.c.h.b16 %v2564
      %v2688 = vunpack.c.l.b16 %v2565
      %v2689 = vunpack.c.l.b16 %v2566
      %v2690 = vunpack.c.h.b16 %v2566
      %v2691 = vunpack.c.l.b16 %v2567
      %v2692 = vunpack.c.l.b16 %v2568
      %v2693 = vunpack.c.h.b16 %v2568
      %v2694 = vunpack.c.l.b16 %v2569
      %v2695 = vunpack.c.l.b16 %v2570
      %v2696 = vunpack.c.h.b16 %v2570
      %v2697 = vunpack.c.l.b16 %v2571
      %v2698 = vpack.c.b16 %v2647, %v2644
      %v2699 = vpack.c.b16 %v2648, %v2645
      %v2700 = vpack.c.b16 %v2649, %v2646
      %v2701 = vpack.c.b16 %v2653, %v2650
      %v2702 = vpack.c.b16 %v2654, %v2651
      %v2703 = vpack.c.b16 %v2655, %v2652
      %v2704 = vpack.c.b16 %v2659, %v2656
      %v2705 = vpack.c.b16 %v2660, %v2657
      %v2706 = vpack.c.b16 %v2661, %v2658
      %v2707 = vpack.c.b16 %v2665, %v2662
      %v2708 = vpack.c.b16 %v2666, %v2663
      %v2709 = vpack.c.b16 %v2667, %v2664
      %v2710 = vpack.c.b16 %v2671, %v2668
      %v2711 = vpack.c.b16 %v2672, %v2669
      %v2712 = vpack.c.b16 %v2673, %v2670
      %v2713 = vpack.c.b16 %v2677, %v2674
      %v2714 = vpack.c.b16 %v2678, %v2675
      %v2715 = vpack.c.b16 %v2679, %v2676
      %v2716 = vpack.c.b16 %v2683, %v2680
      %v2717 = vpack.c.b16 %v2684, %v2681
      %v2718 = vpack.c.b16 %v2685, %v2682
      %v2719 = vpack.c.b16 %v2689, %v2686
      %v2720 = vpack.c.b16 %v2690, %v2687
      %v2721 = vpack.c.b16 %v2691, %v2688
      %v2722 = vpack.c.b16 %v2695, %v2692
      %v2723 = vpack.c.b16 %v2696, %v2693
      %v2724 = vpack.c.b16 %v2697, %v2694
      %vm2752 = vcmask 130048
      %v2754 = vsel %vm2752, %v2597, 0
      %v2757 = vsel %vm2752, %v2599, 0
      %v2760 = vsel %vm2752, %v2601, 0
      %v2763 = vsel %vm2752, %v2603, 0
      %2765 = vmatpush.bf16.msra.mxu0 %v2719
      %2766 = vmatpush.bf16.msra.mxu0 %v2716
      %2767 = vmatpush.bf16.msra.mxu0 %v2713
      %2768 = vmatpush.bf16.msra.mxu0 %v2710
      %2769 = vmatpush.bf16.msra.mxu0 %v2707
      %2770 = vmatpush.bf16.msra.mxu0 %v2704
      %2771 = vmatpush.bf16.msra.mxu0 %v2701
      %2772 = vmatpush.bf16.msra.mxu0 %v2698
      %2773 = vmatmul.bf16.gmra.mxu0 %v2596
      %v2774 = vpop.f32.mrf.mxu0
      %v2775 = vadd.f32 0.0, %v2774
      %v2776 = vpop.f32.mrf.mxu0
      %v2777 = vadd.f32 0.0, %v2776
      %2778 = vmatmul.bf16.gmra.mxu0 %v2598
      %v2779 = vpop.f32.mrf.mxu0
      %v2780 = vadd.f32 0.0, %v2779
      %v2781 = vpop.f32.mrf.mxu0
      %v2782 = vadd.f32 0.0, %v2781
      %2783 = vmatmul.bf16.gmra.mxu0 %v2600
      %v2784 = vpop.f32.mrf.mxu0
      %v2785 = vadd.f32 0.0, %v2784
      %v2786 = vpop.f32.mrf.mxu0
      %v2787 = vadd.f32 0.0, %v2786
      %2788 = vmatmul.bf16.gmra.mxu0 %v2602
      %v2789 = vpop.f32.mrf.mxu0
      %v2790 = vadd.f32 0.0, %v2789
      %v2791 = vpop.f32.mrf.mxu0
      %v2792 = vadd.f32 0.0, %v2791
      %2793 = vdwg.mxu0
      %2794 = vmatpush.bf16.msra.mxu0 0
      %2795 = vmatpush.bf16.msra.mxu0 0
      %2796 = vmatpush.bf16.msra.mxu0 0
      %2797 = vmatpush.bf16.msra.mxu0 0
      %2798 = vmatpush.bf16.msra.mxu0 0
      %2799 = vmatpush.bf16.msra.mxu0 0
      %2800 = vmatpush.bf16.msra.mxu0 0
      %2801 = vmatpush.bf16.msra.mxu0 %v2722
      %2802 = vmatmul.bf16.gmra.mxu0 %v2754
      %v2803 = vpop.f32.mrf.mxu0
      %v2804 = vadd.f32 %v2775, %v2803
      %v2805 = vpop.f32.mrf.mxu0
      %v2806 = vadd.f32 %v2777, %v2805
      %2807 = vmatmul.bf16.gmra.mxu0 %v2757
      %v2808 = vpop.f32.mrf.mxu0
      %v2809 = vadd.f32 %v2780, %v2808
      %v2810 = vpop.f32.mrf.mxu0
      %v2811 = vadd.f32 %v2782, %v2810
      %2812 = vmatmul.bf16.gmra.mxu0 %v2760
      %v2813 = vpop.f32.mrf.mxu0
      %v2814 = vadd.f32 %v2785, %v2813
      %v2815 = vpop.f32.mrf.mxu0
      %v2816 = vadd.f32 %v2787, %v2815
      %2817 = vmatmul.bf16.gmra.mxu0 %v2763
      %v2818 = vpop.f32.mrf.mxu0
      %v2819 = vadd.f32 %v2790, %v2818
      %v2820 = vpop.f32.mrf.mxu0
      %v2821 = vadd.f32 %v2792, %v2820
      %2822 = vdwg.mxu0
      %2823 = vmatpush.bf16.msra.mxu0 %v2720
      %2824 = vmatpush.bf16.msra.mxu0 %v2717
      %2825 = vmatpush.bf16.msra.mxu0 %v2714
      %2826 = vmatpush.bf16.msra.mxu0 %v2711
      %2827 = vmatpush.bf16.msra.mxu0 %v2708
      %2828 = vmatpush.bf16.msra.mxu0 %v2705
      %2829 = vmatpush.bf16.msra.mxu0 %v2702
      %2830 = vmatpush.bf16.msra.mxu0 %v2699
      %2831 = vmatmul.bf16.gmra.mxu0 %v2596
      %v2832 = vpop.f32.mrf.mxu0
      %v2833 = vadd.f32 0.0, %v2832
      %v2834 = vpop.f32.mrf.mxu0
      %v2835 = vadd.f32 0.0, %v2834
      %2836 = vmatmul.bf16.gmra.mxu0 %v2598
      %v2837 = vpop.f32.mrf.mxu0
      %v2838 = vadd.f32 0.0, %v2837
      %v2839 = vpop.f32.mrf.mxu0
      %v2840 = vadd.f32 0.0, %v2839
      %2841 = vmatmul.bf16.gmra.mxu0 %v2600
      %v2842 = vpop.f32.mrf.mxu0
      %v2843 = vadd.f32 0.0, %v2842
      %v2844 = vpop.f32.mrf.mxu0
      %v2845 = vadd.f32 0.0, %v2844
      %2846 = vmatmul.bf16.gmra.mxu0 %v2602
      %v2847 = vpop.f32.mrf.mxu0
      %v2848 = vadd.f32 0.0, %v2847
      %v2849 = vpop.f32.mrf.mxu0
      %v2850 = vadd.f32 0.0, %v2849
      %2851 = vdwg.mxu0
      %2852 = vmatpush.bf16.msra.mxu0 0
      %2853 = vmatpush.bf16.msra.mxu0 0
      %2854 = vmatpush.bf16.msra.mxu0 0
      %2855 = vmatpush.bf16.msra.mxu0 0
      %2856 = vmatpush.bf16.msra.mxu0 0
      %2857 = vmatpush.bf16.msra.mxu0 0
      %2858 = vmatpush.bf16.msra.mxu0 0
      %2859 = vmatpush.bf16.msra.mxu0 %v2723
      %2860 = vmatmul.bf16.gmra.mxu0 %v2754
      %v2861 = vpop.f32.mrf.mxu0
      %v2862 = vadd.f32 %v2833, %v2861
      %v2863 = vpop.f32.mrf.mxu0
      %v2864 = vadd.f32 %v2835, %v2863
      %2865 = vmatmul.bf16.gmra.mxu0 %v2757
      %v2866 = vpop.f32.mrf.mxu0
      %v2867 = vadd.f32 %v2838, %v2866
      %v2868 = vpop.f32.mrf.mxu0
      %v2869 = vadd.f32 %v2840, %v2868
      %2870 = vmatmul.bf16.gmra.mxu0 %v2760
      %v2871 = vpop.f32.mrf.mxu0
      %v2872 = vadd.f32 %v2843, %v2871
      %v2873 = vpop.f32.mrf.mxu0
      %v2874 = vadd.f32 %v2845, %v2873
      %2875 = vmatmul.bf16.gmra.mxu0 %v2763
      %v2876 = vpop.f32.mrf.mxu0
      %v2877 = vadd.f32 %v2848, %v2876
      %v2878 = vpop.f32.mrf.mxu0
      %v2879 = vadd.f32 %v2850, %v2878
      %2880 = vdwg.mxu0
      %2881 = vmatpush.bf16.msra.mxu0 %v2721
      %2882 = vmatpush.bf16.msra.mxu0 %v2718
      %2883 = vmatpush.bf16.msra.mxu0 %v2715
      %2884 = vmatpush.bf16.msra.mxu0 %v2712
      %2885 = vmatpush.bf16.msra.mxu0 %v2709
      %2886 = vmatpush.bf16.msra.mxu0 %v2706
      %2887 = vmatpush.bf16.msra.mxu0 %v2703
      %2888 = vmatpush.bf16.msra.mxu0 %v2700
      %2889 = vmatmul.bf16.gmra.mxu0 %v2596
      %v2890 = vpop.f32.mrf.mxu0
      %v2891 = vadd.f32 0.0, %v2890
      %v2892 = vpop.f32.mrf.mxu0
      %v2893 = vadd.f32 0.0, %v2892
      %2894 = vmatmul.bf16.gmra.mxu0 %v2598
      %v2895 = vpop.f32.mrf.mxu0
      %v2896 = vadd.f32 0.0, %v2895
      %v2897 = vpop.f32.mrf.mxu0
      %v2898 = vadd.f32 0.0, %v2897
      %2899 = vmatmul.bf16.gmra.mxu0 %v2600
      %v2900 = vpop.f32.mrf.mxu0
      %v2901 = vadd.f32 0.0, %v2900
      %v2902 = vpop.f32.mrf.mxu0
      %v2903 = vadd.f32 0.0, %v2902
      %2904 = vmatmul.bf16.gmra.mxu0 %v2602
      %v2905 = vpop.f32.mrf.mxu0
      %v2906 = vadd.f32 0.0, %v2905
      %v2907 = vpop.f32.mrf.mxu0
      %v2908 = vadd.f32 0.0, %v2907
      %2909 = vdwg.mxu0
      %2910 = vmatpush.bf16.msra.mxu0 0
      %2911 = vmatpush.bf16.msra.mxu0 0
      %2912 = vmatpush.bf16.msra.mxu0 0
      %2913 = vmatpush.bf16.msra.mxu0 0
      %2914 = vmatpush.bf16.msra.mxu0 0
      %2915 = vmatpush.bf16.msra.mxu0 0
      %2916 = vmatpush.bf16.msra.mxu0 0
      %2917 = vmatpush.bf16.msra.mxu0 %v2724
      %2918 = vmatmul.bf16.gmra.mxu0 %v2754
      %v2919 = vpop.f32.mrf.mxu0
      %v2920 = vadd.f32 %v2891, %v2919
      %v2921 = vpop.f32.mrf.mxu0
      %v2922 = vadd.f32 %v2893, %v2921
      %2923 = vmatmul.bf16.gmra.mxu0 %v2757
      %v2924 = vpop.f32.mrf.mxu0
      %v2925 = vadd.f32 %v2896, %v2924
      %v2926 = vpop.f32.mrf.mxu0
      %v2927 = vadd.f32 %v2898, %v2926
      %2928 = vmatmul.bf16.gmra.mxu0 %v2760
      %v2929 = vpop.f32.mrf.mxu0
      %v2930 = vadd.f32 %v2901, %v2929
      %v2931 = vpop.f32.mrf.mxu0
      %v2932 = vadd.f32 %v2903, %v2931
      %2933 = vmatmul.bf16.gmra.mxu0 %v2763
      %v2934 = vpop.f32.mrf.mxu0
      %v2935 = vadd.f32 %v2906, %v2934
      %v2936 = vpop.f32.mrf.mxu0
      %v2937 = vadd.f32 %v2908, %v2936
      %2938 = vdwg.mxu0
      %v2939 = vld [vmem:[%s2] sm:$0xff]
      %v2940 = vld [vmem:[%s2 + $0x8] sm:$0xff]
      %v2941 = vld [vmem:[%s2 + $0x10] sm:$0xff]
      %v2942 = vld [vmem:[%s2 + $0x18] sm:$0xff]
      %v2943 = vld [vmem:[%s2 + $0x20] sm:$0xff]
      %v2944 = vld [vmem:[%s2 + $0x28] sm:$0xff]
      %v2945 = vld [vmem:[#allocation3] sm:$0xff]
      %v2946 = vld [vmem:[#allocation3 + $0x8] sm:$0xf]
      %v2947 = vld [vmem:[#allocation3 + $0xc] sm:$0xff]
      %v2948 = vld [vmem:[#allocation3 + $0x14] sm:$0xf]
      %v2949 = vld [vmem:[#allocation3 + $0x18] sm:$0xff]
      %v2950 = vld [vmem:[#allocation3 + $0x20] sm:$0xf]
      %v2951 = vld [vmem:[#allocation3 + $0x24] sm:$0xff]
      %v2952 = vld [vmem:[#allocation3 + $0x2c] sm:$0xf]
      %v2953 = vld [vmem:[#allocation3 + $0x30] sm:$0xff]
      %v2954 = vld [vmem:[#allocation3 + $0x38] sm:$0xf]
      %v2955 = vld [vmem:[#allocation3 + $0x3c] sm:$0xff]
      %v2956 = vld [vmem:[#allocation3 + $0x44] sm:$0xf]
      %v2957 = vld [vmem:[#allocation3 + $0x48] sm:$0xff]
      %v2958 = vld [vmem:[#allocation3 + $0x50] sm:$0xf]
      %v2959 = vld [vmem:[#allocation3 + $0x54] sm:$0xff]
      %v2960 = vld [vmem:[#allocation3 + $0x5c] sm:$0xf]
      %v2961 = vld [vmem:[#allocation3 + $0x60] sm:$0xff]
      %v2962 = vld [vmem:[#allocation3 + $0x68] sm:$0xf]
      %v2963 = vld [vmem:[#allocation3 + $0x6c] sm:$0xff]
      %v2964 = vld [vmem:[#allocation3 + $0x74] sm:$0xf]
      %v2965 = vld [vmem:[#allocation3 + $0x78] sm:$0xff]
      %v2966 = vld [vmem:[#allocation3 + $0x80] sm:$0xf]
      %v2967 = vld [vmem:[#allocation3 + $0x84] sm:$0xff]
      %v2968 = vld [vmem:[#allocation3 + $0x8c] sm:$0xf]
      %v2969 = vld [vmem:[#allocation3 + $0x90] sm:$0xff]
      %v2970 = vld [vmem:[#allocation3 + $0x98] sm:$0xf]
      %v2971 = vld [vmem:[#allocation3 + $0x9c] sm:$0xff]
      %v2972 = vld [vmem:[#allocation3 + $0xa4] sm:$0xf]
      %v2973 = vld [vmem:[#allocation3 + $0xa8] sm:$0xff]
      %v2974 = vld [vmem:[#allocation3 + $0xb0] sm:$0xf]
      %v2975 = vld [vmem:[#allocation3 + $0xb4] sm:$0xff]
      %v2976 = vld [vmem:[#allocation3 + $0xbc] sm:$0xf]
      %v2977 = vld [vmem:[#allocation3 + $0xc0] sm:$0xff]
      %v2978 = vld [vmem:[#allocation3 + $0xc8] sm:$0xf]
      %v2979 = vld [vmem:[#allocation3 + $0xcc] sm:$0xff]
      %v2980 = vld [vmem:[#allocation3 + $0xd4] sm:$0xf]
      %v2981 = vld [vmem:[#allocation3 + $0xd8] sm:$0xff]
      %v2982 = vld [vmem:[#allocation3 + $0xe0] sm:$0xf]
      %v2983 = vld [vmem:[#allocation3 + $0xe4] sm:$0xff]
      %v2984 = vld [vmem:[#allocation3 + $0xec] sm:$0xf]
      %v2985 = vld [vmem:[#allocation3 + $0xf0] sm:$0xff]
      %v2986 = vld [vmem:[#allocation3 + $0xf8] sm:$0xf]
      %v2987 = vld [vmem:[#allocation3 + $0xfc] sm:$0xff]
      %v2988 = vld [vmem:[#allocation3 + $0x104] sm:$0xf]
      %v2989 = vld [vmem:[#allocation3 + $0x108] sm:$0xff]
      %v2990 = vld [vmem:[#allocation3 + $0x110] sm:$0xf]
      %v2991 = vld [vmem:[#allocation3 + $0x114] sm:$0xff]
      %v2992 = vld [vmem:[#allocation3 + $0x11c] sm:$0xf]
      %v2993 = vld [vmem:[#allocation3 + $0x120] sm:$0xff]
      %v2994 = vld [vmem:[#allocation3 + $0x128] sm:$0xf]
      %v2995 = vld [vmem:[#allocation3 + $0x12c] sm:$0xff]
      %v2996 = vld [vmem:[#allocation3 + $0x134] sm:$0xf]
      %v2997 = vld [vmem:[#allocation3 + $0x138] sm:$0xff]
      %v2998 = vld [vmem:[#allocation3 + $0x140] sm:$0xf]
      %v2999 = vld [vmem:[#allocation3 + $0x144] sm:$0xff]
      %v3000 = vld [vmem:[#allocation3 + $0x14c] sm:$0xf]
      %v3001 = vld [vmem:[#allocation3 + $0x150] sm:$0xff]
      %v3002 = vld [vmem:[#allocation3 + $0x158] sm:$0xf]
      %v3003 = vld [vmem:[#allocation3 + $0x15c] sm:$0xff]
      %v3004 = vld [vmem:[#allocation3 + $0x164] sm:$0xf]
      %v3005 = vld [vmem:[#allocation3 + $0x168] sm:$0xff]
      %v3006 = vld [vmem:[#allocation3 + $0x170] sm:$0xf]
      %v3007 = vld [vmem:[#allocation3 + $0x174] sm:$0xff]
      %v3008 = vld [vmem:[#allocation3 + $0x17c] sm:$0xf]
      %v3015 = vunpack.c.l.b16 %v2939
      %v3016 = vunpack.c.h.b16 %v2939
      %v3017 = vunpack.c.l.b16 %v2940
      %v3018 = vunpack.c.h.b16 %v2940
      %v3019 = vunpack.c.l.b16 %v2941
      %v3020 = vunpack.c.h.b16 %v2941
      %v3021 = vunpack.c.l.b16 %v2942
      %v3022 = vunpack.c.h.b16 %v2942
      %v3023 = vunpack.c.l.b16 %v2943
      %v3024 = vunpack.c.h.b16 %v2943
      %v3025 = vunpack.c.l.b16 %v2944
      %v3026 = vunpack.c.h.b16 %v2944
      %v3027 = vpack.c.b16 %v3017, %v3015
      %v3028 = vpack.c.b16 %v3018, %v3016
      %v3029 = vpack.c.b16 %v3021, %v3019
      %v3030 = vpack.c.b16 %v3022, %v3020
      %v3031 = vpack.c.b16 %v3025, %v3023
      %v3032 = vpack.c.b16 %v3026, %v3024
      %v3103 = vunpack.c.l.b16 %v2945
      %v3104 = vunpack.c.h.b16 %v2945
      %v3105 = vunpack.c.l.b16 %v2946
      %v3106 = vunpack.c.l.b16 %v2947
      %v3107 = vunpack.c.h.b16 %v2947
      %v3108 = vunpack.c.l.b16 %v2948
      %v3109 = vunpack.c.l.b16 %v2949
      %v3110 = vunpack.c.h.b16 %v2949
      %v3111 = vunpack.c.l.b16 %v2950
      %v3112 = vunpack.c.l.b16 %v2951
      %v3113 = vunpack.c.h.b16 %v2951
      %v3114 = vunpack.c.l.b16 %v2952
      %v3115 = vunpack.c.l.b16 %v2953
      %v3116 = vunpack.c.h.b16 %v2953
      %v3117 = vunpack.c.l.b16 %v2954
      %v3118 = vunpack.c.l.b16 %v2955
      %v3119 = vunpack.c.h.b16 %v2955
      %v3120 = vunpack.c.l.b16 %v2956
      %v3121 = vunpack.c.l.b16 %v2957
      %v3122 = vunpack.c.h.b16 %v2957
      %v3123 = vunpack.c.l.b16 %v2958
      %v3124 = vunpack.c.l.b16 %v2959
      %v3125 = vunpack.c.h.b16 %v2959
      %v3126 = vunpack.c.l.b16 %v2960
      %v3127 = vunpack.c.l.b16 %v2961
      %v3128 = vunpack.c.h.b16 %v2961
      %v3129 = vunpack.c.l.b16 %v2962
      %v3130 = vunpack.c.l.b16 %v2963
      %v3131 = vunpack.c.h.b16 %v2963
      %v3132 = vunpack.c.l.b16 %v2964
      %v3133 = vunpack.c.l.b16 %v2965
      %v3134 = vunpack.c.h.b16 %v2965
      %v3135 = vunpack.c.l.b16 %v2966
      %v3136 = vunpack.c.l.b16 %v2967
      %v3137 = vunpack.c.h.b16 %v2967
      %v3138 = vunpack.c.l.b16 %v2968
      %v3139 = vunpack.c.l.b16 %v2969
      %v3140 = vunpack.c.h.b16 %v2969
      %v3141 = vunpack.c.l.b16 %v2970
      %v3142 = vunpack.c.l.b16 %v2971
      %v3143 = vunpack.c.h.b16 %v2971
      %v3144 = vunpack.c.l.b16 %v2972
      %v3145 = vunpack.c.l.b16 %v2973
      %v3146 = vunpack.c.h.b16 %v2973
      %v3147 = vunpack.c.l.b16 %v2974
      %v3148 = vunpack.c.l.b16 %v2975
      %v3149 = vunpack.c.h.b16 %v2975
      %v3150 = vunpack.c.l.b16 %v2976
      %v3151 = vunpack.c.l.b16 %v2977
      %v3152 = vunpack.c.h.b16 %v2977
      %v3153 = vunpack.c.l.b16 %v2978
      %v3154 = vunpack.c.l.b16 %v2979
      %v3155 = vunpack.c.h.b16 %v2979
      %v3156 = vunpack.c.l.b16 %v2980
      %v3157 = vunpack.c.l.b16 %v2981
      %v3158 = vunpack.c.h.b16 %v2981
      %v3159 = vunpack.c.l.b16 %v2982
      %v3160 = vunpack.c.l.b16 %v2983
      %v3161 = vunpack.c.h.b16 %v2983
      %v3162 = vunpack.c.l.b16 %v2984
      %v3163 = vunpack.c.l.b16 %v2985
      %v3164 = vunpack.c.h.b16 %v2985
      %v3165 = vunpack.c.l.b16 %v2986
      %v3166 = vunpack.c.l.b16 %v2987
      %v3167 = vunpack.c.h.b16 %v2987
      %v3168 = vunpack.c.l.b16 %v2988
      %v3169 = vunpack.c.l.b16 %v2989
      %v3170 = vunpack.c.h.b16 %v2989
      %v3171 = vunpack.c.l.b16 %v2990
      %v3172 = vunpack.c.l.b16 %v2991
      %v3173 = vunpack.c.h.b16 %v2991
      %v3174 = vunpack.c.l.b16 %v2992
      %v3175 = vunpack.c.l.b16 %v2993
      %v3176 = vunpack.c.h.b16 %v2993
      %v3177 = vunpack.c.l.b16 %v2994
      %v3178 = vunpack.c.l.b16 %v2995
      %v3179 = vunpack.c.h.b16 %v2995
      %v3180 = vunpack.c.l.b16 %v2996
      %v3181 = vunpack.c.l.b16 %v2997
      %v3182 = vunpack.c.h.b16 %v2997
      %v3183 = vunpack.c.l.b16 %v2998
      %v3184 = vunpack.c.l.b16 %v2999
      %v3185 = vunpack.c.h.b16 %v2999
      %v3186 = vunpack.c.l.b16 %v3000
      %v3187 = vunpack.c.l.b16 %v3001
      %v3188 = vunpack.c.h.b16 %v3001
      %v3189 = vunpack.c.l.b16 %v3002
      %v3190 = vunpack.c.l.b16 %v3003
      %v3191 = vunpack.c.h.b16 %v3003
      %v3192 = vunpack.c.l.b16 %v3004
      %v3193 = vunpack.c.l.b16 %v3005
      %v3194 = vunpack.c.h.b16 %v3005
      %v3195 = vunpack.c.l.b16 %v3006
      %v3196 = vunpack.c.l.b16 %v3007
      %v3197 = vunpack.c.h.b16 %v3007
      %v3198 = vunpack.c.l.b16 %v3008
      %v3199 = vpack.c.b16 %v3106, %v3103
      %v3200 = vpack.c.b16 %v3107, %v3104
      %v3201 = vpack.c.b16 %v3108, %v3105
      %v3202 = vpack.c.b16 %v3112, %v3109
      %v3203 = vpack.c.b16 %v3113, %v3110
      %v3204 = vpack.c.b16 %v3114, %v3111
      %v3205 = vpack.c.b16 %v3118, %v3115
      %v3206 = vpack.c.b16 %v3119, %v3116
      %v3207 = vpack.c.b16 %v3120, %v3117
      %v3208 = vpack.c.b16 %v3124, %v3121
      %v3209 = vpack.c.b16 %v3125, %v3122
      %v3210 = vpack.c.b16 %v3126, %v3123
      %v3211 = vpack.c.b16 %v3130, %v3127
      %v3212 = vpack.c.b16 %v3131, %v3128
      %v3213 = vpack.c.b16 %v3132, %v3129
      %v3214 = vpack.c.b16 %v3136, %v3133
      %v3215 = vpack.c.b16 %v3137, %v3134
      %v3216 = vpack.c.b16 %v3138, %v3135
      %v3217 = vpack.c.b16 %v3142, %v3139
      %v3218 = vpack.c.b16 %v3143, %v3140
      %v3219 = vpack.c.b16 %v3144, %v3141
      %v3220 = vpack.c.b16 %v3148, %v3145
      %v3221 = vpack.c.b16 %v3149, %v3146
      %v3222 = vpack.c.b16 %v3150, %v3147
      %v3223 = vpack.c.b16 %v3154, %v3151
      %v3224 = vpack.c.b16 %v3155, %v3152
      %v3225 = vpack.c.b16 %v3156, %v3153
      %v3226 = vpack.c.b16 %v3160, %v3157
      %v3227 = vpack.c.b16 %v3161, %v3158
      %v3228 = vpack.c.b16 %v3162, %v3159
      %v3229 = vpack.c.b16 %v3166, %v3163
      %v3230 = vpack.c.b16 %v3167, %v3164
      %v3231 = vpack.c.b16 %v3168, %v3165
      %v3232 = vpack.c.b16 %v3172, %v3169
      %v3233 = vpack.c.b16 %v3173, %v3170
      %v3234 = vpack.c.b16 %v3174, %v3171
      %v3235 = vpack.c.b16 %v3178, %v3175
      %v3236 = vpack.c.b16 %v3179, %v3176
      %v3237 = vpack.c.b16 %v3180, %v3177
      %v3238 = vpack.c.b16 %v3184, %v3181
      %v3239 = vpack.c.b16 %v3185, %v3182
      %v3240 = vpack.c.b16 %v3186, %v3183
      %v3241 = vpack.c.b16 %v3190, %v3187
      %v3242 = vpack.c.b16 %v3191, %v3188
      %v3243 = vpack.c.b16 %v3192, %v3189
      %v3244 = vpack.c.b16 %v3196, %v3193
      %v3245 = vpack.c.b16 %v3197, %v3194
      %v3246 = vpack.c.b16 %v3198, %v3195
      %3295 = vmatpush.bf16.msra.mxu0 %v3220
      %3296 = vmatpush.bf16.msra.mxu0 %v3217
      %3297 = vmatpush.bf16.msra.mxu0 %v3214
      %3298 = vmatpush.bf16.msra.mxu0 %v3211
      %3299 = vmatpush.bf16.msra.mxu0 %v3208
      %3300 = vmatpush.bf16.msra.mxu0 %v3205
      %3301 = vmatpush.bf16.msra.mxu0 %v3202
      %3302 = vmatpush.bf16.msra.mxu0 %v3199
      %3303 = vmatmul.bf16.gmra.mxu0 %v3027
      %v3304 = vpop.f32.mrf.mxu0
      %v3305 = vadd.f32 0.0, %v3304
      %v3306 = vpop.f32.mrf.mxu0
      %v3307 = vadd.f32 0.0, %v3306
      %3308 = vmatmul.bf16.gmra.mxu0 %v3029
      %v3309 = vpop.f32.mrf.mxu0
      %v3310 = vadd.f32 0.0, %v3309
      %v3311 = vpop.f32.mrf.mxu0
      %v3312 = vadd.f32 0.0, %v3311
      %3313 = vmatmul.bf16.gmra.mxu0 %v3031
      %v3314 = vpop.f32.mrf.mxu0
      %v3315 = vadd.f32 0.0, %v3314
      %v3316 = vpop.f32.mrf.mxu0
      %v3317 = vadd.f32 0.0, %v3316
      %3318 = vdwg.mxu0
      %3319 = vmatpush.bf16.msra.mxu0 %v3244
      %3320 = vmatpush.bf16.msra.mxu0 %v3241
      %3321 = vmatpush.bf16.msra.mxu0 %v3238
      %3322 = vmatpush.bf16.msra.mxu0 %v3235
      %3323 = vmatpush.bf16.msra.mxu0 %v3232
      %3324 = vmatpush.bf16.msra.mxu0 %v3229
      %3325 = vmatpush.bf16.msra.mxu0 %v3226
      %3326 = vmatpush.bf16.msra.mxu0 %v3223
      %3327 = vmatmul.bf16.gmra.mxu0 %v3028
      %v3328 = vpop.f32.mrf.mxu0
      %v3329 = vadd.f32 %v3305, %v3328
      %v3330 = vpop.f32.mrf.mxu0
      %v3331 = vadd.f32 %v3307, %v3330
      %3332 = vmatmul.bf16.gmra.mxu0 %v3030
      %v3333 = vpop.f32.mrf.mxu0
      %v3334 = vadd.f32 %v3310, %v3333
      %v3335 = vpop.f32.mrf.mxu0
      %v3336 = vadd.f32 %v3312, %v3335
      %3337 = vmatmul.bf16.gmra.mxu0 %v3032
      %v3338 = vpop.f32.mrf.mxu0
      %v3339 = vadd.f32 %v3315, %v3338
      %v3340 = vpop.f32.mrf.mxu0
      %v3341 = vadd.f32 %v3317, %v3340
      %3342 = vdwg.mxu0
      %3343 = vmatpush.bf16.msra.mxu0 %v3221
      %3344 = vmatpush.bf16.msra.mxu0 %v3218
      %3345 = vmatpush.bf16.msra.mxu0 %v3215
      %3346 = vmatpush.bf16.msra.mxu0 %v3212
      %3347 = vmatpush.bf16.msra.mxu0 %v3209
      %3348 = vmatpush.bf16.msra.mxu0 %v3206
      %3349 = vmatpush.bf16.msra.mxu0 %v3203
      %3350 = vmatpush.bf16.msra.mxu0 %v3200
      %3351 = vmatmul.bf16.gmra.mxu0 %v3027
      %v3352 = vpop.f32.mrf.mxu0
      %v3353 = vadd.f32 0.0, %v3352
      %v3354 = vpop.f32.mrf.mxu0
      %v3355 = vadd.f32 0.0, %v3354
      %3356 = vmatmul.bf16.gmra.mxu0 %v3029
      %v3357 = vpop.f32.mrf.mxu0
      %v3358 = vadd.f32 0.0, %v3357
      %v3359 = vpop.f32.mrf.mxu0
      %v3360 = vadd.f32 0.0, %v3359
      %3361 = vmatmul.bf16.gmra.mxu0 %v3031
      %v3362 = vpop.f32.mrf.mxu0
      %v3363 = vadd.f32 0.0, %v3362
      %v3364 = vpop.f32.mrf.mxu0
      %v3365 = vadd.f32 0.0, %v3364
      %3366 = vdwg.mxu0
      %3367 = vmatpush.bf16.msra.mxu0 %v3245
      %3368 = vmatpush.bf16.msra.mxu0 %v3242
      %3369 = vmatpush.bf16.msra.mxu0 %v3239
      %3370 = vmatpush.bf16.msra.mxu0 %v3236
      %3371 = vmatpush.bf16.msra.mxu0 %v3233
      %3372 = vmatpush.bf16.msra.mxu0 %v3230
      %3373 = vmatpush.bf16.msra.mxu0 %v3227
      %3374 = vmatpush.bf16.msra.mxu0 %v3224
      %3375 = vmatmul.bf16.gmra.mxu0 %v3028
      %v3376 = vpop.f32.mrf.mxu0
      %v3377 = vadd.f32 %v3353, %v3376
      %v3378 = vpop.f32.mrf.mxu0
      %v3379 = vadd.f32 %v3355, %v3378
      %3380 = vmatmul.bf16.gmra.mxu0 %v3030
      %v3381 = vpop.f32.mrf.mxu0
      %v3382 = vadd.f32 %v3358, %v3381
      %v3383 = vpop.f32.mrf.mxu0
      %v3384 = vadd.f32 %v3360, %v3383
      %3385 = vmatmul.bf16.gmra.mxu0 %v3032
      %v3386 = vpop.f32.mrf.mxu0
      %v3387 = vadd.f32 %v3363, %v3386
      %v3388 = vpop.f32.mrf.mxu0
      %v3389 = vadd.f32 %v3365, %v3388
      %3390 = vdwg.mxu0
      %3391 = vmatpush.bf16.msra.mxu0 %v3222
      %3392 = vmatpush.bf16.msra.mxu0 %v3219
      %3393 = vmatpush.bf16.msra.mxu0 %v3216
      %3394 = vmatpush.bf16.msra.mxu0 %v3213
      %3395 = vmatpush.bf16.msra.mxu0 %v3210
      %3396 = vmatpush.bf16.msra.mxu0 %v3207
      %3397 = vmatpush.bf16.msra.mxu0 %v3204
      %3398 = vmatpush.bf16.msra.mxu0 %v3201
      %3399 = vmatmul.bf16.gmra.mxu0 %v3027
      %v3400 = vpop.f32.mrf.mxu0
      %v3401 = vadd.f32 0.0, %v3400
      %v3402 = vpop.f32.mrf.mxu0
      %v3403 = vadd.f32 0.0, %v3402
      %3404 = vmatmul.bf16.gmra.mxu0 %v3029
      %v3405 = vpop.f32.mrf.mxu0
      %v3406 = vadd.f32 0.0, %v3405
      %v3407 = vpop.f32.mrf.mxu0
      %v3408 = vadd.f32 0.0, %v3407
      %3409 = vmatmul.bf16.gmra.mxu0 %v3031
      %v3410 = vpop.f32.mrf.mxu0
      %v3411 = vadd.f32 0.0, %v3410
      %v3412 = vpop.f32.mrf.mxu0
      %v3413 = vadd.f32 0.0, %v3412
      %3414 = vdwg.mxu0
      %3415 = vmatpush.bf16.msra.mxu0 %v3246
      %3416 = vmatpush.bf16.msra.mxu0 %v3243
      %3417 = vmatpush.bf16.msra.mxu0 %v3240
      %3418 = vmatpush.bf16.msra.mxu0 %v3237
      %3419 = vmatpush.bf16.msra.mxu0 %v3234
      %3420 = vmatpush.bf16.msra.mxu0 %v3231
      %3421 = vmatpush.bf16.msra.mxu0 %v3228
      %3422 = vmatpush.bf16.msra.mxu0 %v3225
      %3423 = vmatmul.bf16.gmra.mxu0 %v3028
      %v3424 = vpop.f32.mrf.mxu0
      %v3425 = vadd.f32 %v3401, %v3424
      %v3426 = vpop.f32.mrf.mxu0
      %v3427 = vadd.f32 %v3403, %v3426
      %3428 = vmatmul.bf16.gmra.mxu0 %v3030
      %v3429 = vpop.f32.mrf.mxu0
      %v3430 = vadd.f32 %v3406, %v3429
      %v3431 = vpop.f32.mrf.mxu0
      %v3432 = vadd.f32 %v3408, %v3431
      %3433 = vmatmul.bf16.gmra.mxu0 %v3032
      %v3434 = vpop.f32.mrf.mxu0
      %v3435 = vadd.f32 %v3411, %v3434
      %v3436 = vpop.f32.mrf.mxu0
      %v3437 = vadd.f32 %v3413, %v3436
      %3438 = vdwg.mxu0
      %v3439 = vld [vmem:[%s3] sm:$0xff]
      %v3440 = vld [vmem:[%s3 + $0x8] sm:$0xf]
      %v3441 = vld [vmem:[%s3 + $0xc] sm:$0xff]
      %v3442 = vld [vmem:[%s3 + $0x14] sm:$0xf]
      %v3443 = vld [vmem:[%s3 + $0x18] sm:$0xff]
      %v3444 = vld [vmem:[%s3 + $0x20] sm:$0xf]
      %v3445 = vld [vmem:[%s3 + $0x24] sm:$0xff]
      %v3446 = vld [vmem:[%s3 + $0x2c] sm:$0xf]
      %v3447 = vld [vmem:[#allocation4] sm:$0xff]
      %v3448 = vld [vmem:[#allocation4 + $0x8] sm:$0xf]
      %v3449 = vld [vmem:[#allocation4 + $0xc] sm:$0xff]
      %v3450 = vld [vmem:[#allocation4 + $0x14] sm:$0xf]
      %v3451 = vld [vmem:[#allocation4 + $0x18] sm:$0xff]
      %v3452 = vld [vmem:[#allocation4 + $0x20] sm:$0xf]
      %v3453 = vld [vmem:[#allocation4 + $0x24] sm:$0xff]
      %v3454 = vld [vmem:[#allocation4 + $0x2c] sm:$0xf]
      %v3455 = vld [vmem:[#allocation4 + $0x30] sm:$0xff]
      %v3456 = vld [vmem:[#allocation4 + $0x38] sm:$0xf]
      %v3457 = vld [vmem:[#allocation4 + $0x3c] sm:$0xff]
      %v3458 = vld [vmem:[#allocation4 + $0x44] sm:$0xf]
      %v3459 = vld [vmem:[#allocation4 + $0x48] sm:$0xff]
      %v3460 = vld [vmem:[#allocation4 + $0x50] sm:$0xf]
      %v3461 = vld [vmem:[#allocation4 + $0x54] sm:$0xff]
      %v3462 = vld [vmem:[#allocation4 + $0x5c] sm:$0xf]
      %v3463 = vld [vmem:[#allocation4 + $0x60] sm:$0xff]
      %v3464 = vld [vmem:[#allocation4 + $0x68] sm:$0xf]
      %v3465 = vld [vmem:[#allocation4 + $0x6c] sm:$0xff]
      %v3466 = vld [vmem:[#allocation4 + $0x74] sm:$0xf]
      %v3467 = vld [vmem:[#allocation4 + $0x78] sm:$0xff]
      %v3468 = vld [vmem:[#allocation4 + $0x80] sm:$0xf]
      %v3469 = vld [vmem:[#allocation4 + $0x84] sm:$0xff]
      %v3470 = vld [vmem:[#allocation4 + $0x8c] sm:$0xf]
      %v3471 = vld [vmem:[#allocation4 + $0x90] sm:$0xff]
      %v3472 = vld [vmem:[#allocation4 + $0x98] sm:$0xf]
      %v3473 = vld [vmem:[#allocation4 + $0x9c] sm:$0xff]
      %v3474 = vld [vmem:[#allocation4 + $0xa4] sm:$0xf]
      %v3475 = vld [vmem:[#allocation4 + $0xa8] sm:$0xff]
      %v3476 = vld [vmem:[#allocation4 + $0xb0] sm:$0xf]
      %v3477 = vld [vmem:[#allocation4 + $0xb4] sm:$0xff]
      %v3478 = vld [vmem:[#allocation4 + $0xbc] sm:$0xf]
      %v3479 = vld [vmem:[#allocation4 + $0xc0] sm:$0xff]
      %v3480 = vld [vmem:[#allocation4 + $0xc8] sm:$0xf]
      %v3481 = vld [vmem:[#allocation4 + $0xcc] sm:$0xff]
      %v3482 = vld [vmem:[#allocation4 + $0xd4] sm:$0xf]
      %v3483 = vld [vmem:[#allocation4 + $0xd8] sm:$0xff]
      %v3484 = vld [vmem:[#allocation4 + $0xe0] sm:$0xf]
      %v3485 = vld [vmem:[#allocation4 + $0xe4] sm:$0xff]
      %v3486 = vld [vmem:[#allocation4 + $0xec] sm:$0xf]
      %v3487 = vld [vmem:[#allocation4 + $0xf0] sm:$0xff]
      %v3488 = vld [vmem:[#allocation4 + $0xf8] sm:$0xf]
      %v3489 = vld [vmem:[#allocation4 + $0xfc] sm:$0xff]
      %v3490 = vld [vmem:[#allocation4 + $0x104] sm:$0xf]
      %v3491 = vld [vmem:[#allocation4 + $0x108] sm:$0xff]
      %v3492 = vld [vmem:[#allocation4 + $0x110] sm:$0xf]
      %v3493 = vld [vmem:[#allocation4 + $0x114] sm:$0xff]
      %v3494 = vld [vmem:[#allocation4 + $0x11c] sm:$0xf]
      %v3495 = vld [vmem:[#allocation4 + $0x120] sm:$0xff]
      %v3496 = vld [vmem:[#allocation4 + $0x128] sm:$0xf]
      %v3497 = vld [vmem:[#allocation4 + $0x12c] sm:$0xff]
      %v3498 = vld [vmem:[#allocation4 + $0x134] sm:$0xf]
      %v3499 = vld [vmem:[#allocation4 + $0x138] sm:$0xff]
      %v3500 = vld [vmem:[#allocation4 + $0x140] sm:$0xf]
      %v3501 = vld [vmem:[#allocation4 + $0x144] sm:$0xff]
      %v3502 = vld [vmem:[#allocation4 + $0x14c] sm:$0xf]
      %v3503 = vld [vmem:[#allocation4 + $0x150] sm:$0xff]
      %v3504 = vld [vmem:[#allocation4 + $0x158] sm:$0xf]
      %v3505 = vld [vmem:[#allocation4 + $0x15c] sm:$0xff]
      %v3506 = vld [vmem:[#allocation4 + $0x164] sm:$0xf]
      %v3507 = vld [vmem:[#allocation4 + $0x168] sm:$0xff]
      %v3508 = vld [vmem:[#allocation4 + $0x170] sm:$0xf]
      %v3509 = vld [vmem:[#allocation4 + $0x174] sm:$0xff]
      %v3510 = vld [vmem:[#allocation4 + $0x17c] sm:$0xf]
      %v3511 = vld [vmem:[#allocation4 + $0x180] sm:$0xff]
      %v3512 = vld [vmem:[#allocation4 + $0x188] sm:$0xf]
      %v3513 = vld [vmem:[#allocation4 + $0x18c] sm:$0xff]
      %v3514 = vld [vmem:[#allocation4 + $0x194] sm:$0xf]
      %v3515 = vld [vmem:[#allocation4 + $0x198] sm:$0xff]
      %v3516 = vld [vmem:[#allocation4 + $0x1a0] sm:$0xf]
      %v3517 = vld [vmem:[#allocation4 + $0x1a4] sm:$0xff]
      %v3518 = vld [vmem:[#allocation4 + $0x1ac] sm:$0xf]
      %v3519 = vld [vmem:[#allocation4 + $0x1b0] sm:$0xff]
      %v3520 = vld [vmem:[#allocation4 + $0x1b8] sm:$0xf]
      %v3521 = vld [vmem:[#allocation4 + $0x1bc] sm:$0xff]
      %v3522 = vld [vmem:[#allocation4 + $0x1c4] sm:$0xf]
      %v3523 = vld [vmem:[#allocation4 + $0x1c8] sm:$0xff]
      %v3524 = vld [vmem:[#allocation4 + $0x1d0] sm:$0xf]
      %v3525 = vld [vmem:[#allocation4 + $0x1d4] sm:$0xff]
      %v3526 = vld [vmem:[#allocation4 + $0x1dc] sm:$0xf]
      %v3527 = vld [vmem:[#allocation4 + $0x1e0] sm:$0xff]
      %v3528 = vld [vmem:[#allocation4 + $0x1e8] sm:$0xf]
      %v3529 = vld [vmem:[#allocation4 + $0x1ec] sm:$0xff]
      %v3530 = vld [vmem:[#allocation4 + $0x1f4] sm:$0xf]
      %v3531 = vld [vmem:[#allocation4 + $0x1f8] sm:$0xff]
      %v3532 = vld [vmem:[#allocation4 + $0x200] sm:$0xf]
      %v3533 = vld [vmem:[#allocation4 + $0x204] sm:$0xff]
      %v3534 = vld [vmem:[#allocation4 + $0x20c] sm:$0xf]
      %v3535 = vld [vmem:[#allocation4 + $0x210] sm:$0xff]
      %v3536 = vld [vmem:[#allocation4 + $0x218] sm:$0xf]
      %v3537 = vld [vmem:[#allocation4 + $0x21c] sm:$0xff]
      %v3538 = vld [vmem:[#allocation4 + $0x224] sm:$0xf]
      %v3539 = vld [vmem:[#allocation4 + $0x228] sm:$0xff]
      %v3540 = vld [vmem:[#allocation4 + $0x230] sm:$0xf]
      %v3541 = vld [vmem:[#allocation4 + $0x234] sm:$0xff]
      %v3542 = vld [vmem:[#allocation4 + $0x23c] sm:$0xf]
      %v3551 = vunpack.c.l.b16 %v3439
      %v3552 = vunpack.c.h.b16 %v3439
      %v3553 = vunpack.c.l.b16 %v3440
      %v3554 = vunpack.c.l.b16 %v3441
      %v3555 = vunpack.c.h.b16 %v3441
      %v3556 = vunpack.c.l.b16 %v3442
      %v3557 = vunpack.c.l.b16 %v3443
      %v3558 = vunpack.c.h.b16 %v3443
      %v3559 = vunpack.c.l.b16 %v3444
      %v3560 = vunpack.c.l.b16 %v3445
      %v3561 = vunpack.c.h.b16 %v3445
      %v3562 = vunpack.c.l.b16 %v3446
      %v3563 = vpack.c.b16 %v3554, %v3551
      %v3564 = vpack.c.b16 %v3555, %v3552
      %v3565 = vpack.c.b16 %v3556, %v3553
      %v3566 = vpack.c.b16 %v3560, %v3557
      %v3567 = vpack.c.b16 %v3561, %v3558
      %v3568 = vpack.c.b16 %v3562, %v3559
      %v3671 = vunpack.c.l.b16 %v3447
      %v3672 = vunpack.c.h.b16 %v3447
      %v3673 = vunpack.c.l.b16 %v3448
      %v3674 = vunpack.c.l.b16 %v3449
      %v3675 = vunpack.c.h.b16 %v3449
      %v3676 = vunpack.c.l.b16 %v3450
      %v3677 = vunpack.c.l.b16 %v3451
      %v3678 = vunpack.c.h.b16 %v3451
      %v3679 = vunpack.c.l.b16 %v3452
      %v3680 = vunpack.c.l.b16 %v3453
      %v3681 = vunpack.c.h.b16 %v3453
      %v3682 = vunpack.c.l.b16 %v3454
      %v3683 = vunpack.c.l.b16 %v3455
      %v3684 = vunpack.c.h.b16 %v3455
      %v3685 = vunpack.c.l.b16 %v3456
      %v3686 = vunpack.c.l.b16 %v3457
      %v3687 = vunpack.c.h.b16 %v3457
      %v3688 = vunpack.c.l.b16 %v3458
      %v3689 = vunpack.c.l.b16 %v3459
      %v3690 = vunpack.c.h.b16 %v3459
      %v3691 = vunpack.c.l.b16 %v3460
      %v3692 = vunpack.c.l.b16 %v3461
      %v3693 = vunpack.c.h.b16 %v3461
      %v3694 = vunpack.c.l.b16 %v3462
      %v3695 = vunpack.c.l.b16 %v3463
      %v3696 = vunpack.c.h.b16 %v3463
      %v3697 = vunpack.c.l.b16 %v3464
      %v3698 = vunpack.c.l.b16 %v3465
      %v3699 = vunpack.c.h.b16 %v3465
      %v3700 = vunpack.c.l.b16 %v3466
      %v3701 = vunpack.c.l.b16 %v3467
      %v3702 = vunpack.c.h.b16 %v3467
      %v3703 = vunpack.c.l.b16 %v3468
      %v3704 = vunpack.c.l.b16 %v3469
      %v3705 = vunpack.c.h.b16 %v3469
      %v3706 = vunpack.c.l.b16 %v3470
      %v3707 = vunpack.c.l.b16 %v3471
      %v3708 = vunpack.c.h.b16 %v3471
      %v3709 = vunpack.c.l.b16 %v3472
      %v3710 = vunpack.c.l.b16 %v3473
      %v3711 = vunpack.c.h.b16 %v3473
      %v3712 = vunpack.c.l.b16 %v3474
      %v3713 = vunpack.c.l.b16 %v3475
      %v3714 = vunpack.c.h.b16 %v3475
      %v3715 = vunpack.c.l.b16 %v3476
      %v3716 = vunpack.c.l.b16 %v3477
      %v3717 = vunpack.c.h.b16 %v3477
      %v3718 = vunpack.c.l.b16 %v3478
      %v3719 = vunpack.c.l.b16 %v3479
      %v3720 = vunpack.c.h.b16 %v3479
      %v3721 = vunpack.c.l.b16 %v3480
      %v3722 = vunpack.c.l.b16 %v3481
      %v3723 = vunpack.c.h.b16 %v3481
      %v3724 = vunpack.c.l.b16 %v3482
      %v3725 = vunpack.c.l.b16 %v3483
      %v3726 = vunpack.c.h.b16 %v3483
      %v3727 = vunpack.c.l.b16 %v3484
      %v3728 = vunpack.c.l.b16 %v3485
      %v3729 = vunpack.c.h.b16 %v3485
      %v3730 = vunpack.c.l.b16 %v3486
      %v3731 = vunpack.c.l.b16 %v3487
      %v3732 = vunpack.c.h.b16 %v3487
      %v3733 = vunpack.c.l.b16 %v3488
      %v3734 = vunpack.c.l.b16 %v3489
      %v3735 = vunpack.c.h.b16 %v3489
      %v3736 = vunpack.c.l.b16 %v3490
      %v3737 = vunpack.c.l.b16 %v3491
      %v3738 = vunpack.c.h.b16 %v3491
      %v3739 = vunpack.c.l.b16 %v3492
      %v3740 = vunpack.c.l.b16 %v3493
      %v3741 = vunpack.c.h.b16 %v3493
      %v3742 = vunpack.c.l.b16 %v3494
      %v3743 = vunpack.c.l.b16 %v3495
      %v3744 = vunpack.c.h.b16 %v3495
      %v3745 = vunpack.c.l.b16 %v3496
      %v3746 = vunpack.c.l.b16 %v3497
      %v3747 = vunpack.c.h.b16 %v3497
      %v3748 = vunpack.c.l.b16 %v3498
      %v3749 = vunpack.c.l.b16 %v3499
      %v3750 = vunpack.c.h.b16 %v3499
      %v3751 = vunpack.c.l.b16 %v3500
      %v3752 = vunpack.c.l.b16 %v3501
      %v3753 = vunpack.c.h.b16 %v3501
      %v3754 = vunpack.c.l.b16 %v3502
      %v3755 = vunpack.c.l.b16 %v3503
      %v3756 = vunpack.c.h.b16 %v3503
      %v3757 = vunpack.c.l.b16 %v3504
      %v3758 = vunpack.c.l.b16 %v3505
      %v3759 = vunpack.c.h.b16 %v3505
      %v3760 = vunpack.c.l.b16 %v3506
      %v3761 = vunpack.c.l.b16 %v3507
      %v3762 = vunpack.c.h.b16 %v3507
      %v3763 = vunpack.c.l.b16 %v3508
      %v3764 = vunpack.c.l.b16 %v3509
      %v3765 = vunpack.c.h.b16 %v3509
      %v3766 = vunpack.c.l.b16 %v3510
      %v3767 = vunpack.c.l.b16 %v3511
      %v3768 = vunpack.c.h.b16 %v3511
      %v3769 = vunpack.c.l.b16 %v3512
      %v3770 = vunpack.c.l.b16 %v3513
      %v3771 = vunpack.c.h.b16 %v3513
      %v3772 = vunpack.c.l.b16 %v3514
      %v3773 = vunpack.c.l.b16 %v3515
      %v3774 = vunpack.c.h.b16 %v3515
      %v3775 = vunpack.c.l.b16 %v3516
      %v3776 = vunpack.c.l.b16 %v3517
      %v3777 = vunpack.c.h.b16 %v3517
      %v3778 = vunpack.c.l.b16 %v3518
      %v3779 = vunpack.c.l.b16 %v3519
      %v3780 = vunpack.c.h.b16 %v3519
      %v3781 = vunpack.c.l.b16 %v3520
      %v3782 = vunpack.c.l.b16 %v3521
      %v3783 = vunpack.c.h.b16 %v3521
      %v3784 = vunpack.c.l.b16 %v3522
      %v3785 = vunpack.c.l.b16 %v3523
      %v3786 = vunpack.c.h.b16 %v3523
      %v3787 = vunpack.c.l.b16 %v3524
      %v3788 = vunpack.c.l.b16 %v3525
      %v3789 = vunpack.c.h.b16 %v3525
      %v3790 = vunpack.c.l.b16 %v3526
      %v3791 = vunpack.c.l.b16 %v3527
      %v3792 = vunpack.c.h.b16 %v3527
      %v3793 = vunpack.c.l.b16 %v3528
      %v3794 = vunpack.c.l.b16 %v3529
      %v3795 = vunpack.c.h.b16 %v3529
      %v3796 = vunpack.c.l.b16 %v3530
      %v3797 = vunpack.c.l.b16 %v3531
      %v3798 = vunpack.c.h.b16 %v3531
      %v3799 = vunpack.c.l.b16 %v3532
      %v3800 = vunpack.c.l.b16 %v3533
      %v3801 = vunpack.c.h.b16 %v3533
      %v3802 = vunpack.c.l.b16 %v3534
      %v3803 = vunpack.c.l.b16 %v3535
      %v3804 = vunpack.c.h.b16 %v3535
      %v3805 = vunpack.c.l.b16 %v3536
      %v3806 = vunpack.c.l.b16 %v3537
      %v3807 = vunpack.c.h.b16 %v3537
      %v3808 = vunpack.c.l.b16 %v3538
      %v3809 = vunpack.c.l.b16 %v3539
      %v3810 = vunpack.c.h.b16 %v3539
      %v3811 = vunpack.c.l.b16 %v3540
      %v3812 = vunpack.c.l.b16 %v3541
      %v3813 = vunpack.c.h.b16 %v3541
      %v3814 = vunpack.c.l.b16 %v3542
      %v3815 = vpack.c.b16 %v3674, %v3671
      %v3816 = vpack.c.b16 %v3675, %v3672
      %v3817 = vpack.c.b16 %v3676, %v3673
      %v3818 = vpack.c.b16 %v3680, %v3677
      %v3819 = vpack.c.b16 %v3681, %v3678
      %v3820 = vpack.c.b16 %v3682, %v3679
      %v3821 = vpack.c.b16 %v3686, %v3683
      %v3822 = vpack.c.b16 %v3687, %v3684
      %v3823 = vpack.c.b16 %v3688, %v3685
      %v3824 = vpack.c.b16 %v3692, %v3689
      %v3825 = vpack.c.b16 %v3693, %v3690
      %v3826 = vpack.c.b16 %v3694, %v3691
      %v3827 = vpack.c.b16 %v3698, %v3695
      %v3828 = vpack.c.b16 %v3699, %v3696
      %v3829 = vpack.c.b16 %v3700, %v3697
      %v3830 = vpack.c.b16 %v3704, %v3701
      %v3831 = vpack.c.b16 %v3705, %v3702
      %v3832 = vpack.c.b16 %v3706, %v3703
      %v3833 = vpack.c.b16 %v3710, %v3707
      %v3834 = vpack.c.b16 %v3711, %v3708
      %v3835 = vpack.c.b16 %v3712, %v3709
      %v3836 = vpack.c.b16 %v3716, %v3713
      %v3837 = vpack.c.b16 %v3717, %v3714
      %v3838 = vpack.c.b16 %v3718, %v3715
      %v3839 = vpack.c.b16 %v3722, %v3719
      %v3840 = vpack.c.b16 %v3723, %v3720
      %v3841 = vpack.c.b16 %v3724, %v3721
      %v3842 = vpack.c.b16 %v3728, %v3725
      %v3843 = vpack.c.b16 %v3729, %v3726
      %v3844 = vpack.c.b16 %v3730, %v3727
      %v3845 = vpack.c.b16 %v3734, %v3731
      %v3846 = vpack.c.b16 %v3735, %v3732
      %v3847 = vpack.c.b16 %v3736, %v3733
      %v3848 = vpack.c.b16 %v3740, %v3737
      %v3849 = vpack.c.b16 %v3741, %v3738
      %v3850 = vpack.c.b16 %v3742, %v3739
      %v3851 = vpack.c.b16 %v3746, %v3743
      %v3852 = vpack.c.b16 %v3747, %v3744
      %v3853 = vpack.c.b16 %v3748, %v3745
      %v3854 = vpack.c.b16 %v3752, %v3749
      %v3855 = vpack.c.b16 %v3753, %v3750
      %v3856 = vpack.c.b16 %v3754, %v3751
      %v3857 = vpack.c.b16 %v3758, %v3755
      %v3858 = vpack.c.b16 %v3759, %v3756
      %v3859 = vpack.c.b16 %v3760, %v3757
      %v3860 = vpack.c.b16 %v3764, %v3761
      %v3861 = vpack.c.b16 %v3765, %v3762
      %v3862 = vpack.c.b16 %v3766, %v3763
      %v3863 = vpack.c.b16 %v3770, %v3767
      %v3864 = vpack.c.b16 %v3771, %v3768
      %v3865 = vpack.c.b16 %v3772, %v3769
      %v3866 = vpack.c.b16 %v3776, %v3773
      %v3867 = vpack.c.b16 %v3777, %v3774
      %v3868 = vpack.c.b16 %v3778, %v3775
      %v3869 = vpack.c.b16 %v3782, %v3779
      %v3870 = vpack.c.b16 %v3783, %v3780
      %v3871 = vpack.c.b16 %v3784, %v3781
      %v3872 = vpack.c.b16 %v3788, %v3785
      %v3873 = vpack.c.b16 %v3789, %v3786
      %v3874 = vpack.c.b16 %v3790, %v3787
      %v3875 = vpack.c.b16 %v3794, %v3791
      %v3876 = vpack.c.b16 %v3795, %v3792
      %v3877 = vpack.c.b16 %v3796, %v3793
      %v3878 = vpack.c.b16 %v3800, %v3797
      %v3879 = vpack.c.b16 %v3801, %v3798
      %v3880 = vpack.c.b16 %v3802, %v3799
      %v3881 = vpack.c.b16 %v3806, %v3803
      %v3882 = vpack.c.b16 %v3807, %v3804
      %v3883 = vpack.c.b16 %v3808, %v3805
      %v3884 = vpack.c.b16 %v3812, %v3809
      %v3885 = vpack.c.b16 %v3813, %v3810
      %v3886 = vpack.c.b16 %v3814, %v3811
      %3959 = vmatpush.bf16.msra.mxu0 %v3836
      %3960 = vmatpush.bf16.msra.mxu0 %v3833
      %3961 = vmatpush.bf16.msra.mxu0 %v3830
      %3962 = vmatpush.bf16.msra.mxu0 %v3827
      %3963 = vmatpush.bf16.msra.mxu0 %v3824
      %3964 = vmatpush.bf16.msra.mxu0 %v3821
      %3965 = vmatpush.bf16.msra.mxu0 %v3818
      %3966 = vmatpush.bf16.msra.mxu0 %v3815
      %3967 = vmatmul.bf16.gmra.mxu0 %v3563
      %v3968 = vpop.f32.mrf.mxu0
      %v3969 = vadd.f32 0.0, %v3968
      %v3970 = vpop.f32.mrf.mxu0
      %v3971 = vadd.f32 0.0, %v3970
      %3972 = vmatmul.bf16.gmra.mxu0 %v3566
      %v3973 = vpop.f32.mrf.mxu0
      %v3974 = vadd.f32 0.0, %v3973
      %v3975 = vpop.f32.mrf.mxu0
      %v3976 = vadd.f32 0.0, %v3975
      %3977 = vdwg.mxu0
      %3978 = vmatpush.bf16.msra.mxu0 %v3860
      %3979 = vmatpush.bf16.msra.mxu0 %v3857
      %3980 = vmatpush.bf16.msra.mxu0 %v3854
      %3981 = vmatpush.bf16.msra.mxu0 %v3851
      %3982 = vmatpush.bf16.msra.mxu0 %v3848
      %3983 = vmatpush.bf16.msra.mxu0 %v3845
      %3984 = vmatpush.bf16.msra.mxu0 %v3842
      %3985 = vmatpush.bf16.msra.mxu0 %v3839
      %3986 = vmatmul.bf16.gmra.mxu0 %v3564
      %v3987 = vpop.f32.mrf.mxu0
      %v3988 = vadd.f32 %v3969, %v3987
      %v3989 = vpop.f32.mrf.mxu0
      %v3990 = vadd.f32 %v3971, %v3989
      %3991 = vmatmul.bf16.gmra.mxu0 %v3567
      %v3992 = vpop.f32.mrf.mxu0
      %v3993 = vadd.f32 %v3974, %v3992
      %v3994 = vpop.f32.mrf.mxu0
      %v3995 = vadd.f32 %v3976, %v3994
      %3996 = vdwg.mxu0
      %3997 = vmatpush.bf16.msra.mxu0 %v3884
      %3998 = vmatpush.bf16.msra.mxu0 %v3881
      %3999 = vmatpush.bf16.msra.mxu0 %v3878
      %4000 = vmatpush.bf16.msra.mxu0 %v3875
      %4001 = vmatpush.bf16.msra.mxu0 %v3872
      %4002 = vmatpush.bf16.msra.mxu0 %v3869
      %4003 = vmatpush.bf16.msra.mxu0 %v3866
      %4004 = vmatpush.bf16.msra.mxu0 %v3863
      %4005 = vmatmul.bf16.gmra.mxu0 %v3565
      %v4006 = vpop.f32.mrf.mxu0
      %v4007 = vadd.f32 %v3988, %v4006
      %v4008 = vpop.f32.mrf.mxu0
      %v4009 = vadd.f32 %v3990, %v4008
      %4010 = vmatmul.bf16.gmra.mxu0 %v3568
      %v4011 = vpop.f32.mrf.mxu0
      %v4012 = vadd.f32 %v3993, %v4011
      %v4013 = vpop.f32.mrf.mxu0
      %v4014 = vadd.f32 %v3995, %v4013
      %4015 = vdwg.mxu0
      %4016 = vmatpush.bf16.msra.mxu0 %v3837
      %4017 = vmatpush.bf16.msra.mxu0 %v3834
      %4018 = vmatpush.bf16.msra.mxu0 %v3831
      %4019 = vmatpush.bf16.msra.mxu0 %v3828
      %4020 = vmatpush.bf16.msra.mxu0 %v3825
      %4021 = vmatpush.bf16.msra.mxu0 %v3822
      %4022 = vmatpush.bf16.msra.mxu0 %v3819
      %4023 = vmatpush.bf16.msra.mxu0 %v3816
      %4024 = vmatmul.bf16.gmra.mxu0 %v3563
      %v4025 = vpop.f32.mrf.mxu0
      %v4026 = vadd.f32 0.0, %v4025
      %v4027 = vpop.f32.mrf.mxu0
      %v4028 = vadd.f32 0.0, %v4027
      %4029 = vmatmul.bf16.gmra.mxu0 %v3566
      %v4030 = vpop.f32.mrf.mxu0
      %v4031 = vadd.f32 0.0, %v4030
      %v4032 = vpop.f32.mrf.mxu0
      %v4033 = vadd.f32 0.0, %v4032
      %4034 = vdwg.mxu0
      %4035 = vmatpush.bf16.msra.mxu0 %v3861
      %4036 = vmatpush.bf16.msra.mxu0 %v3858
      %4037 = vmatpush.bf16.msra.mxu0 %v3855
      %4038 = vmatpush.bf16.msra.mxu0 %v3852
      %4039 = vmatpush.bf16.msra.mxu0 %v3849
      %4040 = vmatpush.bf16.msra.mxu0 %v3846
      %4041 = vmatpush.bf16.msra.mxu0 %v3843
      %4042 = vmatpush.bf16.msra.mxu0 %v3840
      %4043 = vmatmul.bf16.gmra.mxu0 %v3564
      %v4044 = vpop.f32.mrf.mxu0
      %v4045 = vadd.f32 %v4026, %v4044
      %v4046 = vpop.f32.mrf.mxu0
      %v4047 = vadd.f32 %v4028, %v4046
      %4048 = vmatmul.bf16.gmra.mxu0 %v3567
      %v4049 = vpop.f32.mrf.mxu0
      %v4050 = vadd.f32 %v4031, %v4049
      %v4051 = vpop.f32.mrf.mxu0
      %v4052 = vadd.f32 %v4033, %v4051
      %4053 = vdwg.mxu0
      %4054 = vmatpush.bf16.msra.mxu0 %v3885
      %4055 = vmatpush.bf16.msra.mxu0 %v3882
      %4056 = vmatpush.bf16.msra.mxu0 %v3879
      %4057 = vmatpush.bf16.msra.mxu0 %v3876
      %4058 = vmatpush.bf16.msra.mxu0 %v3873
      %4059 = vmatpush.bf16.msra.mxu0 %v3870
      %4060 = vmatpush.bf16.msra.mxu0 %v3867
      %4061 = vmatpush.bf16.msra.mxu0 %v3864
      %4062 = vmatmul.bf16.gmra.mxu0 %v3565
      %v4063 = vpop.f32.mrf.mxu0
      %v4064 = vadd.f32 %v4045, %v4063
      %v4065 = vpop.f32.mrf.mxu0
      %v4066 = vadd.f32 %v4047, %v4065
      %4067 = vmatmul.bf16.gmra.mxu0 %v3568
      %v4068 = vpop.f32.mrf.mxu0
      %v4069 = vadd.f32 %v4050, %v4068
      %v4070 = vpop.f32.mrf.mxu0
      %v4071 = vadd.f32 %v4052, %v4070
      %4072 = vdwg.mxu0
      %4073 = vmatpush.bf16.msra.mxu0 %v3838
      %4074 = vmatpush.bf16.msra.mxu0 %v3835
      %4075 = vmatpush.bf16.msra.mxu0 %v3832
      %4076 = vmatpush.bf16.msra.mxu0 %v3829
      %4077 = vmatpush.bf16.msra.mxu0 %v3826
      %4078 = vmatpush.bf16.msra.mxu0 %v3823
      %4079 = vmatpush.bf16.msra.mxu0 %v3820
      %4080 = vmatpush.bf16.msra.mxu0 %v3817
      %4081 = vmatmul.bf16.gmra.mxu0 %v3563
      %v4082 = vpop.f32.mrf.mxu0
      %v4083 = vadd.f32 0.0, %v4082
      %v4084 = vpop.f32.mrf.mxu0
      %v4085 = vadd.f32 0.0, %v4084
      %4086 = vmatmul.bf16.gmra.mxu0 %v3566
      %v4087 = vpop.f32.mrf.mxu0
      %v4088 = vadd.f32 0.0, %v4087
      %v4089 = vpop.f32.mrf.mxu0
      %v4090 = vadd.f32 0.0, %v4089
      %4091 = vdwg.mxu0
      %4092 = vmatpush.bf16.msra.mxu0 %v3862
      %4093 = vmatpush.bf16.msra.mxu0 %v3859
      %4094 = vmatpush.bf16.msra.mxu0 %v3856
      %4095 = vmatpush.bf16.msra.mxu0 %v3853
      %4096 = vmatpush.bf16.msra.mxu0 %v3850
      %4097 = vmatpush.bf16.msra.mxu0 %v3847
      %4098 = vmatpush.bf16.msra.mxu0 %v3844
      %4099 = vmatpush.bf16.msra.mxu0 %v3841
      %4100 = vmatmul.bf16.gmra.mxu0 %v3564
      %v4101 = vpop.f32.mrf.mxu0
      %v4102 = vadd.f32 %v4083, %v4101
      %v4103 = vpop.f32.mrf.mxu0
      %v4104 = vadd.f32 %v4085, %v4103
      %4105 = vmatmul.bf16.gmra.mxu0 %v3567
      %v4106 = vpop.f32.mrf.mxu0
      %v4107 = vadd.f32 %v4088, %v4106
      %v4108 = vpop.f32.mrf.mxu0
      %v4109 = vadd.f32 %v4090, %v4108
      %4110 = vdwg.mxu0
      %4111 = vmatpush.bf16.msra.mxu0 %v3886
      %4112 = vmatpush.bf16.msra.mxu0 %v3883
      %4113 = vmatpush.bf16.msra.mxu0 %v3880
      %4114 = vmatpush.bf16.msra.mxu0 %v3877
      %4115 = vmatpush.bf16.msra.mxu0 %v3874
      %4116 = vmatpush.bf16.msra.mxu0 %v3871
      %4117 = vmatpush.bf16.msra.mxu0 %v3868
      %4118 = vmatpush.bf16.msra.mxu0 %v3865
      %4119 = vmatmul.bf16.gmra.mxu0 %v3565
      %v4120 = vpop.f32.mrf.mxu0
      %v4121 = vadd.f32 %v4102, %v4120
      %v4122 = vpop.f32.mrf.mxu0
      %v4123 = vadd.f32 %v4104, %v4122
      %4124 = vmatmul.bf16.gmra.mxu0 %v3568
      %v4125 = vpop.f32.mrf.mxu0
      %v4126 = vadd.f32 %v4107, %v4125
      %v4127 = vpop.f32.mrf.mxu0
      %v4128 = vadd.f32 %v4109, %v4127
      %4129 = vdwg.mxu0
      %v4130 = vld [vmem:[%s4] sm:$0xff]
      %v4131 = vld [vmem:[%s4 + $0x8] sm:$0xff]
      %v4132 = vld [vmem:[%s4 + $0x10] sm:$0xff]
      %v4133 = vld [vmem:[%s4 + $0x18] sm:$0xff]
      %v4134 = vld [vmem:[#allocation5] sm:$0xff]
      %v4135 = vld [vmem:[#allocation5 + $0x8] sm:$0xf]
      %v4136 = vld [vmem:[#allocation5 + $0xc] sm:$0xff]
      %v4137 = vld [vmem:[#allocation5 + $0x14] sm:$0xf]
      %v4138 = vld [vmem:[#allocation5 + $0x18] sm:$0xff]
      %v4139 = vld [vmem:[#allocation5 + $0x20] sm:$0xf]
      %v4140 = vld [vmem:[#allocation5 + $0x24] sm:$0xff]
      %v4141 = vld [vmem:[#allocation5 + $0x2c] sm:$0xf]
      %v4142 = vld [vmem:[#allocation5 + $0x30] sm:$0xff]
      %v4143 = vld [vmem:[#allocation5 + $0x38] sm:$0xf]
      %v4144 = vld [vmem:[#allocation5 + $0x3c] sm:$0xff]
      %v4145 = vld [vmem:[#allocation5 + $0x44] sm:$0xf]
      %v4146 = vld [vmem:[#allocation5 + $0x48] sm:$0xff]
      %v4147 = vld [vmem:[#allocation5 + $0x50] sm:$0xf]
      %v4148 = vld [vmem:[#allocation5 + $0x54] sm:$0xff]
      %v4149 = vld [vmem:[#allocation5 + $0x5c] sm:$0xf]
      %v4150 = vld [vmem:[#allocation5 + $0x60] sm:$0xff]
      %v4151 = vld [vmem:[#allocation5 + $0x68] sm:$0xf]
      %v4152 = vld [vmem:[#allocation5 + $0x6c] sm:$0xff]
      %v4153 = vld [vmem:[#allocation5 + $0x74] sm:$0xf]
      %v4154 = vld [vmem:[#allocation5 + $0x78] sm:$0xff]
      %v4155 = vld [vmem:[#allocation5 + $0x80] sm:$0xf]
      %v4156 = vld [vmem:[#allocation5 + $0x84] sm:$0xff]
      %v4157 = vld [vmem:[#allocation5 + $0x8c] sm:$0xf]
      %v4158 = vld [vmem:[#allocation5 + $0x90] sm:$0xff]
      %v4159 = vld [vmem:[#allocation5 + $0x98] sm:$0xf]
      %v4160 = vld [vmem:[#allocation5 + $0x9c] sm:$0xff]
      %v4161 = vld [vmem:[#allocation5 + $0xa4] sm:$0xf]
      %v4162 = vld [vmem:[#allocation5 + $0xa8] sm:$0xff]
      %v4163 = vld [vmem:[#allocation5 + $0xb0] sm:$0xf]
      %v4164 = vld [vmem:[#allocation5 + $0xb4] sm:$0xff]
      %v4165 = vld [vmem:[#allocation5 + $0xbc] sm:$0xf]
      %v4166 = vld [vmem:[#allocation5 + $0xc0] sm:$0xff]
      %v4167 = vld [vmem:[#allocation5 + $0xc8] sm:$0xf]
      %v4168 = vld [vmem:[#allocation5 + $0xcc] sm:$0xff]
      %v4169 = vld [vmem:[#allocation5 + $0xd4] sm:$0xf]
      %v4170 = vld [vmem:[#allocation5 + $0xd8] sm:$0xff]
      %v4171 = vld [vmem:[#allocation5 + $0xe0] sm:$0xf]
      %v4172 = vld [vmem:[#allocation5 + $0xe4] sm:$0xff]
      %v4173 = vld [vmem:[#allocation5 + $0xec] sm:$0xf]
      %v4174 = vld [vmem:[#allocation5 + $0xf0] sm:$0xff]
      %v4175 = vld [vmem:[#allocation5 + $0xf8] sm:$0xf]
      %v4176 = vld [vmem:[#allocation5 + $0xfc] sm:$0xff]
      %v4177 = vld [vmem:[#allocation5 + $0x104] sm:$0xf]
      %v4178 = vld [vmem:[#allocation5 + $0x108] sm:$0xff]
      %v4179 = vld [vmem:[#allocation5 + $0x110] sm:$0xf]
      %v4180 = vld [vmem:[#allocation5 + $0x114] sm:$0xff]
      %v4181 = vld [vmem:[#allocation5 + $0x11c] sm:$0xf]
      %v4182 = vld [vmem:[#allocation5 + $0x120] sm:$0xff]
      %v4183 = vld [vmem:[#allocation5 + $0x128] sm:$0xf]
      %v4184 = vld [vmem:[#allocation5 + $0x12c] sm:$0xff]
      %v4185 = vld [vmem:[#allocation5 + $0x134] sm:$0xf]
      %v4186 = vld [vmem:[#allocation5 + $0x138] sm:$0xff]
      %v4187 = vld [vmem:[#allocation5 + $0x140] sm:$0xf]
      %v4188 = vld [vmem:[#allocation5 + $0x144] sm:$0xff]
      %v4189 = vld [vmem:[#allocation5 + $0x14c] sm:$0xf]
      %v4190 = vld [vmem:[#allocation5 + $0x150] sm:$0xff]
      %v4191 = vld [vmem:[#allocation5 + $0x158] sm:$0xf]
      %v4192 = vld [vmem:[#allocation5 + $0x15c] sm:$0xff]
      %v4193 = vld [vmem:[#allocation5 + $0x164] sm:$0xf]
      %v4194 = vld [vmem:[#allocation5 + $0x168] sm:$0xff]
      %v4195 = vld [vmem:[#allocation5 + $0x170] sm:$0xf]
      %v4196 = vld [vmem:[#allocation5 + $0x174] sm:$0xff]
      %v4197 = vld [vmem:[#allocation5 + $0x17c] sm:$0xf]
      %v4198 = vld [vmem:[#allocation5 + $0x180] sm:$0xff]
      %v4199 = vld [vmem:[#allocation5 + $0x188] sm:$0xf]
      %v4200 = vld [vmem:[#allocation5 + $0x18c] sm:$0xff]
      %v4201 = vld [vmem:[#allocation5 + $0x194] sm:$0xf]
      %v4202 = vld [vmem:[#allocation5 + $0x198] sm:$0xff]
      %v4203 = vld [vmem:[#allocation5 + $0x1a0] sm:$0xf]
      %v4204 = vld [vmem:[#allocation5 + $0x1a4] sm:$0xff]
      %v4205 = vld [vmem:[#allocation5 + $0x1ac] sm:$0xf]
      %v4206 = vld [vmem:[#allocation5 + $0x1b0] sm:$0xff]
      %v4207 = vld [vmem:[#allocation5 + $0x1b8] sm:$0xf]
      %v4208 = vld [vmem:[#allocation5 + $0x1bc] sm:$0xff]
      %v4209 = vld [vmem:[#allocation5 + $0x1c4] sm:$0xf]
      %v4210 = vld [vmem:[#allocation5 + $0x1c8] sm:$0xff]
      %v4211 = vld [vmem:[#allocation5 + $0x1d0] sm:$0xf]
      %v4212 = vld [vmem:[#allocation5 + $0x1d4] sm:$0xff]
      %v4213 = vld [vmem:[#allocation5 + $0x1dc] sm:$0xf]
      %v4214 = vld [vmem:[#allocation5 + $0x1e0] sm:$0xff]
      %v4215 = vld [vmem:[#allocation5 + $0x1e8] sm:$0xf]
      %v4216 = vld [vmem:[#allocation5 + $0x1ec] sm:$0xff]
      %v4217 = vld [vmem:[#allocation5 + $0x1f4] sm:$0xf]
      %v4218 = vld [vmem:[#allocation5 + $0x1f8] sm:$0xff]
      %v4219 = vld [vmem:[#allocation5 + $0x200] sm:$0xf]
      %v4220 = vld [vmem:[#allocation5 + $0x204] sm:$0xff]
      %v4221 = vld [vmem:[#allocation5 + $0x20c] sm:$0xf]
      %v4222 = vld [vmem:[#allocation5 + $0x210] sm:$0xff]
      %v4223 = vld [vmem:[#allocation5 + $0x218] sm:$0xf]
      %v4224 = vld [vmem:[#allocation5 + $0x21c] sm:$0xff]
      %v4225 = vld [vmem:[#allocation5 + $0x224] sm:$0xf]
      %v4226 = vld [vmem:[#allocation5 + $0x228] sm:$0xff]
      %v4227 = vld [vmem:[#allocation5 + $0x230] sm:$0xf]
      %v4228 = vld [vmem:[#allocation5 + $0x234] sm:$0xff]
      %v4229 = vld [vmem:[#allocation5 + $0x23c] sm:$0xf]
      %v4230 = vld [vmem:[#allocation5 + $0x240] sm:$0xff]
      %v4231 = vld [vmem:[#allocation5 + $0x248] sm:$0xf]
      %v4232 = vld [vmem:[#allocation5 + $0x24c] sm:$0xff]
      %v4233 = vld [vmem:[#allocation5 + $0x254] sm:$0xf]
      %v4234 = vld [vmem:[#allocation5 + $0x258] sm:$0xff]
      %v4235 = vld [vmem:[#allocation5 + $0x260] sm:$0xf]
      %v4236 = vld [vmem:[#allocation5 + $0x264] sm:$0xff]
      %v4237 = vld [vmem:[#allocation5 + $0x26c] sm:$0xf]
      %v4238 = vld [vmem:[#allocation5 + $0x270] sm:$0xff]
      %v4239 = vld [vmem:[#allocation5 + $0x278] sm:$0xf]
      %v4240 = vld [vmem:[#allocation5 + $0x27c] sm:$0xff]
      %v4241 = vld [vmem:[#allocation5 + $0x284] sm:$0xf]
      %v4242 = vld [vmem:[#allocation5 + $0x288] sm:$0xff]
      %v4243 = vld [vmem:[#allocation5 + $0x290] sm:$0xf]
      %v4244 = vld [vmem:[#allocation5 + $0x294] sm:$0xff]
      %v4245 = vld [vmem:[#allocation5 + $0x29c] sm:$0xf]
      %v4246 = vld [vmem:[#allocation5 + $0x2a0] sm:$0xff]
      %v4247 = vld [vmem:[#allocation5 + $0x2a8] sm:$0xf]
      %v4248 = vld [vmem:[#allocation5 + $0x2ac] sm:$0xff]
      %v4249 = vld [vmem:[#allocation5 + $0x2b4] sm:$0xf]
      %v4250 = vld [vmem:[#allocation5 + $0x2b8] sm:$0xff]
      %v4251 = vld [vmem:[#allocation5 + $0x2c0] sm:$0xf]
      %v4252 = vld [vmem:[#allocation5 + $0x2c4] sm:$0xff]
      %v4253 = vld [vmem:[#allocation5 + $0x2cc] sm:$0xf]
      %v4254 = vld [vmem:[#allocation5 + $0x2d0] sm:$0xff]
      %v4255 = vld [vmem:[#allocation5 + $0x2d8] sm:$0xf]
      %v4256 = vld [vmem:[#allocation5 + $0x2dc] sm:$0xff]
      %v4257 = vld [vmem:[#allocation5 + $0x2e4] sm:$0xf]
      %v4258 = vld [vmem:[#allocation5 + $0x2e8] sm:$0xff]
      %v4259 = vld [vmem:[#allocation5 + $0x2f0] sm:$0xf]
      %v4260 = vld [vmem:[#allocation5 + $0x2f4] sm:$0xff]
      %v4261 = vld [vmem:[#allocation5 + $0x2fc] sm:$0xf]
      %v4266 = vunpack.c.l.b16 %v4130
      %v4267 = vunpack.c.h.b16 %v4130
      %v4268 = vunpack.c.l.b16 %v4131
      %v4269 = vunpack.c.h.b16 %v4131
      %v4270 = vunpack.c.l.b16 %v4132
      %v4271 = vunpack.c.h.b16 %v4132
      %v4272 = vunpack.c.l.b16 %v4133
      %v4273 = vunpack.c.h.b16 %v4133
      %v4274 = vpack.c.b16 %v4270, %v4266
      %v4275 = vpack.c.b16 %v4271, %v4267
      %v4276 = vpack.c.b16 %v4272, %v4268
      %v4277 = vpack.c.b16 %v4273, %v4269
      %v4410 = vunpack.c.l.b16 %v4134
      %v4411 = vunpack.c.h.b16 %v4134
      %v4412 = vunpack.c.l.b16 %v4135
      %v4413 = vunpack.c.l.b16 %v4136
      %v4414 = vunpack.c.h.b16 %v4136
      %v4415 = vunpack.c.l.b16 %v4137
      %v4416 = vunpack.c.l.b16 %v4138
      %v4417 = vunpack.c.h.b16 %v4138
      %v4418 = vunpack.c.l.b16 %v4139
      %v4419 = vunpack.c.l.b16 %v4140
      %v4420 = vunpack.c.h.b16 %v4140
      %v4421 = vunpack.c.l.b16 %v4141
      %v4422 = vunpack.c.l.b16 %v4142
      %v4423 = vunpack.c.h.b16 %v4142
      %v4424 = vunpack.c.l.b16 %v4143
      %v4425 = vunpack.c.l.b16 %v4144
      %v4426 = vunpack.c.h.b16 %v4144
      %v4427 = vunpack.c.l.b16 %v4145
      %v4428 = vunpack.c.l.b16 %v4146
      %v4429 = vunpack.c.h.b16 %v4146
      %v4430 = vunpack.c.l.b16 %v4147
      %v4431 = vunpack.c.l.b16 %v4148
      %v4432 = vunpack.c.h.b16 %v4148
      %v4433 = vunpack.c.l.b16 %v4149
      %v4434 = vunpack.c.l.b16 %v4150
      %v4435 = vunpack.c.h.b16 %v4150
      %v4436 = vunpack.c.l.b16 %v4151
      %v4437 = vunpack.c.l.b16 %v4152
      %v4438 = vunpack.c.h.b16 %v4152
      %v4439 = vunpack.c.l.b16 %v4153
      %v4440 = vunpack.c.l.b16 %v4154
      %v4441 = vunpack.c.h.b16 %v4154
      %v4442 = vunpack.c.l.b16 %v4155
      %v4443 = vunpack.c.l.b16 %v4156
      %v4444 = vunpack.c.h.b16 %v4156
      %v4445 = vunpack.c.l.b16 %v4157
      %v4446 = vunpack.c.l.b16 %v4158
      %v4447 = vunpack.c.h.b16 %v4158
      %v4448 = vunpack.c.l.b16 %v4159
      %v4449 = vunpack.c.l.b16 %v4160
      %v4450 = vunpack.c.h.b16 %v4160
      %v4451 = vunpack.c.l.b16 %v4161
      %v4452 = vunpack.c.l.b16 %v4162
      %v4453 = vunpack.c.h.b16 %v4162
      %v4454 = vunpack.c.l.b16 %v4163
      %v4455 = vunpack.c.l.b16 %v4164
      %v4456 = vunpack.c.h.b16 %v4164
      %v4457 = vunpack.c.l.b16 %v4165
      %v4458 = vunpack.c.l.b16 %v4166
      %v4459 = vunpack.c.h.b16 %v4166
      %v4460 = vunpack.c.l.b16 %v4167
      %v4461 = vunpack.c.l.b16 %v4168
      %v4462 = vunpack.c.h.b16 %v4168
      %v4463 = vunpack.c.l.b16 %v4169
      %v4464 = vunpack.c.l.b16 %v4170
      %v4465 = vunpack.c.h.b16 %v4170
      %v4466 = vunpack.c.l.b16 %v4171
      %v4467 = vunpack.c.l.b16 %v4172
      %v4468 = vunpack.c.h.b16 %v4172
      %v4469 = vunpack.c.l.b16 %v4173
      %v4470 = vunpack.c.l.b16 %v4174
      %v4471 = vunpack.c.h.b16 %v4174
      %v4472 = vunpack.c.l.b16 %v4175
      %v4473 = vunpack.c.l.b16 %v4176
      %v4474 = vunpack.c.h.b16 %v4176
      %v4475 = vunpack.c.l.b16 %v4177
      %v4476 = vunpack.c.l.b16 %v4178
      %v4477 = vunpack.c.h.b16 %v4178
      %v4478 = vunpack.c.l.b16 %v4179
      %v4479 = vunpack.c.l.b16 %v4180
      %v4480 = vunpack.c.h.b16 %v4180
      %v4481 = vunpack.c.l.b16 %v4181
      %v4482 = vunpack.c.l.b16 %v4182
      %v4483 = vunpack.c.h.b16 %v4182
      %v4484 = vunpack.c.l.b16 %v4183
      %v4485 = vunpack.c.l.b16 %v4184
      %v4486 = vunpack.c.h.b16 %v4184
      %v4487 = vunpack.c.l.b16 %v4185
      %v4488 = vunpack.c.l.b16 %v4186
      %v4489 = vunpack.c.h.b16 %v4186
      %v4490 = vunpack.c.l.b16 %v4187
      %v4491 = vunpack.c.l.b16 %v4188
      %v4492 = vunpack.c.h.b16 %v4188
      %v4493 = vunpack.c.l.b16 %v4189
      %v4494 = vunpack.c.l.b16 %v4190
      %v4495 = vunpack.c.h.b16 %v4190
      %v4496 = vunpack.c.l.b16 %v4191
      %v4497 = vunpack.c.l.b16 %v4192
      %v4498 = vunpack.c.h.b16 %v4192
      %v4499 = vunpack.c.l.b16 %v4193
      %v4500 = vunpack.c.l.b16 %v4194
      %v4501 = vunpack.c.h.b16 %v4194
      %v4502 = vunpack.c.l.b16 %v4195
      %v4503 = vunpack.c.l.b16 %v4196
      %v4504 = vunpack.c.h.b16 %v4196
      %v4505 = vunpack.c.l.b16 %v4197
      %v4506 = vunpack.c.l.b16 %v4198
      %v4507 = vunpack.c.h.b16 %v4198
      %v4508 = vunpack.c.l.b16 %v4199
      %v4509 = vunpack.c.l.b16 %v4200
      %v4510 = vunpack.c.h.b16 %v4200
      %v4511 = vunpack.c.l.b16 %v4201
      %v4512 = vunpack.c.l.b16 %v4202
      %v4513 = vunpack.c.h.b16 %v4202
      %v4514 = vunpack.c.l.b16 %v4203
      %v4515 = vunpack.c.l.b16 %v4204
      %v4516 = vunpack.c.h.b16 %v4204
      %v4517 = vunpack.c.l.b16 %v4205
      %v4518 = vunpack.c.l.b16 %v4206
      %v4519 = vunpack.c.h.b16 %v4206
      %v4520 = vunpack.c.l.b16 %v4207
      %v4521 = vunpack.c.l.b16 %v4208
      %v4522 = vunpack.c.h.b16 %v4208
      %v4523 = vunpack.c.l.b16 %v4209
      %v4524 = vunpack.c.l.b16 %v4210
      %v4525 = vunpack.c.h.b16 %v4210
      %v4526 = vunpack.c.l.b16 %v4211
      %v4527 = vunpack.c.l.b16 %v4212
      %v4528 = vunpack.c.h.b16 %v4212
      %v4529 = vunpack.c.l.b16 %v4213
      %v4530 = vunpack.c.l.b16 %v4214
      %v4531 = vunpack.c.h.b16 %v4214
      %v4532 = vunpack.c.l.b16 %v4215
      %v4533 = vunpack.c.l.b16 %v4216
      %v4534 = vunpack.c.h.b16 %v4216
      %v4535 = vunpack.c.l.b16 %v4217
      %v4536 = vunpack.c.l.b16 %v4218
      %v4537 = vunpack.c.h.b16 %v4218
      %v4538 = vunpack.c.l.b16 %v4219
      %v4539 = vunpack.c.l.b16 %v4220
      %v4540 = vunpack.c.h.b16 %v4220
      %v4541 = vunpack.c.l.b16 %v4221
      %v4542 = vunpack.c.l.b16 %v4222
      %v4543 = vunpack.c.h.b16 %v4222
      %v4544 = vunpack.c.l.b16 %v4223
      %v4545 = vunpack.c.l.b16 %v4224
      %v4546 = vunpack.c.h.b16 %v4224
      %v4547 = vunpack.c.l.b16 %v4225
      %v4548 = vunpack.c.l.b16 %v4226
      %v4549 = vunpack.c.h.b16 %v4226
      %v4550 = vunpack.c.l.b16 %v4227
      %v4551 = vunpack.c.l.b16 %v4228
      %v4552 = vunpack.c.h.b16 %v4228
      %v4553 = vunpack.c.l.b16 %v4229
      %v4554 = vunpack.c.l.b16 %v4230
      %v4555 = vunpack.c.h.b16 %v4230
      %v4556 = vunpack.c.l.b16 %v4231
      %v4557 = vunpack.c.l.b16 %v4232
      %v4558 = vunpack.c.h.b16 %v4232
      %v4559 = vunpack.c.l.b16 %v4233
      %v4560 = vunpack.c.l.b16 %v4234
      %v4561 = vunpack.c.h.b16 %v4234
      %v4562 = vunpack.c.l.b16 %v4235
      %v4563 = vunpack.c.l.b16 %v4236
      %v4564 = vunpack.c.h.b16 %v4236
      %v4565 = vunpack.c.l.b16 %v4237
      %v4566 = vunpack.c.l.b16 %v4238
      %v4567 = vunpack.c.h.b16 %v4238
      %v4568 = vunpack.c.l.b16 %v4239
      %v4569 = vunpack.c.l.b16 %v4240
      %v4570 = vunpack.c.h.b16 %v4240
      %v4571 = vunpack.c.l.b16 %v4241
      %v4572 = vunpack.c.l.b16 %v4242
      %v4573 = vunpack.c.h.b16 %v4242
      %v4574 = vunpack.c.l.b16 %v4243
      %v4575 = vunpack.c.l.b16 %v4244
      %v4576 = vunpack.c.h.b16 %v4244
      %v4577 = vunpack.c.l.b16 %v4245
      %v4578 = vunpack.c.l.b16 %v4246
      %v4579 = vunpack.c.h.b16 %v4246
      %v4580 = vunpack.c.l.b16 %v4247
      %v4581 = vunpack.c.l.b16 %v4248
      %v4582 = vunpack.c.h.b16 %v4248
      %v4583 = vunpack.c.l.b16 %v4249
      %v4584 = vunpack.c.l.b16 %v4250
      %v4585 = vunpack.c.h.b16 %v4250
      %v4586 = vunpack.c.l.b16 %v4251
      %v4587 = vunpack.c.l.b16 %v4252
      %v4588 = vunpack.c.h.b16 %v4252
      %v4589 = vunpack.c.l.b16 %v4253
      %v4590 = vunpack.c.l.b16 %v4254
      %v4591 = vunpack.c.h.b16 %v4254
      %v4592 = vunpack.c.l.b16 %v4255
      %v4593 = vunpack.c.l.b16 %v4256
      %v4594 = vunpack.c.h.b16 %v4256
      %v4595 = vunpack.c.l.b16 %v4257
      %v4596 = vunpack.c.l.b16 %v4258
      %v4597 = vunpack.c.h.b16 %v4258
      %v4598 = vunpack.c.l.b16 %v4259
      %v4599 = vunpack.c.l.b16 %v4260
      %v4600 = vunpack.c.h.b16 %v4260
      %v4601 = vunpack.c.l.b16 %v4261
      %v4602 = vpack.c.b16 %v4413, %v4410
      %v4603 = vpack.c.b16 %v4414, %v4411
      %v4604 = vpack.c.b16 %v4415, %v4412
      %v4605 = vpack.c.b16 %v4419, %v4416
      %v4606 = vpack.c.b16 %v4420, %v4417
      %v4607 = vpack.c.b16 %v4421, %v4418
      %v4608 = vpack.c.b16 %v4425, %v4422
      %v4609 = vpack.c.b16 %v4426, %v4423
      %v4610 = vpack.c.b16 %v4427, %v4424
      %v4611 = vpack.c.b16 %v4431, %v4428
      %v4612 = vpack.c.b16 %v4432, %v4429
      %v4613 = vpack.c.b16 %v4433, %v4430
      %v4614 = vpack.c.b16 %v4437, %v4434
      %v4615 = vpack.c.b16 %v4438, %v4435
      %v4616 = vpack.c.b16 %v4439, %v4436
      %v4617 = vpack.c.b16 %v4443, %v4440
      %v4618 = vpack.c.b16 %v4444, %v4441
      %v4619 = vpack.c.b16 %v4445, %v4442
      %v4620 = vpack.c.b16 %v4449, %v4446
      %v4621 = vpack.c.b16 %v4450, %v4447
      %v4622 = vpack.c.b16 %v4451, %v4448
      %v4623 = vpack.c.b16 %v4455, %v4452
      %v4624 = vpack.c.b16 %v4456, %v4453
      %v4625 = vpack.c.b16 %v4457, %v4454
      %v4626 = vpack.c.b16 %v4461, %v4458
      %v4627 = vpack.c.b16 %v4462, %v4459
      %v4628 = vpack.c.b16 %v4463, %v4460
      %v4629 = vpack.c.b16 %v4467, %v4464
      %v4630 = vpack.c.b16 %v4468, %v4465
      %v4631 = vpack.c.b16 %v4469, %v4466
      %v4632 = vpack.c.b16 %v4473, %v4470
      %v4633 = vpack.c.b16 %v4474, %v4471
      %v4634 = vpack.c.b16 %v4475, %v4472
      %v4635 = vpack.c.b16 %v4479, %v4476
      %v4636 = vpack.c.b16 %v4480, %v4477
      %v4637 = vpack.c.b16 %v4481, %v4478
      %v4638 = vpack.c.b16 %v4485, %v4482
      %v4639 = vpack.c.b16 %v4486, %v4483
      %v4640 = vpack.c.b16 %v4487, %v4484
      %v4641 = vpack.c.b16 %v4491, %v4488
      %v4642 = vpack.c.b16 %v4492, %v4489
      %v4643 = vpack.c.b16 %v4493, %v4490
      %v4644 = vpack.c.b16 %v4497, %v4494
      %v4645 = vpack.c.b16 %v4498, %v4495
      %v4646 = vpack.c.b16 %v4499, %v4496
      %v4647 = vpack.c.b16 %v4503, %v4500
      %v4648 = vpack.c.b16 %v4504, %v4501
      %v4649 = vpack.c.b16 %v4505, %v4502
      %v4650 = vpack.c.b16 %v4509, %v4506
      %v4651 = vpack.c.b16 %v4510, %v4507
      %v4652 = vpack.c.b16 %v4511, %v4508
      %v4653 = vpack.c.b16 %v4515, %v4512
      %v4654 = vpack.c.b16 %v4516, %v4513
      %v4655 = vpack.c.b16 %v4517, %v4514
      %v4656 = vpack.c.b16 %v4521, %v4518
      %v4657 = vpack.c.b16 %v4522, %v4519
      %v4658 = vpack.c.b16 %v4523, %v4520
      %v4659 = vpack.c.b16 %v4527, %v4524
      %v4660 = vpack.c.b16 %v4528, %v4525
      %v4661 = vpack.c.b16 %v4529, %v4526
      %v4662 = vpack.c.b16 %v4533, %v4530
      %v4663 = vpack.c.b16 %v4534, %v4531
      %v4664 = vpack.c.b16 %v4535, %v4532
      %v4665 = vpack.c.b16 %v4539, %v4536
      %v4666 = vpack.c.b16 %v4540, %v4537
      %v4667 = vpack.c.b16 %v4541, %v4538
      %v4668 = vpack.c.b16 %v4545, %v4542
      %v4669 = vpack.c.b16 %v4546, %v4543
      %v4670 = vpack.c.b16 %v4547, %v4544
      %v4671 = vpack.c.b16 %v4551, %v4548
      %v4672 = vpack.c.b16 %v4552, %v4549
      %v4673 = vpack.c.b16 %v4553, %v4550
      %v4674 = vpack.c.b16 %v4557, %v4554
      %v4675 = vpack.c.b16 %v4558, %v4555
      %v4676 = vpack.c.b16 %v4559, %v4556
      %v4677 = vpack.c.b16 %v4563, %v4560
      %v4678 = vpack.c.b16 %v4564, %v4561
      %v4679 = vpack.c.b16 %v4565, %v4562
      %v4680 = vpack.c.b16 %v4569, %v4566
      %v4681 = vpack.c.b16 %v4570, %v4567
      %v4682 = vpack.c.b16 %v4571, %v4568
      %v4683 = vpack.c.b16 %v4575, %v4572
      %v4684 = vpack.c.b16 %v4576, %v4573
      %v4685 = vpack.c.b16 %v4577, %v4574
      %v4686 = vpack.c.b16 %v4581, %v4578
      %v4687 = vpack.c.b16 %v4582, %v4579
      %v4688 = vpack.c.b16 %v4583, %v4580
      %v4689 = vpack.c.b16 %v4587, %v4584
      %v4690 = vpack.c.b16 %v4588, %v4585
      %v4691 = vpack.c.b16 %v4589, %v4586
      %v4692 = vpack.c.b16 %v4593, %v4590
      %v4693 = vpack.c.b16 %v4594, %v4591
      %v4694 = vpack.c.b16 %v4595, %v4592
      %v4695 = vpack.c.b16 %v4599, %v4596
      %v4696 = vpack.c.b16 %v4600, %v4597
      %v4697 = vpack.c.b16 %v4601, %v4598
      %4794 = vmatpush.bf16.msra.mxu0 %v4623
      %4795 = vmatpush.bf16.msra.mxu0 %v4620
      %4796 = vmatpush.bf16.msra.mxu0 %v4617
      %4797 = vmatpush.bf16.msra.mxu0 %v4614
      %4798 = vmatpush.bf16.msra.mxu0 %v4611
      %4799 = vmatpush.bf16.msra.mxu0 %v4608
      %4800 = vmatpush.bf16.msra.mxu0 %v4605
      %4801 = vmatpush.bf16.msra.mxu0 %v4602
      %4802 = vmatmul.bf16.gmra.mxu0 %v4274
      %v4803 = vpop.f32.mrf.mxu0
      %v4804 = vadd.f32 0.0, %v4803
      %v4805 = vpop.f32.mrf.mxu0
      %v4806 = vadd.f32 0.0, %v4805
      %4807 = vdwg.mxu0
      %4808 = vmatpush.bf16.msra.mxu0 %v4647
      %4809 = vmatpush.bf16.msra.mxu0 %v4644
      %4810 = vmatpush.bf16.msra.mxu0 %v4641
      %4811 = vmatpush.bf16.msra.mxu0 %v4638
      %4812 = vmatpush.bf16.msra.mxu0 %v4635
      %4813 = vmatpush.bf16.msra.mxu0 %v4632
      %4814 = vmatpush.bf16.msra.mxu0 %v4629
      %4815 = vmatpush.bf16.msra.mxu0 %v4626
      %4816 = vmatmul.bf16.gmra.mxu0 %v4275
      %v4817 = vpop.f32.mrf.mxu0
      %v4818 = vadd.f32 %v4804, %v4817
      %v4819 = vpop.f32.mrf.mxu0
      %v4820 = vadd.f32 %v4806, %v4819
      %4821 = vdwg.mxu0
      %4822 = vmatpush.bf16.msra.mxu0 %v4671
      %4823 = vmatpush.bf16.msra.mxu0 %v4668
      %4824 = vmatpush.bf16.msra.mxu0 %v4665
      %4825 = vmatpush.bf16.msra.mxu0 %v4662
      %4826 = vmatpush.bf16.msra.mxu0 %v4659
      %4827 = vmatpush.bf16.msra.mxu0 %v4656
      %4828 = vmatpush.bf16.msra.mxu0 %v4653
      %4829 = vmatpush.bf16.msra.mxu0 %v4650
      %4830 = vmatmul.bf16.gmra.mxu0 %v4276
      %v4831 = vpop.f32.mrf.mxu0
      %v4832 = vadd.f32 %v4818, %v4831
      %v4833 = vpop.f32.mrf.mxu0
      %v4834 = vadd.f32 %v4820, %v4833
      %4835 = vdwg.mxu0
      %4836 = vmatpush.bf16.msra.mxu0 %v4695
      %4837 = vmatpush.bf16.msra.mxu0 %v4692
      %4838 = vmatpush.bf16.msra.mxu0 %v4689
      %4839 = vmatpush.bf16.msra.mxu0 %v4686
      %4840 = vmatpush.bf16.msra.mxu0 %v4683
      %4841 = vmatpush.bf16.msra.mxu0 %v4680
      %4842 = vmatpush.bf16.msra.mxu0 %v4677
      %4843 = vmatpush.bf16.msra.mxu0 %v4674
      %4844 = vmatmul.bf16.gmra.mxu0 %v4277
      %v4845 = vpop.f32.mrf.mxu0
      %v4846 = vadd.f32 %v4832, %v4845
      %v4847 = vpop.f32.mrf.mxu0
      %v4848 = vadd.f32 %v4834, %v4847
      %4849 = vdwg.mxu0
      %4850 = vmatpush.bf16.msra.mxu0 %v4624
      %4851 = vmatpush.bf16.msra.mxu0 %v4621
      %4852 = vmatpush.bf16.msra.mxu0 %v4618
      %4853 = vmatpush.bf16.msra.mxu0 %v4615
      %4854 = vmatpush.bf16.msra.mxu0 %v4612
      %4855 = vmatpush.bf16.msra.mxu0 %v4609
      %4856 = vmatpush.bf16.msra.mxu0 %v4606
      %4857 = vmatpush.bf16.msra.mxu0 %v4603
      %4858 = vmatmul.bf16.gmra.mxu0 %v4274
      %v4859 = vpop.f32.mrf.mxu0
      %v4860 = vadd.f32 0.0, %v4859
      %v4861 = vpop.f32.mrf.mxu0
      %v4862 = vadd.f32 0.0, %v4861
      %4863 = vdwg.mxu0
      %4864 = vmatpush.bf16.msra.mxu0 %v4648
      %4865 = vmatpush.bf16.msra.mxu0 %v4645
      %4866 = vmatpush.bf16.msra.mxu0 %v4642
      %4867 = vmatpush.bf16.msra.mxu0 %v4639
      %4868 = vmatpush.bf16.msra.mxu0 %v4636
      %4869 = vmatpush.bf16.msra.mxu0 %v4633
      %4870 = vmatpush.bf16.msra.mxu0 %v4630
      %4871 = vmatpush.bf16.msra.mxu0 %v4627
      %4872 = vmatmul.bf16.gmra.mxu0 %v4275
      %v4873 = vpop.f32.mrf.mxu0
      %v4874 = vadd.f32 %v4860, %v4873
      %v4875 = vpop.f32.mrf.mxu0
      %v4876 = vadd.f32 %v4862, %v4875
      %4877 = vdwg.mxu0
      %4878 = vmatpush.bf16.msra.mxu0 %v4672
      %4879 = vmatpush.bf16.msra.mxu0 %v4669
      %4880 = vmatpush.bf16.msra.mxu0 %v4666
      %4881 = vmatpush.bf16.msra.mxu0 %v4663
      %4882 = vmatpush.bf16.msra.mxu0 %v4660
      %4883 = vmatpush.bf16.msra.mxu0 %v4657
      %4884 = vmatpush.bf16.msra.mxu0 %v4654
      %4885 = vmatpush.bf16.msra.mxu0 %v4651
      %4886 = vmatmul.bf16.gmra.mxu0 %v4276
      %v4887 = vpop.f32.mrf.mxu0
      %v4888 = vadd.f32 %v4874, %v4887
      %v4889 = vpop.f32.mrf.mxu0
      %v4890 = vadd.f32 %v4876, %v4889
      %4891 = vdwg.mxu0
      %4892 = vmatpush.bf16.msra.mxu0 %v4696
      %4893 = vmatpush.bf16.msra.mxu0 %v4693
      %4894 = vmatpush.bf16.msra.mxu0 %v4690
      %4895 = vmatpush.bf16.msra.mxu0 %v4687
      %4896 = vmatpush.bf16.msra.mxu0 %v4684
      %4897 = vmatpush.bf16.msra.mxu0 %v4681
      %4898 = vmatpush.bf16.msra.mxu0 %v4678
      %4899 = vmatpush.bf16.msra.mxu0 %v4675
      %4900 = vmatmul.bf16.gmra.mxu0 %v4277
      %v4901 = vpop.f32.mrf.mxu0
      %v4902 = vadd.f32 %v4888, %v4901
      %v4903 = vpop.f32.mrf.mxu0
      %v4904 = vadd.f32 %v4890, %v4903
      %4905 = vdwg.mxu0
      %4906 = vmatpush.bf16.msra.mxu0 %v4625
      %4907 = vmatpush.bf16.msra.mxu0 %v4622
      %4908 = vmatpush.bf16.msra.mxu0 %v4619
      %4909 = vmatpush.bf16.msra.mxu0 %v4616
      %4910 = vmatpush.bf16.msra.mxu0 %v4613
      %4911 = vmatpush.bf16.msra.mxu0 %v4610
      %4912 = vmatpush.bf16.msra.mxu0 %v4607
      %4913 = vmatpush.bf16.msra.mxu0 %v4604
      %4914 = vmatmul.bf16.gmra.mxu0 %v4274
      %v4915 = vpop.f32.mrf.mxu0
      %v4916 = vadd.f32 0.0, %v4915
      %v4917 = vpop.f32.mrf.mxu0
      %v4918 = vadd.f32 0.0, %v4917
      %4919 = vdwg.mxu0
      %4920 = vmatpush.bf16.msra.mxu0 %v4649
      %4921 = vmatpush.bf16.msra.mxu0 %v4646
      %4922 = vmatpush.bf16.msra.mxu0 %v4643
      %4923 = vmatpush.bf16.msra.mxu0 %v4640
      %4924 = vmatpush.bf16.msra.mxu0 %v4637
      %4925 = vmatpush.bf16.msra.mxu0 %v4634
      %4926 = vmatpush.bf16.msra.mxu0 %v4631
      %4927 = vmatpush.bf16.msra.mxu0 %v4628
      %4928 = vmatmul.bf16.gmra.mxu0 %v4275
      %v4929 = vpop.f32.mrf.mxu0
      %v4930 = vadd.f32 %v4916, %v4929
      %v4931 = vpop.f32.mrf.mxu0
      %v4932 = vadd.f32 %v4918, %v4931
      %4933 = vdwg.mxu0
      %4934 = vmatpush.bf16.msra.mxu0 %v4673
      %4935 = vmatpush.bf16.msra.mxu0 %v4670
      %4936 = vmatpush.bf16.msra.mxu0 %v4667
      %4937 = vmatpush.bf16.msra.mxu0 %v4664
      %4938 = vmatpush.bf16.msra.mxu0 %v4661
      %4939 = vmatpush.bf16.msra.mxu0 %v4658
      %4940 = vmatpush.bf16.msra.mxu0 %v4655
      %4941 = vmatpush.bf16.msra.mxu0 %v4652
      %4942 = vmatmul.bf16.gmra.mxu0 %v4276
      %v4943 = vpop.f32.mrf.mxu0
      %v4944 = vadd.f32 %v4930, %v4943
      %v4945 = vpop.f32.mrf.mxu0
      %v4946 = vadd.f32 %v4932, %v4945
      %4947 = vdwg.mxu0
      %4948 = vmatpush.bf16.msra.mxu0 %v4697
      %4949 = vmatpush.bf16.msra.mxu0 %v4694
      %4950 = vmatpush.bf16.msra.mxu0 %v4691
      %4951 = vmatpush.bf16.msra.mxu0 %v4688
      %4952 = vmatpush.bf16.msra.mxu0 %v4685
      %4953 = vmatpush.bf16.msra.mxu0 %v4682
      %4954 = vmatpush.bf16.msra.mxu0 %v4679
      %4955 = vmatpush.bf16.msra.mxu0 %v4676
      %4956 = vmatmul.bf16.gmra.mxu0 %v4277
      %v4957 = vpop.f32.mrf.mxu0
      %v4958 = vadd.f32 %v4944, %v4957
      %v4959 = vpop.f32.mrf.mxu0
      %v4960 = vadd.f32 %v4946, %v4959
      %4961 = vdwg.mxu0
      %v4962 = vld [vmem:[%s284] sm:$0xff]
      %v4963 = vld [vmem:[%s284 + $0x8] sm:$0xff]
      %v4964 = vld [vmem:[%s284 + $0x10] sm:$0xff]
      %v4965 = vld [vmem:[%s284 + $0x18] sm:$0xff]
      %v4966 = vld [vmem:[%s284 + $0x20] sm:$0xff]
      %v4967 = vld [vmem:[%s284 + $0x28] sm:$0xff]
      %v4968 = vld [vmem:[%s284 + $0x30] sm:$0xff]
      %v4969 = vld [vmem:[%s284 + $0x38] sm:$0xff]
      %v4970 = vadd.f32 %v2804, %v3329
      %v4971 = vadd.f32 %v2862, %v3377
      %v4972 = vadd.f32 %v2920, %v3425
      %v4973 = vadd.f32 %v2806, %v3331
      %v4974 = vadd.f32 %v2864, %v3379
      %v4975 = vadd.f32 %v2922, %v3427
      %v4976 = vadd.f32 %v4970, %v4007
      %v4977 = vadd.f32 %v4971, %v4064
      %v4978 = vadd.f32 %v4972, %v4121
      %v4979 = vadd.f32 %v4973, %v4009
      %v4980 = vadd.f32 %v4974, %v4066
      %v4981 = vadd.f32 %v4975, %v4123
      %v4982 = vadd.f32 %v4976, %v4846
      %v4983 = vadd.f32 %v4977, %v4902
      %v4984 = vadd.f32 %v4978, %v4958
      %v4985 = vadd.f32 %v4979, %v4848
      %v4986 = vadd.f32 %v4980, %v4904
      %v4987 = vadd.f32 %v4981, %v4960
      %4989 = vset.pattern.permute.xlu0 0
      %4990 = vperm.xlu0 %4989, %v4962
      %v4991 = vpop.permute.xlu0 %4990
      %4994 = vset.pattern.permute.xlu0 0
      %4995 = vperm.xlu0 %4994, %v4963
      %v4996 = vpop.permute.xlu0 %4995
      %v4998 = vmul.f32 %v4982, %v4991
      %v4999 = vmul.f32 %v4983, %v4991
      %v5000 = vmul.f32 %v4984, %v4991
      %v5001 = vmul.f32 %v4985, %v4996
      %v5002 = vmul.f32 %v4986, %v4996
      %v5003 = vmul.f32 %v4987, %v4996
      %5004 = vst [vmem:[%s293] sm:$0xff] %v4998
      %5005 = vst [vmem:[%s293 + $0x8] sm:$0xff] %v4999
      %5006 = vst [vmem:[%s293 + $0x10] sm:$0xff] %v5000
      %5007 = vst [vmem:[%s293 + $0x18] sm:$0xff] %v5001
      %5008 = vst [vmem:[%s293 + $0x20] sm:$0xff] %v5002
      %5009 = vst [vmem:[%s293 + $0x28] sm:$0xff] %v5003
      %v5010 = vadd.f32 %v2809, %v3334
      %v5011 = vadd.f32 %v2867, %v3382
      %v5012 = vadd.f32 %v2925, %v3430
      %v5013 = vadd.f32 %v2811, %v3336
      %v5014 = vadd.f32 %v2869, %v3384
      %v5015 = vadd.f32 %v2927, %v3432
      %v5016 = vadd.f32 %v5010, %v4012
      %v5017 = vadd.f32 %v5011, %v4069
      %v5018 = vadd.f32 %v5012, %v4126
      %v5019 = vadd.f32 %v5013, %v4014
      %v5020 = vadd.f32 %v5014, %v4071
      %v5021 = vadd.f32 %v5015, %v4128
      %5023 = vset.pattern.permute.xlu0 0
      %5024 = vperm.xlu0 %5023, %v4964
      %v5025 = vpop.permute.xlu0 %5024
      %5028 = vset.pattern.permute.xlu0 0
      %5029 = vperm.xlu0 %5028, %v4965
      %v5030 = vpop.permute.xlu0 %5029
      %v5032 = vmul.f32 %v5016, %v5025
      %v5033 = vmul.f32 %v5017, %v5025
      %v5034 = vmul.f32 %v5018, %v5025
      %v5035 = vmul.f32 %v5019, %v5030
      %v5036 = vmul.f32 %v5020, %v5030
      %v5037 = vmul.f32 %v5021, %v5030
      %5038 = vst [vmem:[%s293 + $0x30] sm:$0xff] %v5032
      %5039 = vst [vmem:[%s293 + $0x38] sm:$0xff] %v5033
      %5040 = vst [vmem:[%s293 + $0x40] sm:$0xff] %v5034
      %5041 = vst [vmem:[%s293 + $0x48] sm:$0xff] %v5035
      %5042 = vst [vmem:[%s293 + $0x50] sm:$0xff] %v5036
      %5043 = vst [vmem:[%s293 + $0x58] sm:$0xff] %v5037
      %v5044 = vadd.f32 %v2814, %v3339
      %v5045 = vadd.f32 %v2872, %v3387
      %v5046 = vadd.f32 %v2930, %v3435
      %v5047 = vadd.f32 %v2816, %v3341
      %v5048 = vadd.f32 %v2874, %v3389
      %v5049 = vadd.f32 %v2932, %v3437
      %5051 = vset.pattern.permute.xlu0 0
      %5052 = vperm.xlu0 %5051, %v4966
      %v5053 = vpop.permute.xlu0 %5052
      %5056 = vset.pattern.permute.xlu0 0
      %5057 = vperm.xlu0 %5056, %v4967
      %v5058 = vpop.permute.xlu0 %5057
      %v5060 = vmul.f32 %v5044, %v5053
      %v5061 = vmul.f32 %v5045, %v5053
      %v5062 = vmul.f32 %v5046, %v5053
      %v5063 = vmul.f32 %v5047, %v5058
      %v5064 = vmul.f32 %v5048, %v5058
      %v5065 = vmul.f32 %v5049, %v5058
      %5066 = vst [vmem:[%s293 + $0x60] sm:$0xff] %v5060
      %5067 = vst [vmem:[%s293 + $0x68] sm:$0xff] %v5061
      %5068 = vst [vmem:[%s293 + $0x70] sm:$0xff] %v5062
      %5069 = vst [vmem:[%s293 + $0x78] sm:$0xff] %v5063
      %5070 = vst [vmem:[%s293 + $0x80] sm:$0xff] %v5064
      %5071 = vst [vmem:[%s293 + $0x88] sm:$0xff] %v5065
      %5073 = vset.pattern.permute.xlu0 0
      %5074 = vperm.xlu0 %5073, %v4968
      %v5075 = vpop.permute.xlu0 %5074
      %5078 = vset.pattern.permute.xlu0 0
      %5079 = vperm.xlu0 %5078, %v4969
      %v5080 = vpop.permute.xlu0 %5079
      %v5082 = vmul.f32 %v2819, %v5075
      %v5083 = vmul.f32 %v2877, %v5075
      %v5084 = vmul.f32 %v2935, %v5075
      %v5085 = vmul.f32 %v2821, %v5080
      %v5086 = vmul.f32 %v2879, %v5080
      %v5087 = vmul.f32 %v2937, %v5080
      %5088 = vst [vmem:[%s293 + $0x90] sm:$0xff] %v5082
      %5089 = vst [vmem:[%s293 + $0x98] sm:$0xff] %v5083
      %5090 = vst [vmem:[%s293 + $0xa0] sm:$0xff] %v5084
      %5091 = vst [vmem:[%s293 + $0xa8] sm:$0xff] %v5085
      %5092 = vst [vmem:[%s293 + $0xb0] sm:$0xff] %v5086
      %5093 = vst [vmem:[%s293 + $0xb8] sm:$0xff] %v5087
      %s5094 = smul.u32 3, %s22
      %p5095 = scmp.lt.s32.totalorder %s21, 1
      %s5096 = scalar_select %p5095, %s21, 1
      %p5097 = scmp.lt.s32.totalorder %s5094, 2
      %s5098 = scalar_select %p5097, %s5094, 2
      %s5099 = smul.addr %s5096, 24
      %s5100 = sadd.s32 %s5098, %s5099
      %s5101 = smul.addr %s5100, 8
      %s5102 = scalar_lea.vmem %s6, %s5101
      // Predicated region
      $region45: #{psa_forward.1} parent=43 // pred_check
        %p5103 = pneg %p185
      $region46: #{psa_forward.1} parent=43 // pred_check_branch
        %5105 = sbr.rel (%p5103) target = $region48
      $region47: #{psa_forward.1} parent=43 // pred_region
        %s5106 = smul.u32 3, %s22
      $region48: #{psa_forward.1} parent=43 // pred_fallthru
        _
    $region44: #{psa_forward.1} parent=5 // pred_fallthru
      _
    %p5107 = scmp.le.s32.totalorder 2, %s12
    // Predicated region
    $region49: #{psa_forward.1} parent=5 // pred_check
      %p5108 = pneg %p5107
    $region50: #{psa_forward.1} parent=5 // pred_check_branch
      %5110 = sbr.rel (%p5108) target = $region52
    $region51: #{psa_forward.1} parent=5 // pred_region
      %s5111 = ssub.s32 %s12, 2
      // Predicated region
      $region53: #{psa_forward.1} parent=51 // pred_check
        %p5112 = pneg %p191
      $region54: #{psa_forward.1} parent=51 // pred_check_branch
        %5114 = sbr.rel (%p5112) target = $region56
      $region55: #{psa_forward.1} parent=51 // pred_region
        %s5115 = smul.u32 3, %s24
        %p5116 = scmp.lt.s32.totalorder %s23, 1
        %s5117 = scalar_select %p5116, %s23, 1
        %p5118 = scmp.lt.s32.totalorder %s5115, 2
        %s5119 = scalar_select %p5118, %s5115, 2
        %s5120 = smul.addr %s5117, 24
        %s5121 = sadd.s32 %s5119, %s5120
        %s5122 = smul.addr %s5121, 8
        %s5123 = scalar_lea.vmem %s6, %s5122
      $region56: #{psa_forward.1} parent=51 // pred_fallthru
        _
    $region52: #{psa_forward.1} parent=5 // pred_fallthru
      _
  $region6: #{psa_forward.1} parent=0 // loop_footer
    %s16 = sadd.s32 1, %s12
  $region7: #{psa_forward.1} parent=0 // loop_footer_branch
    %11 = sbr.rel target = $region3
  $region8: #{psa_forward.1} parent=0 // loop_exit
    _

</llo_original>
